<compile_context>
chip_gen: v7x
topology: tpu7x:2x2x1
jax: 0.10.0
libtpu: 0.0.40
codegen_flags: <defaults>
</compile_context>

<pallas_src>
import functools

import numpy as np
import jax
import jax.numpy as jnp
from jax.experimental import pallas as pl
from jax.experimental.pallas import tpu as pltpu


# ----------------------------------------------------------------------------
# Kernel (single invocation, whole problem in VMEM)
# ----------------------------------------------------------------------------
def generator_kernel(
    x_ref,        # (T*Bp, C)        time-major, batch-padded, flattened input
    mask_ref,     # (T*Bp, Hp)       float 0/1 validity mask, lane-broadcast
    wih1_ref,     # (C, 3*Hp)        layer-1 input weights, gate stride Hp (r,z,n)
    wrec_ref,     # (Hp, 3Hp+4Hp+4Hp+Op) packed [whh1 | w2a | w2b | wfc]
    bias_ref,     # (1, 3Hp+3Hp+4Hp+Op)  packed [bih1 | bhh1 | b2 | bfc]
    out_ref,      # (T*Bp, Op)       lane-dense output (written once at the end)
    gi1_ref,      # VMEM scratch (T*Bp, 3*Hp): hoisted layer-1 input projection
    h2all_ref,    # VMEM scratch (T*Bp, Hp):   masked layer-2 hidden per step
    *, seq_len, batch_pad, hidden, hp, op,
):
    H, Hp, Op, Bp = hidden, hp, op, batch_pad
    G3, G4 = 3 * Hp, 4 * Hp

    # Column offsets inside the packed weight / bias slabs (all multiples of 128).
    WHH1, W2A, W2B, WFC = 0, G3, G3 + G4, G3 + 2 * G4
    BIH1, BHH1, B2, BFC = 0, G3, 2 * G3, 2 * G3 + G4

    # --- Hoisted, time-invariant layer-1 input projection: one MXU pass.
    gi1_ref[...] = (
        jnp.dot(x_ref[...], wih1_ref[...], preferred_element_type=jnp.float32)
        + bias_ref[:, BIH1:BIH1 + G3])

    # Recurrent weights occupy rows 0:H of the slab (contraction dim = H).
    whh1 = wrec_ref[0:H, WHH1:WHH1 + G3]       # (H, 3Hp)
    w2a = wrec_ref[0:H, W2A:W2A + G4]          # (H, 4Hp)  [r | z | gi_n | 0   ]
    w2b = wrec_ref[0:H, W2B:W2B + G4]          # (H, 4Hp)  [r | z | 0    | gh_n]
    bhh1 = bias_ref[:, BHH1:BHH1 + G3]         # (1, 3Hp)
    b2 = bias_ref[:, B2:B2 + G4]               # (1, 4Hp)  r/z biases pre-summed

    def sigmoid(v):
        # Single EUP op; jax.nn.sigmoid lowers to exp + divide (two chained
        # long-latency EUP ops on the recurrence critical path).
        return 0.5 * jnp.tanh(0.5 * v) + 0.5

    def step(t, h1, h2):
        rows = pl.ds(t * Bp, Bp)               # Bp multiple of 8 -> tile aligned
        m = mask_ref[rows, :]                  # (Bp, Hp) float 0/1
        not_m = 1.0 - m

        # ---- layer 1: input projection precomputed; one hidden matmul.
        gi1 = gi1_ref[rows, :]                                            # (Bp, 3Hp)
        gh1 = jnp.dot(h1[:, :H], whh1,
                      preferred_element_type=jnp.float32) + bhh1          # (Bp, 3Hp)
        rz1 = sigmoid(gi1[:, :2 * Hp] + gh1[:, :2 * Hp])   # one EUP call, 2 vregs
        r1, z1 = rz1[:, :Hp], rz1[:, Hp:]
        n1 = jnp.tanh(gi1[:, 2 * Hp:] + r1 * gh1[:, 2 * Hp:])
        h1 = m * ((1.0 - z1) * n1 + z1 * h1) + not_m * h1   # exact 0/1 freeze blend

        # ---- layer 2: split matmuls (no lane concat; h2 term independent of h1_t).
        g2 = (jnp.dot(h1[:, :H], w2a, preferred_element_type=jnp.float32)
              + jnp.dot(h2[:, :H], w2b, preferred_element_type=jnp.float32)
              + b2)                                                        # (Bp, 4Hp)
        rz2 = sigmoid(g2[:, :2 * Hp])
        r2, z2 = rz2[:, :Hp], rz2[:, Hp:]
        n2 = jnp.tanh(g2[:, 2 * Hp:3 * Hp] + r2 * g2[:, 3 * Hp:])
        h2 = m * ((1.0 - z2) * n2 + z2 * h2) + not_m * h2

        # pad_packed_sequence zeros padded positions before fc (full-vreg store,
        # off the critical path, idle vst slot).
        h2all_ref[rows, :] = m * h2
        return h1, h2

    # init_hidden(): zeros.  Hidden state is a zero-padded (Bp, Hp) vreg; lanes
    # H..Hp stay exactly zero through the recurrence (zero-padded weights/biases).
    h1 = jnp.zeros((Bp, Hp), jnp.float32)
    h2 = jnp.zeros((Bp, Hp), jnp.float32)
    # seq_len is small and static -> full unroll (static offsets, LLO visibility).
    for t in range(seq_len):
        h1, h2 = step(t, h1, h2)

    # --- Deferred fc + tanh: one lane-dense matmul + one unmasked output store.
    wfc = wrec_ref[:, WFC:WFC + Op]            # (Hp, Op), rows >= H are zero
    bfc = bias_ref[:, BFC:BFC + Op]            # (1, Op)
    out_ref[...] = jnp.tanh(
        jnp.dot(h2all_ref[...], wfc, preferred_element_type=jnp.float32) + bfc)


# ----------------------------------------------------------------------------
# Wrapper
# ----------------------------------------------------------------------------
def _round_up(v, m):
    return (v + m - 1) // m * m


def _gate_pad(w, H, Hp):
    """(rows, 3H) gate order r,z,n -> (rows, 3*Hp): each gate in its own Hp tile."""
    parts = [jnp.pad(w[:, g * H:(g + 1) * H], ((0, 0), (0, Hp - H)))
             for g in range(3)]
    return jnp.concatenate(parts, axis=1)


def prepare_params(params, lane=128):
    """One-time (static) weight fusion / lane padding: do NOT redo per call."""
    C = params["wih1"].shape[0]
    H = params["whh1"].shape[0]
    O = params["wfc"].shape[1]
    Hp = _round_up(H, lane)
    Op = _round_up(O, lane)
    f32 = lambda a: jnp.asarray(a, jnp.float32)

    wih1 = _gate_pad(f32(params["wih1"]), H, Hp)           # (C, 3Hp)
    bih1 = _gate_pad(f32(params["bih1"]), H, Hp)           # (1, 3Hp)
    whh1 = _gate_pad(f32(params["whh1"]), H, Hp)           # (H, 3Hp)
    bhh1 = _gate_pad(f32(params["bhh1"]), H, Hp)           # (1, 3Hp)

    wih2, whh2 = f32(params["wih2"]), f32(params["whh2"])
    bih2, bhh2 = f32(params["bih2"]), f32(params["bhh2"])
    padg = lambda a: jnp.pad(a, ((0, 0), (0, Hp - H)))
    zHHp = jnp.zeros((H, Hp), jnp.float32)
    # Layer-2 split weights, gate tiles [r | z | gi_n | gh_n], r/z biases summed.
    w2a = jnp.concatenate([padg(wih2[:, :H]), padg(wih2[:, H:2 * H]),
                           padg(wih2[:, 2 * H:]), zHHp], axis=1)          # (H, 4Hp)
    w2b = jnp.concatenate([padg(whh2[:, :H]), padg(whh2[:, H:2 * H]),
                           zHHp, padg(whh2[:, 2 * H:])], axis=1)          # (H, 4Hp)
    b2 = jnp.concatenate([padg(bih2[:, :H] + bhh2[:, :H]),
                          padg(bih2[:, H:2 * H] + bhh2[:, H:2 * H]),
                          padg(bih2[:, 2 * H:]), padg(bhh2[:, 2 * H:])],
                         axis=1)                                          # (1, 4Hp)

    wfc = jnp.pad(f32(params["wfc"]), ((0, Hp - H), (0, Op - O)))         # (Hp, Op)
    bfc = jnp.pad(f32(params["bfc"]), ((0, 0), (0, Op - O)))              # (1, Op)

    # Single packed recurrent/fc weight slab (Hp rows) and bias slab (1 row).
    pad_rows = lambda w: jnp.pad(w, ((0, Hp - H), (0, 0)))
    wrec = jnp.concatenate([pad_rows(whh1), pad_rows(w2a), pad_rows(w2b), wfc],
                           axis=1)                                        # (Hp, 3Hp+8Hp+Op)
    bias = jnp.concatenate([bih1, bhh1, b2, bfc], axis=1)                 # (1, 6Hp+4Hp... )

    return {"wih1": wih1, "wrec": wrec, "bias": bias, "H": H, "O": O}


@functools.partial(jax.jit, static_argnames=("xlens", "H", "O"))
def _generator_forward_jit(x, wih1, wrec, bias, *, xlens, H, O):
    B, T, C = x.shape
    xlens_np = np.asarray(xlens, dtype=np.int32)
    T_out = int(xlens_np.max())                 # pad_packed_sequence length
    Hp = wrec.shape[0]
    Op = _round_up(O, 128)
    Bp = _round_up(B, 8)                        # full f32 sublane tiles

    # Time-major, batch-padded, flattened to (T_out*Bp, C) — inside the jit.
    x_tm = jnp.transpose(x[:, :T_out, :], (1, 0, 2))          # (T, B, C)
    x_tm = jnp.pad(x_tm, ((0, 0), (0, Bp - B), (0, 0)))       # (T, Bp, C)
    x_flat = x_tm.reshape(T_out * Bp, C)

    # Precomputed float 0/1 validity mask (t < xlens[b]); padded rows = 0.
    # Lane-broadcast to Hp so the in-kernel blends are pure VPU multiplies.
    mask_np = (np.arange(T_out, dtype=np.int32)[:, None]
               < xlens_np[None, :]).astype(np.float32)        # (T, B)
    mask_np = np.pad(mask_np, ((0, 0), (0, Bp - B)))          # (T, Bp)
    mask = jnp.broadcast_to(
        jnp.asarray(mask_np).reshape(T_out * Bp, 1), (T_out * Bp, Hp))

    vmem = lambda: pl.BlockSpec(memory_space=pltpu.MemorySpace.VMEM)

    out_flat = pl.pallas_call(
        functools.partial(generator_kernel, seq_len=T_out, batch_pad=Bp,
                          hidden=H, hp=Hp, op=Op),
        out_shape=jax.ShapeDtypeStruct((T_out * Bp, Op), jnp.float32),
        in_specs=[vmem() for _ in range(5)],
        out_specs=vmem(),
        scratch_shapes=[
            pltpu.VMEM((T_out * Bp, 3 * Hp), jnp.float32),    # hoisted gi1
            pltpu.VMEM((T_out * Bp, Hp), jnp.float32),        # masked h2 per step
        ],
    )(x_flat, mask, wih1, wrec, bias)

    out = out_flat.reshape(T_out, Bp, Op)[:, :B, :O]          # drop padding
    return jnp.transpose(out, (1, 0, 2))                      # (B, T_out, O)


def generator_forward(x, xlens, prepared):
    """x: (B, T, C) float32 batch-first; xlens: python/np ints; prepared: prepare_params()."""
    return _generator_forward_jit(
        x, prepared["wih1"], prepared["wrec"], prepared["bias"],
        xlens=tuple(int(v) for v in xlens), H=prepared["H"], O=prepared["O"])


# ----------------------------------------------------------------------------
# Deterministic parameter init (PyTorch-style uniform(-1/sqrt(H), 1/sqrt(H)))
# ----------------------------------------------------------------------------
def init_params(key, input_channels, hidden_size, output_dim):
    C, H, O = input_channels, hidden_size, output_dim
    k = 1.0 / np.sqrt(H)
    keys = jax.random.split(key, 10)
    u = lambda kk, shape: jax.random.uniform(kk, shape, jnp.float32, -k, k)
    return {
        # stored transposed relative to PyTorch: (in_features, 3H), gate order r,z,n
        "wih1": u(keys[0], (C, 3 * H)),
        "whh1": u(keys[1], (H, 3 * H)),
        "bih1": u(keys[2], (1, 3 * H)),
        "bhh1": u(keys[3], (1, 3 * H)),
        "wih2": u(keys[4], (H, 3 * H)),
        "whh2": u(keys[5], (H, 3 * H)),
        "bih2": u(keys[6], (1, 3 * H)),
        "bhh2": u(keys[7], (1, 3 * H)),
        "wfc": u(keys[8], (H, O)),
        "bfc": u(keys[9], (1, O)),
    }


# ----------------------------------------------------------------------------
# Pure-JAX reference (mirrors the PyTorch packed-GRU eval forward)
# ----------------------------------------------------------------------------
def generator_reference(x, xlens, params):
    B, T, C = x.shape
    xlens_np = np.asarray(xlens, dtype=np.int32)
    T_out = int(xlens_np.max())
    H = params["whh1"].shape[0]
    xlens_col = jnp.asarray(xlens_np).reshape(B, 1)

    def cell(inp, h, wih, whh, bih, bhh):
        gi = inp @ wih + bih
        gh = h @ whh + bhh
        r = jax.nn.sigmoid(gi[:, :H] + gh[:, :H])
        z = jax.nn.sigmoid(gi[:, H:2 * H] + gh[:, H:2 * H])
        n = jnp.tanh(gi[:, 2 * H:] + r * gh[:, 2 * H:])
        return (1.0 - z) * n + z * h

    h1 = jnp.zeros((B, H), jnp.float32)
    h2 = jnp.zeros((B, H), jnp.float32)
    outs = []
    for t in range(T_out):
        valid = t < xlens_col
        h1 = jnp.where(valid, cell(x[:, t, :], h1, params["wih1"], params["whh1"],
                                   params["bih1"], params["bhh1"]), h1)
        h2 = jnp.where(valid, cell(h1, h2, params["wih2"], params["whh2"],
                                   params["bih2"], params["bhh2"]), h2)
        padded = jnp.where(valid, h2, 0.0)
        outs.append(jnp.tanh(padded @ params["wfc"] + params["bfc"]))
    return jnp.stack(outs, axis=1)


# ----------------------------------------------------------------------------
if __name__ == "__main__":
    # Small shapes consistent with the module's forward:
    #   batch=4, seq=8, input_channels=8, hidden_size=32, output_dim=2
    B, T, C, H, O = 4, 8, 8, 32, 2

    key = jax.random.PRNGKey(0)
    k_x, k_p = jax.random.split(key)
    x = jax.random.normal(k_x, (B, T, C), jnp.float32)
    xlens = [8, 5, 3, 6]                     # variable lengths (enforce_sorted=False)
    params = init_params(k_p, C, H, O)
    prepared = prepare_params(params)        # static weight fusion, done once

    out = generator_forward(x, xlens, prepared)
    out = jax.block_until_ready(out)

    ref = generator_reference(x, xlens, params)
    np.testing.assert_allclose(np.asarray(out), np.asarray(ref),
                               atol=1e-4, rtol=1e-4)

    assert out.shape == (B, max(xlens), O)
    print("KERNEL_OK")
</pallas_src>

<mosaic_0001>
module attributes {stable_mosaic.version = 11 : i64} {
  func.func @generator_kernel(%arg0: memref<64x8xf32, #tpu.memory_space<vmem>>, %arg1: memref<64x128xf32, #tpu.memory_space<vmem>>, %arg2: memref<8x384xf32, #tpu.memory_space<vmem>>, %arg3: memref<128x1536xf32, #tpu.memory_space<vmem>>, %arg4: memref<1x1408xf32, #tpu.memory_space<vmem>>, %arg5: memref<64x128xf32, #tpu.memory_space<vmem>>, %arg6: memref<64x384xf32, #tpu.memory_space<vmem>>, %arg7: memref<64x128xf32, #tpu.memory_space<vmem>>) attributes {dimension_semantics = [], scalar_prefetch = 0 : i64, scratch_operands = 2 : i64, tpu.core_type = #tpu.core_type<tc>} {
    %c0 = arith.constant 0 : index
    %c0_0 = arith.constant 0 : index
    %0 = vector.load %arg0[%c0, %c0_0] : memref<64x8xf32, #tpu.memory_space<vmem>>, vector<64x8xf32>
    %c0_1 = arith.constant 0 : index
    %c0_2 = arith.constant 0 : index
    %1 = vector.load %arg2[%c0_1, %c0_2] : memref<8x384xf32, #tpu.memory_space<vmem>>, vector<8x384xf32>
    %cst = arith.constant dense<0.000000e+00> : vector<64x384xf32>
    %2 = tpu.matmul %0, %1, %cst {dimension_numbers = #tpu.dot_dimension_numbers<[1], [0], [0], [1], [0, 0, 1, 1], [], []>} : vector<64x8xf32>, vector<8x384xf32>, vector<64x384xf32> -> vector<64x384xf32>
    %c0_3 = arith.constant 0 : index
    %c0_4 = arith.constant 0 : index
    %3 = vector.load %arg4[%c0_3, %c0_4] : memref<1x1408xf32, #tpu.memory_space<vmem>>, vector<1x384xf32>
    %4 = vector.broadcast %3 : vector<1x384xf32> to vector<64x384xf32>
    %5 = arith.addf %2, %4 : vector<64x384xf32>
    %c0_5 = arith.constant 0 : index
    %c0_6 = arith.constant 0 : index
    %6 = vector.load %arg6[%c0_5, %c0_6] : memref<64x384xf32, #tpu.memory_space<vmem>>, vector<64x384xf32>
    tpu.vector_store %arg6[%c0_5, %c0_6], %5 {strides = array<i32>} : memref<64x384xf32, #tpu.memory_space<vmem>>, vector<64x384xf32>,
    %c0_7 = arith.constant 0 : index
    %c0_8 = arith.constant 0 : index
    %7 = vector.load %arg3[%c0_7, %c0_8] : memref<128x1536xf32, #tpu.memory_space<vmem>>, vector<32x384xf32>
    %c0_9 = arith.constant 0 : index
    %c384 = arith.constant 384 : index
    %8 = vector.load %arg3[%c0_9, %c384] : memref<128x1536xf32, #tpu.memory_space<vmem>>, vector<32x512xf32>
    %c0_10 = arith.constant 0 : index
    %c896 = arith.constant 896 : index
    %9 = vector.load %arg3[%c0_10, %c896] : memref<128x1536xf32, #tpu.memory_space<vmem>>, vector<32x512xf32>
    %c0_11 = arith.constant 0 : index
    %c384_12 = arith.constant 384 : index
    %10 = vector.load %arg4[%c0_11, %c384_12] : memref<1x1408xf32, #tpu.memory_space<vmem>>, vector<1x384xf32>
    %c0_13 = arith.constant 0 : index
    %c768 = arith.constant 768 : index
    %11 = vector.load %arg4[%c0_13, %c768] : memref<1x1408xf32, #tpu.memory_space<vmem>>, vector<1x512xf32>
    %cst_14 = arith.constant 0.000000e+00 : f32
    %12 = vector.broadcast %cst_14 : f32 to vector<8x128xf32>
    %cst_15 = arith.constant 0.000000e+00 : f32
    %13 = vector.broadcast %cst_15 : f32 to vector<8x128xf32>
    %c0_16 = arith.constant 0 : index
    %c0_17 = arith.constant 0 : index
    %14 = vector.load %arg1[%c0_16, %c0_17] : memref<64x128xf32, #tpu.memory_space<vmem>>, vector<8x128xf32>
    %cst_18 = arith.constant 1.000000e+00 : f32
    %15 = vector.broadcast %cst_18 : f32 to vector<8x128xf32>
    %16 = arith.subf %15, %14 : vector<8x128xf32>
    %c0_19 = arith.constant 0 : index
    %c0_20 = arith.constant 0 : index
    %17 = vector.load %arg6[%c0_19, %c0_20] : memref<64x384xf32, #tpu.memory_space<vmem>>, vector<8x384xf32>
    %18 = vector.extract_strided_slice %12 {offsets = [0, 0], sizes = [8, 32], strides = [1, 1]} : vector<8x128xf32> to vector<8x32xf32>
    %cst_21 = arith.constant dense<0.000000e+00> : vector<8x384xf32>
    %19 = tpu.matmul %18, %7, %cst_21 {dimension_numbers = #tpu.dot_dimension_numbers<[1], [0], [0], [1], [0, 0, 1, 1], [], []>} : vector<8x32xf32>, vector<32x384xf32>, vector<8x384xf32> -> vector<8x384xf32>
    %20 = vector.broadcast %10 : vector<1x384xf32> to vector<8x384xf32>
    %21 = arith.addf %19, %20 : vector<8x384xf32>
    %22 = vector.extract_strided_slice %17 {offsets = [0, 0], sizes = [8, 256], strides = [1, 1]} : vector<8x384xf32> to vector<8x256xf32>
    %23 = vector.extract_strided_slice %21 {offsets = [0, 0], sizes = [8, 256], strides = [1, 1]} : vector<8x384xf32> to vector<8x256xf32>
    %24 = arith.addf %22, %23 : vector<8x256xf32>
    %cst_22 = arith.constant 5.000000e-01 : f32
    %25 = vector.broadcast %cst_22 : f32 to vector<8x256xf32>
    %26 = arith.mulf %25, %24 : vector<8x256xf32>
    %27 = math.tanh %26 : vector<8x256xf32>
    %cst_23 = arith.constant 5.000000e-01 : f32
    %28 = vector.broadcast %cst_23 : f32 to vector<8x256xf32>
    %29 = arith.mulf %28, %27 : vector<8x256xf32>
    %cst_24 = arith.constant 5.000000e-01 : f32
    %30 = vector.broadcast %cst_24 : f32 to vector<8x256xf32>
    %31 = arith.addf %29, %30 : vector<8x256xf32>
    %32 = vector.extract_strided_slice %31 {offsets = [0, 0], sizes = [8, 128], strides = [1, 1]} : vector<8x256xf32> to vector<8x128xf32>
    %33 = vector.extract_strided_slice %31 {offsets = [0, 128], sizes = [8, 128], strides = [1, 1]} : vector<8x256xf32> to vector<8x128xf32>
    %34 = vector.extract_strided_slice %17 {offsets = [0, 256], sizes = [8, 128], strides = [1, 1]} : vector<8x384xf32> to vector<8x128xf32>
    %35 = vector.extract_strided_slice %21 {offsets = [0, 256], sizes = [8, 128], strides = [1, 1]} : vector<8x384xf32> to vector<8x128xf32>
    %36 = arith.mulf %32, %35 : vector<8x128xf32>
    %37 = arith.addf %34, %36 : vector<8x128xf32>
    %38 = math.tanh %37 : vector<8x128xf32>
    %cst_25 = arith.constant 1.000000e+00 : f32
    %39 = vector.broadcast %cst_25 : f32 to vector<8x128xf32>
    %40 = arith.subf %39, %33 : vector<8x128xf32>
    %41 = arith.mulf %40, %38 : vector<8x128xf32>
    %42 = arith.mulf %33, %12 : vector<8x128xf32>
    %43 = arith.addf %41, %42 : vector<8x128xf32>
    %44 = arith.mulf %14, %43 : vector<8x128xf32>
    %45 = arith.mulf %16, %12 : vector<8x128xf32>
    %46 = arith.addf %44, %45 : vector<8x128xf32>
    %47 = vector.extract_strided_slice %46 {offsets = [0, 0], sizes = [8, 32], strides = [1, 1]} : vector<8x128xf32> to vector<8x32xf32>
    %cst_26 = arith.constant dense<0.000000e+00> : vector<8x512xf32>
    %48 = tpu.matmul %47, %8, %cst_26 {dimension_numbers = #tpu.dot_dimension_numbers<[1], [0], [0], [1], [0, 0, 1, 1], [], []>} : vector<8x32xf32>, vector<32x512xf32>, vector<8x512xf32> -> vector<8x512xf32>
    %49 = vector.extract_strided_slice %13 {offsets = [0, 0], sizes = [8, 32], strides = [1, 1]} : vector<8x128xf32> to vector<8x32xf32>
    %cst_27 = arith.constant dense<0.000000e+00> : vector<8x512xf32>
    %50 = tpu.matmul %49, %9, %cst_27 {dimension_numbers = #tpu.dot_dimension_numbers<[1], [0], [0], [1], [0, 0, 1, 1], [], []>} : vector<8x32xf32>, vector<32x512xf32>, vector<8x512xf32> -> vector<8x512xf32>
    %51 = arith.addf %48, %50 : vector<8x512xf32>
    %52 = vector.broadcast %11 : vector<1x512xf32> to vector<8x512xf32>
    %53 = arith.addf %51, %52 : vector<8x512xf32>
    %54 = vector.extract_strided_slice %53 {offsets = [0, 0], sizes = [8, 256], strides = [1, 1]} : vector<8x512xf32> to vector<8x256xf32>
    %cst_28 = arith.constant 5.000000e-01 : f32
    %55 = vector.broadcast %cst_28 : f32 to vector<8x256xf32>
    %56 = arith.mulf %55, %54 : vector<8x256xf32>
    %57 = math.tanh %56 : vector<8x256xf32>
    %cst_29 = arith.constant 5.000000e-01 : f32
    %58 = vector.broadcast %cst_29 : f32 to vector<8x256xf32>
    %59 = arith.mulf %58, %57 : vector<8x256xf32>
    %cst_30 = arith.constant 5.000000e-01 : f32
    %60 = vector.broadcast %cst_30 : f32 to vector<8x256xf32>
    %61 = arith.addf %59, %60 : vector<8x256xf32>
    %62 = vector.extract_strided_slice %61 {offsets = [0, 0], sizes = [8, 128], strides = [1, 1]} : vector<8x256xf32> to vector<8x128xf32>
    %63 = vector.extract_strided_slice %61 {offsets = [0, 128], sizes = [8, 128], strides = [1, 1]} : vector<8x256xf32> to vector<8x128xf32>
    %64 = vector.extract_strided_slice %53 {offsets = [0, 256], sizes = [8, 128], strides = [1, 1]} : vector<8x512xf32> to vector<8x128xf32>
    %65 = vector.extract_strided_slice %53 {offsets = [0, 384], sizes = [8, 128], strides = [1, 1]} : vector<8x512xf32> to vector<8x128xf32>
    %66 = arith.mulf %62, %65 : vector<8x128xf32>
    %67 = arith.addf %64, %66 : vector<8x128xf32>
    %68 = math.tanh %67 : vector<8x128xf32>
    %cst_31 = arith.constant 1.000000e+00 : f32
    %69 = vector.broadcast %cst_31 : f32 to vector<8x128xf32>
    %70 = arith.subf %69, %63 : vector<8x128xf32>
    %71 = arith.mulf %70, %68 : vector<8x128xf32>
    %72 = arith.mulf %63, %13 : vector<8x128xf32>
    %73 = arith.addf %71, %72 : vector<8x128xf32>
    %74 = arith.mulf %14, %73 : vector<8x128xf32>
    %75 = arith.mulf %16, %13 : vector<8x128xf32>
    %76 = arith.addf %74, %75 : vector<8x128xf32>
    %77 = arith.mulf %14, %76 : vector<8x128xf32>
    %c0_32 = arith.constant 0 : index
    %c0_33 = arith.constant 0 : index
    %78 = vector.load %arg7[%c0_32, %c0_33] : memref<64x128xf32, #tpu.memory_space<vmem>>, vector<8x128xf32>
    tpu.vector_store %arg7[%c0_32, %c0_33], %77 {strides = array<i32>} : memref<64x128xf32, #tpu.memory_space<vmem>>, vector<8x128xf32>,
    %c8 = arith.constant 8 : index
    %c0_34 = arith.constant 0 : index
    %79 = vector.load %arg1[%c8, %c0_34] : memref<64x128xf32, #tpu.memory_space<vmem>>, vector<8x128xf32>
    %cst_35 = arith.constant 1.000000e+00 : f32
    %80 = vector.broadcast %cst_35 : f32 to vector<8x128xf32>
    %81 = arith.subf %80, %79 : vector<8x128xf32>
    %c8_36 = arith.constant 8 : index
    %c0_37 = arith.constant 0 : index
    %82 = vector.load %arg6[%c8_36, %c0_37] : memref<64x384xf32, #tpu.memory_space<vmem>>, vector<8x384xf32>
    %83 = vector.extract_strided_slice %46 {offsets = [0, 0], sizes = [8, 32], strides = [1, 1]} : vector<8x128xf32> to vector<8x32xf32>
    %cst_38 = arith.constant dense<0.000000e+00> : vector<8x384xf32>
    %84 = tpu.matmul %83, %7, %cst_38 {dimension_numbers = #tpu.dot_dimension_numbers<[1], [0], [0], [1], [0, 0, 1, 1], [], []>} : vector<8x32xf32>, vector<32x384xf32>, vector<8x384xf32> -> vector<8x384xf32>
    %85 = vector.broadcast %10 : vector<1x384xf32> to vector<8x384xf32>
    %86 = arith.addf %84, %85 : vector<8x384xf32>
    %87 = vector.extract_strided_slice %82 {offsets = [0, 0], sizes = [8, 256], strides = [1, 1]} : vector<8x384xf32> to vector<8x256xf32>
    %88 = vector.extract_strided_slice %86 {offsets = [0, 0], sizes = [8, 256], strides = [1, 1]} : vector<8x384xf32> to vector<8x256xf32>
    %89 = arith.addf %87, %88 : vector<8x256xf32>
    %cst_39 = arith.constant 5.000000e-01 : f32
    %90 = vector.broadcast %cst_39 : f32 to vector<8x256xf32>
    %91 = arith.mulf %90, %89 : vector<8x256xf32>
    %92 = math.tanh %91 : vector<8x256xf32>
    %cst_40 = arith.constant 5.000000e-01 : f32
    %93 = vector.broadcast %cst_40 : f32 to vector<8x256xf32>
    %94 = arith.mulf %93, %92 : vector<8x256xf32>
    %cst_41 = arith.constant 5.000000e-01 : f32
    %95 = vector.broadcast %cst_41 : f32 to vector<8x256xf32>
    %96 = arith.addf %94, %95 : vector<8x256xf32>
    %97 = vector.extract_strided_slice %96 {offsets = [0, 0], sizes = [8, 128], strides = [1, 1]} : vector<8x256xf32> to vector<8x128xf32>
    %98 = vector.extract_strided_slice %96 {offsets = [0, 128], sizes = [8, 128], strides = [1, 1]} : vector<8x256xf32> to vector<8x128xf32>
    %99 = vector.extract_strided_slice %82 {offsets = [0, 256], sizes = [8, 128], strides = [1, 1]} : vector<8x384xf32> to vector<8x128xf32>
    %100 = vector.extract_strided_slice %86 {offsets = [0, 256], sizes = [8, 128], strides = [1, 1]} : vector<8x384xf32> to vector<8x128xf32>
    %101 = arith.mulf %97, %100 : vector<8x128xf32>
    %102 = arith.addf %99, %101 : vector<8x128xf32>
    %103 = math.tanh %102 : vector<8x128xf32>
    %cst_42 = arith.constant 1.000000e+00 : f32
    %104 = vector.broadcast %cst_42 : f32 to vector<8x128xf32>
    %105 = arith.subf %104, %98 : vector<8x128xf32>
    %106 = arith.mulf %105, %103 : vector<8x128xf32>
    %107 = arith.mulf %98, %46 : vector<8x128xf32>
    %108 = arith.addf %106, %107 : vector<8x128xf32>
    %109 = arith.mulf %79, %108 : vector<8x128xf32>
    %110 = arith.mulf %81, %46 : vector<8x128xf32>
    %111 = arith.addf %109, %110 : vector<8x128xf32>
    %112 = vector.extract_strided_slice %111 {offsets = [0, 0], sizes = [8, 32], strides = [1, 1]} : vector<8x128xf32> to vector<8x32xf32>
    %cst_43 = arith.constant dense<0.000000e+00> : vector<8x512xf32>
    %113 = tpu.matmul %112, %8, %cst_43 {dimension_numbers = #tpu.dot_dimension_numbers<[1], [0], [0], [1], [0, 0, 1, 1], [], []>} : vector<8x32xf32>, vector<32x512xf32>, vector<8x512xf32> -> vector<8x512xf32>
    %114 = vector.extract_strided_slice %76 {offsets = [0, 0], sizes = [8, 32], strides = [1, 1]} : vector<8x128xf32> to vector<8x32xf32>
    %cst_44 = arith.constant dense<0.000000e+00> : vector<8x512xf32>
    %115 = tpu.matmul %114, %9, %cst_44 {dimension_numbers = #tpu.dot_dimension_numbers<[1], [0], [0], [1], [0, 0, 1, 1], [], []>} : vector<8x32xf32>, vector<32x512xf32>, vector<8x512xf32> -> vector<8x512xf32>
    %116 = arith.addf %113, %115 : vector<8x512xf32>
    %117 = vector.broadcast %11 : vector<1x512xf32> to vector<8x512xf32>
    %118 = arith.addf %116, %117 : vector<8x512xf32>
    %119 = vector.extract_strided_slice %118 {offsets = [0, 0], sizes = [8, 256], strides = [1, 1]} : vector<8x512xf32> to vector<8x256xf32>
    %cst_45 = arith.constant 5.000000e-01 : f32
    %120 = vector.broadcast %cst_45 : f32 to vector<8x256xf32>
    %121 = arith.mulf %120, %119 : vector<8x256xf32>
    %122 = math.tanh %121 : vector<8x256xf32>
    %cst_46 = arith.constant 5.000000e-01 : f32
    %123 = vector.broadcast %cst_46 : f32 to vector<8x256xf32>
    %124 = arith.mulf %123, %122 : vector<8x256xf32>
    %cst_47 = arith.constant 5.000000e-01 : f32
    %125 = vector.broadcast %cst_47 : f32 to vector<8x256xf32>
    %126 = arith.addf %124, %125 : vector<8x256xf32>
    %127 = vector.extract_strided_slice %126 {offsets = [0, 0], sizes = [8, 128], strides = [1, 1]} : vector<8x256xf32> to vector<8x128xf32>
    %128 = vector.extract_strided_slice %126 {offsets = [0, 128], sizes = [8, 128], strides = [1, 1]} : vector<8x256xf32> to vector<8x128xf32>
    %129 = vector.extract_strided_slice %118 {offsets = [0, 256], sizes = [8, 128], strides = [1, 1]} : vector<8x512xf32> to vector<8x128xf32>
    %130 = vector.extract_strided_slice %118 {offsets = [0, 384], sizes = [8, 128], strides = [1, 1]} : vector<8x512xf32> to vector<8x128xf32>
    %131 = arith.mulf %127, %130 : vector<8x128xf32>
    %132 = arith.addf %129, %131 : vector<8x128xf32>
    %133 = math.tanh %132 : vector<8x128xf32>
    %cst_48 = arith.constant 1.000000e+00 : f32
    %134 = vector.broadcast %cst_48 : f32 to vector<8x128xf32>
    %135 = arith.subf %134, %128 : vector<8x128xf32>
    %136 = arith.mulf %135, %133 : vector<8x128xf32>
    %137 = arith.mulf %128, %76 : vector<8x128xf32>
    %138 = arith.addf %136, %137 : vector<8x128xf32>
    %139 = arith.mulf %79, %138 : vector<8x128xf32>
    %140 = arith.mulf %81, %76 : vector<8x128xf32>
    %141 = arith.addf %139, %140 : vector<8x128xf32>
    %142 = arith.mulf %79, %141 : vector<8x128xf32>
    %c8_49 = arith.constant 8 : index
    %c0_50 = arith.constant 0 : index
    %143 = vector.load %arg7[%c8_49, %c0_50] : memref<64x128xf32, #tpu.memory_space<vmem>>, vector<8x128xf32>
    tpu.vector_store %arg7[%c8_49, %c0_50], %142 {strides = array<i32>} : memref<64x128xf32, #tpu.memory_space<vmem>>, vector<8x128xf32>,
    %c16 = arith.constant 16 : index
    %c0_51 = arith.constant 0 : index
    %144 = vector.load %arg1[%c16, %c0_51] : memref<64x128xf32, #tpu.memory_space<vmem>>, vector<8x128xf32>
    %cst_52 = arith.constant 1.000000e+00 : f32
    %145 = vector.broadcast %cst_52 : f32 to vector<8x128xf32>
    %146 = arith.subf %145, %144 : vector<8x128xf32>
    %c16_53 = arith.constant 16 : index
    %c0_54 = arith.constant 0 : index
    %147 = vector.load %arg6[%c16_53, %c0_54] : memref<64x384xf32, #tpu.memory_space<vmem>>, vector<8x384xf32>
    %148 = vector.extract_strided_slice %111 {offsets = [0, 0], sizes = [8, 32], strides = [1, 1]} : vector<8x128xf32> to vector<8x32xf32>
    %cst_55 = arith.constant dense<0.000000e+00> : vector<8x384xf32>
    %149 = tpu.matmul %148, %7, %cst_55 {dimension_numbers = #tpu.dot_dimension_numbers<[1], [0], [0], [1], [0, 0, 1, 1], [], []>} : vector<8x32xf32>, vector<32x384xf32>, vector<8x384xf32> -> vector<8x384xf32>
    %150 = vector.broadcast %10 : vector<1x384xf32> to vector<8x384xf32>
    %151 = arith.addf %149, %150 : vector<8x384xf32>
    %152 = vector.extract_strided_slice %147 {offsets = [0, 0], sizes = [8, 256], strides = [1, 1]} : vector<8x384xf32> to vector<8x256xf32>
    %153 = vector.extract_strided_slice %151 {offsets = [0, 0], sizes = [8, 256], strides = [1, 1]} : vector<8x384xf32> to vector<8x256xf32>
    %154 = arith.addf %152, %153 : vector<8x256xf32>
    %cst_56 = arith.constant 5.000000e-01 : f32
    %155 = vector.broadcast %cst_56 : f32 to vector<8x256xf32>
    %156 = arith.mulf %155, %154 : vector<8x256xf32>
    %157 = math.tanh %156 : vector<8x256xf32>
    %cst_57 = arith.constant 5.000000e-01 : f32
    %158 = vector.broadcast %cst_57 : f32 to vector<8x256xf32>
    %159 = arith.mulf %158, %157 : vector<8x256xf32>
    %cst_58 = arith.constant 5.000000e-01 : f32
    %160 = vector.broadcast %cst_58 : f32 to vector<8x256xf32>
    %161 = arith.addf %159, %160 : vector<8x256xf32>
    %162 = vector.extract_strided_slice %161 {offsets = [0, 0], sizes = [8, 128], strides = [1, 1]} : vector<8x256xf32> to vector<8x128xf32>
    %163 = vector.extract_strided_slice %161 {offsets = [0, 128], sizes = [8, 128], strides = [1, 1]} : vector<8x256xf32> to vector<8x128xf32>
    %164 = vector.extract_strided_slice %147 {offsets = [0, 256], sizes = [8, 128], strides = [1, 1]} : vector<8x384xf32> to vector<8x128xf32>
    %165 = vector.extract_strided_slice %151 {offsets = [0, 256], sizes = [8, 128], strides = [1, 1]} : vector<8x384xf32> to vector<8x128xf32>
    %166 = arith.mulf %162, %165 : vector<8x128xf32>
    %167 = arith.addf %164, %166 : vector<8x128xf32>
    %168 = math.tanh %167 : vector<8x128xf32>
    %cst_59 = arith.constant 1.000000e+00 : f32
    %169 = vector.broadcast %cst_59 : f32 to vector<8x128xf32>
    %170 = arith.subf %169, %163 : vector<8x128xf32>
    %171 = arith.mulf %170, %168 : vector<8x128xf32>
    %172 = arith.mulf %163, %111 : vector<8x128xf32>
    %173 = arith.addf %171, %172 : vector<8x128xf32>
    %174 = arith.mulf %144, %173 : vector<8x128xf32>
    %175 = arith.mulf %146, %111 : vector<8x128xf32>
    %176 = arith.addf %174, %175 : vector<8x128xf32>
    %177 = vector.extract_strided_slice %176 {offsets = [0, 0], sizes = [8, 32], strides = [1, 1]} : vector<8x128xf32> to vector<8x32xf32>
    %cst_60 = arith.constant dense<0.000000e+00> : vector<8x512xf32>
    %178 = tpu.matmul %177, %8, %cst_60 {dimension_numbers = #tpu.dot_dimension_numbers<[1], [0], [0], [1], [0, 0, 1, 1], [], []>} : vector<8x32xf32>, vector<32x512xf32>, vector<8x512xf32> -> vector<8x512xf32>
    %179 = vector.extract_strided_slice %141 {offsets = [0, 0], sizes = [8, 32], strides = [1, 1]} : vector<8x128xf32> to vector<8x32xf32>
    %cst_61 = arith.constant dense<0.000000e+00> : vector<8x512xf32>
    %180 = tpu.matmul %179, %9, %cst_61 {dimension_numbers = #tpu.dot_dimension_numbers<[1], [0], [0], [1], [0, 0, 1, 1], [], []>} : vector<8x32xf32>, vector<32x512xf32>, vector<8x512xf32> -> vector<8x512xf32>
    %181 = arith.addf %178, %180 : vector<8x512xf32>
    %182 = vector.broadcast %11 : vector<1x512xf32> to vector<8x512xf32>
    %183 = arith.addf %181, %182 : vector<8x512xf32>
    %184 = vector.extract_strided_slice %183 {offsets = [0, 0], sizes = [8, 256], strides = [1, 1]} : vector<8x512xf32> to vector<8x256xf32>
    %cst_62 = arith.constant 5.000000e-01 : f32
    %185 = vector.broadcast %cst_62 : f32 to vector<8x256xf32>
    %186 = arith.mulf %185, %184 : vector<8x256xf32>
    %187 = math.tanh %186 : vector<8x256xf32>
    %cst_63 = arith.constant 5.000000e-01 : f32
    %188 = vector.broadcast %cst_63 : f32 to vector<8x256xf32>
    %189 = arith.mulf %188, %187 : vector<8x256xf32>
    %cst_64 = arith.constant 5.000000e-01 : f32
    %190 = vector.broadcast %cst_64 : f32 to vector<8x256xf32>
    %191 = arith.addf %189, %190 : vector<8x256xf32>
    %192 = vector.extract_strided_slice %191 {offsets = [0, 0], sizes = [8, 128], strides = [1, 1]} : vector<8x256xf32> to vector<8x128xf32>
    %193 = vector.extract_strided_slice %191 {offsets = [0, 128], sizes = [8, 128], strides = [1, 1]} : vector<8x256xf32> to vector<8x128xf32>
    %194 = vector.extract_strided_slice %183 {offsets = [0, 256], sizes = [8, 128], strides = [1, 1]} : vector<8x512xf32> to vector<8x128xf32>
    %195 = vector.extract_strided_slice %183 {offsets = [0, 384], sizes = [8, 128], strides = [1, 1]} : vector<8x512xf32> to vector<8x128xf32>
    %196 = arith.mulf %192, %195 : vector<8x128xf32>
    %197 = arith.addf %194, %196 : vector<8x128xf32>
    %198 = math.tanh %197 : vector<8x128xf32>
    %cst_65 = arith.constant 1.000000e+00 : f32
    %199 = vector.broadcast %cst_65 : f32 to vector<8x128xf32>
    %200 = arith.subf %199, %193 : vector<8x128xf32>
    %201 = arith.mulf %200, %198 : vector<8x128xf32>
    %202 = arith.mulf %193, %141 : vector<8x128xf32>
    %203 = arith.addf %201, %202 : vector<8x128xf32>
    %204 = arith.mulf %144, %203 : vector<8x128xf32>
    %205 = arith.mulf %146, %141 : vector<8x128xf32>
    %206 = arith.addf %204, %205 : vector<8x128xf32>
    %207 = arith.mulf %144, %206 : vector<8x128xf32>
    %c16_66 = arith.constant 16 : index
    %c0_67 = arith.constant 0 : index
    %208 = vector.load %arg7[%c16_66, %c0_67] : memref<64x128xf32, #tpu.memory_space<vmem>>, vector<8x128xf32>
    tpu.vector_store %arg7[%c16_66, %c0_67], %207 {strides = array<i32>} : memref<64x128xf32, #tpu.memory_space<vmem>>, vector<8x128xf32>,
    %c24 = arith.constant 24 : index
    %c0_68 = arith.constant 0 : index
    %209 = vector.load %arg1[%c24, %c0_68] : memref<64x128xf32, #tpu.memory_space<vmem>>, vector<8x128xf32>
    %cst_69 = arith.constant 1.000000e+00 : f32
    %210 = vector.broadcast %cst_69 : f32 to vector<8x128xf32>
    %211 = arith.subf %210, %209 : vector<8x128xf32>
    %c24_70 = arith.constant 24 : index
    %c0_71 = arith.constant 0 : index
    %212 = vector.load %arg6[%c24_70, %c0_71] : memref<64x384xf32, #tpu.memory_space<vmem>>, vector<8x384xf32>
    %213 = vector.extract_strided_slice %176 {offsets = [0, 0], sizes = [8, 32], strides = [1, 1]} : vector<8x128xf32> to vector<8x32xf32>
    %cst_72 = arith.constant dense<0.000000e+00> : vector<8x384xf32>
    %214 = tpu.matmul %213, %7, %cst_72 {dimension_numbers = #tpu.dot_dimension_numbers<[1], [0], [0], [1], [0, 0, 1, 1], [], []>} : vector<8x32xf32>, vector<32x384xf32>, vector<8x384xf32> -> vector<8x384xf32>
    %215 = vector.broadcast %10 : vector<1x384xf32> to vector<8x384xf32>
    %216 = arith.addf %214, %215 : vector<8x384xf32>
    %217 = vector.extract_strided_slice %212 {offsets = [0, 0], sizes = [8, 256], strides = [1, 1]} : vector<8x384xf32> to vector<8x256xf32>
    %218 = vector.extract_strided_slice %216 {offsets = [0, 0], sizes = [8, 256], strides = [1, 1]} : vector<8x384xf32> to vector<8x256xf32>
    %219 = arith.addf %217, %218 : vector<8x256xf32>
    %cst_73 = arith.constant 5.000000e-01 : f32
    %220 = vector.broadcast %cst_73 : f32 to vector<8x256xf32>
    %221 = arith.mulf %220, %219 : vector<8x256xf32>
    %222 = math.tanh %221 : vector<8x256xf32>
    %cst_74 = arith.constant 5.000000e-01 : f32
    %223 = vector.broadcast %cst_74 : f32 to vector<8x256xf32>
    %224 = arith.mulf %223, %222 : vector<8x256xf32>
    %cst_75 = arith.constant 5.000000e-01 : f32
    %225 = vector.broadcast %cst_75 : f32 to vector<8x256xf32>
    %226 = arith.addf %224, %225 : vector<8x256xf32>
    %227 = vector.extract_strided_slice %226 {offsets = [0, 0], sizes = [8, 128], strides = [1, 1]} : vector<8x256xf32> to vector<8x128xf32>
    %228 = vector.extract_strided_slice %226 {offsets = [0, 128], sizes = [8, 128], strides = [1, 1]} : vector<8x256xf32> to vector<8x128xf32>
    %229 = vector.extract_strided_slice %212 {offsets = [0, 256], sizes = [8, 128], strides = [1, 1]} : vector<8x384xf32> to vector<8x128xf32>
    %230 = vector.extract_strided_slice %216 {offsets = [0, 256], sizes = [8, 128], strides = [1, 1]} : vector<8x384xf32> to vector<8x128xf32>
    %231 = arith.mulf %227, %230 : vector<8x128xf32>
    %232 = arith.addf %229, %231 : vector<8x128xf32>
    %233 = math.tanh %232 : vector<8x128xf32>
    %cst_76 = arith.constant 1.000000e+00 : f32
    %234 = vector.broadcast %cst_76 : f32 to vector<8x128xf32>
    %235 = arith.subf %234, %228 : vector<8x128xf32>
    %236 = arith.mulf %235, %233 : vector<8x128xf32>
    %237 = arith.mulf %228, %176 : vector<8x128xf32>
    %238 = arith.addf %236, %237 : vector<8x128xf32>
    %239 = arith.mulf %209, %238 : vector<8x128xf32>
    %240 = arith.mulf %211, %176 : vector<8x128xf32>
    %241 = arith.addf %239, %240 : vector<8x128xf32>
    %242 = vector.extract_strided_slice %241 {offsets = [0, 0], sizes = [8, 32], strides = [1, 1]} : vector<8x128xf32> to vector<8x32xf32>
    %cst_77 = arith.constant dense<0.000000e+00> : vector<8x512xf32>
    %243 = tpu.matmul %242, %8, %cst_77 {dimension_numbers = #tpu.dot_dimension_numbers<[1], [0], [0], [1], [0, 0, 1, 1], [], []>} : vector<8x32xf32>, vector<32x512xf32>, vector<8x512xf32> -> vector<8x512xf32>
    %244 = vector.extract_strided_slice %206 {offsets = [0, 0], sizes = [8, 32], strides = [1, 1]} : vector<8x128xf32> to vector<8x32xf32>
    %cst_78 = arith.constant dense<0.000000e+00> : vector<8x512xf32>
    %245 = tpu.matmul %244, %9, %cst_78 {dimension_numbers = #tpu.dot_dimension_numbers<[1], [0], [0], [1], [0, 0, 1, 1], [], []>} : vector<8x32xf32>, vector<32x512xf32>, vector<8x512xf32> -> vector<8x512xf32>
    %246 = arith.addf %243, %245 : vector<8x512xf32>
    %247 = vector.broadcast %11 : vector<1x512xf32> to vector<8x512xf32>
    %248 = arith.addf %246, %247 : vector<8x512xf32>
    %249 = vector.extract_strided_slice %248 {offsets = [0, 0], sizes = [8, 256], strides = [1, 1]} : vector<8x512xf32> to vector<8x256xf32>
    %cst_79 = arith.constant 5.000000e-01 : f32
    %250 = vector.broadcast %cst_79 : f32 to vector<8x256xf32>
    %251 = arith.mulf %250, %249 : vector<8x256xf32>
    %252 = math.tanh %251 : vector<8x256xf32>
    %cst_80 = arith.constant 5.000000e-01 : f32
    %253 = vector.broadcast %cst_80 : f32 to vector<8x256xf32>
    %254 = arith.mulf %253, %252 : vector<8x256xf32>
    %cst_81 = arith.constant 5.000000e-01 : f32
    %255 = vector.broadcast %cst_81 : f32 to vector<8x256xf32>
    %256 = arith.addf %254, %255 : vector<8x256xf32>
    %257 = vector.extract_strided_slice %256 {offsets = [0, 0], sizes = [8, 128], strides = [1, 1]} : vector<8x256xf32> to vector<8x128xf32>
    %258 = vector.extract_strided_slice %256 {offsets = [0, 128], sizes = [8, 128], strides = [1, 1]} : vector<8x256xf32> to vector<8x128xf32>
    %259 = vector.extract_strided_slice %248 {offsets = [0, 256], sizes = [8, 128], strides = [1, 1]} : vector<8x512xf32> to vector<8x128xf32>
    %260 = vector.extract_strided_slice %248 {offsets = [0, 384], sizes = [8, 128], strides = [1, 1]} : vector<8x512xf32> to vector<8x128xf32>
    %261 = arith.mulf %257, %260 : vector<8x128xf32>
    %262 = arith.addf %259, %261 : vector<8x128xf32>
    %263 = math.tanh %262 : vector<8x128xf32>
    %cst_82 = arith.constant 1.000000e+00 : f32
    %264 = vector.broadcast %cst_82 : f32 to vector<8x128xf32>
    %265 = arith.subf %264, %258 : vector<8x128xf32>
    %266 = arith.mulf %265, %263 : vector<8x128xf32>
    %267 = arith.mulf %258, %206 : vector<8x128xf32>
    %268 = arith.addf %266, %267 : vector<8x128xf32>
    %269 = arith.mulf %209, %268 : vector<8x128xf32>
    %270 = arith.mulf %211, %206 : vector<8x128xf32>
    %271 = arith.addf %269, %270 : vector<8x128xf32>
    %272 = arith.mulf %209, %271 : vector<8x128xf32>
    %c24_83 = arith.constant 24 : index
    %c0_84 = arith.constant 0 : index
    %273 = vector.load %arg7[%c24_83, %c0_84] : memref<64x128xf32, #tpu.memory_space<vmem>>, vector<8x128xf32>
    tpu.vector_store %arg7[%c24_83, %c0_84], %272 {strides = array<i32>} : memref<64x128xf32, #tpu.memory_space<vmem>>, vector<8x128xf32>,
    %c32 = arith.constant 32 : index
    %c0_85 = arith.constant 0 : index
    %274 = vector.load %arg1[%c32, %c0_85] : memref<64x128xf32, #tpu.memory_space<vmem>>, vector<8x128xf32>
    %cst_86 = arith.constant 1.000000e+00 : f32
    %275 = vector.broadcast %cst_86 : f32 to vector<8x128xf32>
    %276 = arith.subf %275, %274 : vector<8x128xf32>
    %c32_87 = arith.constant 32 : index
    %c0_88 = arith.constant 0 : index
    %277 = vector.load %arg6[%c32_87, %c0_88] : memref<64x384xf32, #tpu.memory_space<vmem>>, vector<8x384xf32>
    %278 = vector.extract_strided_slice %241 {offsets = [0, 0], sizes = [8, 32], strides = [1, 1]} : vector<8x128xf32> to vector<8x32xf32>
    %cst_89 = arith.constant dense<0.000000e+00> : vector<8x384xf32>
    %279 = tpu.matmul %278, %7, %cst_89 {dimension_numbers = #tpu.dot_dimension_numbers<[1], [0], [0], [1], [0, 0, 1, 1], [], []>} : vector<8x32xf32>, vector<32x384xf32>, vector<8x384xf32> -> vector<8x384xf32>
    %280 = vector.broadcast %10 : vector<1x384xf32> to vector<8x384xf32>
    %281 = arith.addf %279, %280 : vector<8x384xf32>
    %282 = vector.extract_strided_slice %277 {offsets = [0, 0], sizes = [8, 256], strides = [1, 1]} : vector<8x384xf32> to vector<8x256xf32>
    %283 = vector.extract_strided_slice %281 {offsets = [0, 0], sizes = [8, 256], strides = [1, 1]} : vector<8x384xf32> to vector<8x256xf32>
    %284 = arith.addf %282, %283 : vector<8x256xf32>
    %cst_90 = arith.constant 5.000000e-01 : f32
    %285 = vector.broadcast %cst_90 : f32 to vector<8x256xf32>
    %286 = arith.mulf %285, %284 : vector<8x256xf32>
    %287 = math.tanh %286 : vector<8x256xf32>
    %cst_91 = arith.constant 5.000000e-01 : f32
    %288 = vector.broadcast %cst_91 : f32 to vector<8x256xf32>
    %289 = arith.mulf %288, %287 : vector<8x256xf32>
    %cst_92 = arith.constant 5.000000e-01 : f32
    %290 = vector.broadcast %cst_92 : f32 to vector<8x256xf32>
    %291 = arith.addf %289, %290 : vector<8x256xf32>
    %292 = vector.extract_strided_slice %291 {offsets = [0, 0], sizes = [8, 128], strides = [1, 1]} : vector<8x256xf32> to vector<8x128xf32>
    %293 = vector.extract_strided_slice %291 {offsets = [0, 128], sizes = [8, 128], strides = [1, 1]} : vector<8x256xf32> to vector<8x128xf32>
    %294 = vector.extract_strided_slice %277 {offsets = [0, 256], sizes = [8, 128], strides = [1, 1]} : vector<8x384xf32> to vector<8x128xf32>
    %295 = vector.extract_strided_slice %281 {offsets = [0, 256], sizes = [8, 128], strides = [1, 1]} : vector<8x384xf32> to vector<8x128xf32>
    %296 = arith.mulf %292, %295 : vector<8x128xf32>
    %297 = arith.addf %294, %296 : vector<8x128xf32>
    %298 = math.tanh %297 : vector<8x128xf32>
    %cst_93 = arith.constant 1.000000e+00 : f32
    %299 = vector.broadcast %cst_93 : f32 to vector<8x128xf32>
    %300 = arith.subf %299, %293 : vector<8x128xf32>
    %301 = arith.mulf %300, %298 : vector<8x128xf32>
    %302 = arith.mulf %293, %241 : vector<8x128xf32>
    %303 = arith.addf %301, %302 : vector<8x128xf32>
    %304 = arith.mulf %274, %303 : vector<8x128xf32>
    %305 = arith.mulf %276, %241 : vector<8x128xf32>
    %306 = arith.addf %304, %305 : vector<8x128xf32>
    %307 = vector.extract_strided_slice %306 {offsets = [0, 0], sizes = [8, 32], strides = [1, 1]} : vector<8x128xf32> to vector<8x32xf32>
    %cst_94 = arith.constant dense<0.000000e+00> : vector<8x512xf32>
    %308 = tpu.matmul %307, %8, %cst_94 {dimension_numbers = #tpu.dot_dimension_numbers<[1], [0], [0], [1], [0, 0, 1, 1], [], []>} : vector<8x32xf32>, vector<32x512xf32>, vector<8x512xf32> -> vector<8x512xf32>
    %309 = vector.extract_strided_slice %271 {offsets = [0, 0], sizes = [8, 32], strides = [1, 1]} : vector<8x128xf32> to vector<8x32xf32>
    %cst_95 = arith.constant dense<0.000000e+00> : vector<8x512xf32>
    %310 = tpu.matmul %309, %9, %cst_95 {dimension_numbers = #tpu.dot_dimension_numbers<[1], [0], [0], [1], [0, 0, 1, 1], [], []>} : vector<8x32xf32>, vector<32x512xf32>, vector<8x512xf32> -> vector<8x512xf32>
    %311 = arith.addf %308, %310 : vector<8x512xf32>
    %312 = vector.broadcast %11 : vector<1x512xf32> to vector<8x512xf32>
    %313 = arith.addf %311, %312 : vector<8x512xf32>
    %314 = vector.extract_strided_slice %313 {offsets = [0, 0], sizes = [8, 256], strides = [1, 1]} : vector<8x512xf32> to vector<8x256xf32>
    %cst_96 = arith.constant 5.000000e-01 : f32
    %315 = vector.broadcast %cst_96 : f32 to vector<8x256xf32>
    %316 = arith.mulf %315, %314 : vector<8x256xf32>
    %317 = math.tanh %316 : vector<8x256xf32>
    %cst_97 = arith.constant 5.000000e-01 : f32
    %318 = vector.broadcast %cst_97 : f32 to vector<8x256xf32>
    %319 = arith.mulf %318, %317 : vector<8x256xf32>
    %cst_98 = arith.constant 5.000000e-01 : f32
    %320 = vector.broadcast %cst_98 : f32 to vector<8x256xf32>
    %321 = arith.addf %319, %320 : vector<8x256xf32>
    %322 = vector.extract_strided_slice %321 {offsets = [0, 0], sizes = [8, 128], strides = [1, 1]} : vector<8x256xf32> to vector<8x128xf32>
    %323 = vector.extract_strided_slice %321 {offsets = [0, 128], sizes = [8, 128], strides = [1, 1]} : vector<8x256xf32> to vector<8x128xf32>
    %324 = vector.extract_strided_slice %313 {offsets = [0, 256], sizes = [8, 128], strides = [1, 1]} : vector<8x512xf32> to vector<8x128xf32>
    %325 = vector.extract_strided_slice %313 {offsets = [0, 384], sizes = [8, 128], strides = [1, 1]} : vector<8x512xf32> to vector<8x128xf32>
    %326 = arith.mulf %322, %325 : vector<8x128xf32>
    %327 = arith.addf %324, %326 : vector<8x128xf32>
    %328 = math.tanh %327 : vector<8x128xf32>
    %cst_99 = arith.constant 1.000000e+00 : f32
    %329 = vector.broadcast %cst_99 : f32 to vector<8x128xf32>
    %330 = arith.subf %329, %323 : vector<8x128xf32>
    %331 = arith.mulf %330, %328 : vector<8x128xf32>
    %332 = arith.mulf %323, %271 : vector<8x128xf32>
    %333 = arith.addf %331, %332 : vector<8x128xf32>
    %334 = arith.mulf %274, %333 : vector<8x128xf32>
    %335 = arith.mulf %276, %271 : vector<8x128xf32>
    %336 = arith.addf %334, %335 : vector<8x128xf32>
    %337 = arith.mulf %274, %336 : vector<8x128xf32>
    %c32_100 = arith.constant 32 : index
    %c0_101 = arith.constant 0 : index
    %338 = vector.load %arg7[%c32_100, %c0_101] : memref<64x128xf32, #tpu.memory_space<vmem>>, vector<8x128xf32>
    tpu.vector_store %arg7[%c32_100, %c0_101], %337 {strides = array<i32>} : memref<64x128xf32, #tpu.memory_space<vmem>>, vector<8x128xf32>,
    %c40 = arith.constant 40 : index
    %c0_102 = arith.constant 0 : index
    %339 = vector.load %arg1[%c40, %c0_102] : memref<64x128xf32, #tpu.memory_space<vmem>>, vector<8x128xf32>
    %cst_103 = arith.constant 1.000000e+00 : f32
    %340 = vector.broadcast %cst_103 : f32 to vector<8x128xf32>
    %341 = arith.subf %340, %339 : vector<8x128xf32>
    %c40_104 = arith.constant 40 : index
    %c0_105 = arith.constant 0 : index
    %342 = vector.load %arg6[%c40_104, %c0_105] : memref<64x384xf32, #tpu.memory_space<vmem>>, vector<8x384xf32>
    %343 = vector.extract_strided_slice %306 {offsets = [0, 0], sizes = [8, 32], strides = [1, 1]} : vector<8x128xf32> to vector<8x32xf32>
    %cst_106 = arith.constant dense<0.000000e+00> : vector<8x384xf32>
    %344 = tpu.matmul %343, %7, %cst_106 {dimension_numbers = #tpu.dot_dimension_numbers<[1], [0], [0], [1], [0, 0, 1, 1], [], []>} : vector<8x32xf32>, vector<32x384xf32>, vector<8x384xf32> -> vector<8x384xf32>
    %345 = vector.broadcast %10 : vector<1x384xf32> to vector<8x384xf32>
    %346 = arith.addf %344, %345 : vector<8x384xf32>
    %347 = vector.extract_strided_slice %342 {offsets = [0, 0], sizes = [8, 256], strides = [1, 1]} : vector<8x384xf32> to vector<8x256xf32>
    %348 = vector.extract_strided_slice %346 {offsets = [0, 0], sizes = [8, 256], strides = [1, 1]} : vector<8x384xf32> to vector<8x256xf32>
    %349 = arith.addf %347, %348 : vector<8x256xf32>
    %cst_107 = arith.constant 5.000000e-01 : f32
    %350 = vector.broadcast %cst_107 : f32 to vector<8x256xf32>
    %351 = arith.mulf %350, %349 : vector<8x256xf32>
    %352 = math.tanh %351 : vector<8x256xf32>
    %cst_108 = arith.constant 5.000000e-01 : f32
    %353 = vector.broadcast %cst_108 : f32 to vector<8x256xf32>
    %354 = arith.mulf %353, %352 : vector<8x256xf32>
    %cst_109 = arith.constant 5.000000e-01 : f32
    %355 = vector.broadcast %cst_109 : f32 to vector<8x256xf32>
    %356 = arith.addf %354, %355 : vector<8x256xf32>
    %357 = vector.extract_strided_slice %356 {offsets = [0, 0], sizes = [8, 128], strides = [1, 1]} : vector<8x256xf32> to vector<8x128xf32>
    %358 = vector.extract_strided_slice %356 {offsets = [0, 128], sizes = [8, 128], strides = [1, 1]} : vector<8x256xf32> to vector<8x128xf32>
    %359 = vector.extract_strided_slice %342 {offsets = [0, 256], sizes = [8, 128], strides = [1, 1]} : vector<8x384xf32> to vector<8x128xf32>
    %360 = vector.extract_strided_slice %346 {offsets = [0, 256], sizes = [8, 128], strides = [1, 1]} : vector<8x384xf32> to vector<8x128xf32>
    %361 = arith.mulf %357, %360 : vector<8x128xf32>
    %362 = arith.addf %359, %361 : vector<8x128xf32>
    %363 = math.tanh %362 : vector<8x128xf32>
    %cst_110 = arith.constant 1.000000e+00 : f32
    %364 = vector.broadcast %cst_110 : f32 to vector<8x128xf32>
    %365 = arith.subf %364, %358 : vector<8x128xf32>
    %366 = arith.mulf %365, %363 : vector<8x128xf32>
    %367 = arith.mulf %358, %306 : vector<8x128xf32>
    %368 = arith.addf %366, %367 : vector<8x128xf32>
    %369 = arith.mulf %339, %368 : vector<8x128xf32>
    %370 = arith.mulf %341, %306 : vector<8x128xf32>
    %371 = arith.addf %369, %370 : vector<8x128xf32>
    %372 = vector.extract_strided_slice %371 {offsets = [0, 0], sizes = [8, 32], strides = [1, 1]} : vector<8x128xf32> to vector<8x32xf32>
    %cst_111 = arith.constant dense<0.000000e+00> : vector<8x512xf32>
    %373 = tpu.matmul %372, %8, %cst_111 {dimension_numbers = #tpu.dot_dimension_numbers<[1], [0], [0], [1], [0, 0, 1, 1], [], []>} : vector<8x32xf32>, vector<32x512xf32>, vector<8x512xf32> -> vector<8x512xf32>
    %374 = vector.extract_strided_slice %336 {offsets = [0, 0], sizes = [8, 32], strides = [1, 1]} : vector<8x128xf32> to vector<8x32xf32>
    %cst_112 = arith.constant dense<0.000000e+00> : vector<8x512xf32>
    %375 = tpu.matmul %374, %9, %cst_112 {dimension_numbers = #tpu.dot_dimension_numbers<[1], [0], [0], [1], [0, 0, 1, 1], [], []>} : vector<8x32xf32>, vector<32x512xf32>, vector<8x512xf32> -> vector<8x512xf32>
    %376 = arith.addf %373, %375 : vector<8x512xf32>
    %377 = vector.broadcast %11 : vector<1x512xf32> to vector<8x512xf32>
    %378 = arith.addf %376, %377 : vector<8x512xf32>
    %379 = vector.extract_strided_slice %378 {offsets = [0, 0], sizes = [8, 256], strides = [1, 1]} : vector<8x512xf32> to vector<8x256xf32>
    %cst_113 = arith.constant 5.000000e-01 : f32
    %380 = vector.broadcast %cst_113 : f32 to vector<8x256xf32>
    %381 = arith.mulf %380, %379 : vector<8x256xf32>
    %382 = math.tanh %381 : vector<8x256xf32>
    %cst_114 = arith.constant 5.000000e-01 : f32
    %383 = vector.broadcast %cst_114 : f32 to vector<8x256xf32>
    %384 = arith.mulf %383, %382 : vector<8x256xf32>
    %cst_115 = arith.constant 5.000000e-01 : f32
    %385 = vector.broadcast %cst_115 : f32 to vector<8x256xf32>
    %386 = arith.addf %384, %385 : vector<8x256xf32>
    %387 = vector.extract_strided_slice %386 {offsets = [0, 0], sizes = [8, 128], strides = [1, 1]} : vector<8x256xf32> to vector<8x128xf32>
    %388 = vector.extract_strided_slice %386 {offsets = [0, 128], sizes = [8, 128], strides = [1, 1]} : vector<8x256xf32> to vector<8x128xf32>
    %389 = vector.extract_strided_slice %378 {offsets = [0, 256], sizes = [8, 128], strides = [1, 1]} : vector<8x512xf32> to vector<8x128xf32>
    %390 = vector.extract_strided_slice %378 {offsets = [0, 384], sizes = [8, 128], strides = [1, 1]} : vector<8x512xf32> to vector<8x128xf32>
    %391 = arith.mulf %387, %390 : vector<8x128xf32>
    %392 = arith.addf %389, %391 : vector<8x128xf32>
    %393 = math.tanh %392 : vector<8x128xf32>
    %cst_116 = arith.constant 1.000000e+00 : f32
    %394 = vector.broadcast %cst_116 : f32 to vector<8x128xf32>
    %395 = arith.subf %394, %388 : vector<8x128xf32>
    %396 = arith.mulf %395, %393 : vector<8x128xf32>
    %397 = arith.mulf %388, %336 : vector<8x128xf32>
    %398 = arith.addf %396, %397 : vector<8x128xf32>
    %399 = arith.mulf %339, %398 : vector<8x128xf32>
    %400 = arith.mulf %341, %336 : vector<8x128xf32>
    %401 = arith.addf %399, %400 : vector<8x128xf32>
    %402 = arith.mulf %339, %401 : vector<8x128xf32>
    %c40_117 = arith.constant 40 : index
    %c0_118 = arith.constant 0 : index
    %403 = vector.load %arg7[%c40_117, %c0_118] : memref<64x128xf32, #tpu.memory_space<vmem>>, vector<8x128xf32>
    tpu.vector_store %arg7[%c40_117, %c0_118], %402 {strides = array<i32>} : memref<64x128xf32, #tpu.memory_space<vmem>>, vector<8x128xf32>,
    %c48 = arith.constant 48 : index
    %c0_119 = arith.constant 0 : index
    %404 = vector.load %arg1[%c48, %c0_119] : memref<64x128xf32, #tpu.memory_space<vmem>>, vector<8x128xf32>
    %cst_120 = arith.constant 1.000000e+00 : f32
    %405 = vector.broadcast %cst_120 : f32 to vector<8x128xf32>
    %406 = arith.subf %405, %404 : vector<8x128xf32>
    %c48_121 = arith.constant 48 : index
    %c0_122 = arith.constant 0 : index
    %407 = vector.load %arg6[%c48_121, %c0_122] : memref<64x384xf32, #tpu.memory_space<vmem>>, vector<8x384xf32>
    %408 = vector.extract_strided_slice %371 {offsets = [0, 0], sizes = [8, 32], strides = [1, 1]} : vector<8x128xf32> to vector<8x32xf32>
    %cst_123 = arith.constant dense<0.000000e+00> : vector<8x384xf32>
    %409 = tpu.matmul %408, %7, %cst_123 {dimension_numbers = #tpu.dot_dimension_numbers<[1], [0], [0], [1], [0, 0, 1, 1], [], []>} : vector<8x32xf32>, vector<32x384xf32>, vector<8x384xf32> -> vector<8x384xf32>
    %410 = vector.broadcast %10 : vector<1x384xf32> to vector<8x384xf32>
    %411 = arith.addf %409, %410 : vector<8x384xf32>
    %412 = vector.extract_strided_slice %407 {offsets = [0, 0], sizes = [8, 256], strides = [1, 1]} : vector<8x384xf32> to vector<8x256xf32>
    %413 = vector.extract_strided_slice %411 {offsets = [0, 0], sizes = [8, 256], strides = [1, 1]} : vector<8x384xf32> to vector<8x256xf32>
    %414 = arith.addf %412, %413 : vector<8x256xf32>
    %cst_124 = arith.constant 5.000000e-01 : f32
    %415 = vector.broadcast %cst_124 : f32 to vector<8x256xf32>
    %416 = arith.mulf %415, %414 : vector<8x256xf32>
    %417 = math.tanh %416 : vector<8x256xf32>
    %cst_125 = arith.constant 5.000000e-01 : f32
    %418 = vector.broadcast %cst_125 : f32 to vector<8x256xf32>
    %419 = arith.mulf %418, %417 : vector<8x256xf32>
    %cst_126 = arith.constant 5.000000e-01 : f32
    %420 = vector.broadcast %cst_126 : f32 to vector<8x256xf32>
    %421 = arith.addf %419, %420 : vector<8x256xf32>
    %422 = vector.extract_strided_slice %421 {offsets = [0, 0], sizes = [8, 128], strides = [1, 1]} : vector<8x256xf32> to vector<8x128xf32>
    %423 = vector.extract_strided_slice %421 {offsets = [0, 128], sizes = [8, 128], strides = [1, 1]} : vector<8x256xf32> to vector<8x128xf32>
    %424 = vector.extract_strided_slice %407 {offsets = [0, 256], sizes = [8, 128], strides = [1, 1]} : vector<8x384xf32> to vector<8x128xf32>
    %425 = vector.extract_strided_slice %411 {offsets = [0, 256], sizes = [8, 128], strides = [1, 1]} : vector<8x384xf32> to vector<8x128xf32>
    %426 = arith.mulf %422, %425 : vector<8x128xf32>
    %427 = arith.addf %424, %426 : vector<8x128xf32>
    %428 = math.tanh %427 : vector<8x128xf32>
    %cst_127 = arith.constant 1.000000e+00 : f32
    %429 = vector.broadcast %cst_127 : f32 to vector<8x128xf32>
    %430 = arith.subf %429, %423 : vector<8x128xf32>
    %431 = arith.mulf %430, %428 : vector<8x128xf32>
    %432 = arith.mulf %423, %371 : vector<8x128xf32>
    %433 = arith.addf %431, %432 : vector<8x128xf32>
    %434 = arith.mulf %404, %433 : vector<8x128xf32>
    %435 = arith.mulf %406, %371 : vector<8x128xf32>
    %436 = arith.addf %434, %435 : vector<8x128xf32>
    %437 = vector.extract_strided_slice %436 {offsets = [0, 0], sizes = [8, 32], strides = [1, 1]} : vector<8x128xf32> to vector<8x32xf32>
    %cst_128 = arith.constant dense<0.000000e+00> : vector<8x512xf32>
    %438 = tpu.matmul %437, %8, %cst_128 {dimension_numbers = #tpu.dot_dimension_numbers<[1], [0], [0], [1], [0, 0, 1, 1], [], []>} : vector<8x32xf32>, vector<32x512xf32>, vector<8x512xf32> -> vector<8x512xf32>
    %439 = vector.extract_strided_slice %401 {offsets = [0, 0], sizes = [8, 32], strides = [1, 1]} : vector<8x128xf32> to vector<8x32xf32>
    %cst_129 = arith.constant dense<0.000000e+00> : vector<8x512xf32>
    %440 = tpu.matmul %439, %9, %cst_129 {dimension_numbers = #tpu.dot_dimension_numbers<[1], [0], [0], [1], [0, 0, 1, 1], [], []>} : vector<8x32xf32>, vector<32x512xf32>, vector<8x512xf32> -> vector<8x512xf32>
    %441 = arith.addf %438, %440 : vector<8x512xf32>
    %442 = vector.broadcast %11 : vector<1x512xf32> to vector<8x512xf32>
    %443 = arith.addf %441, %442 : vector<8x512xf32>
    %444 = vector.extract_strided_slice %443 {offsets = [0, 0], sizes = [8, 256], strides = [1, 1]} : vector<8x512xf32> to vector<8x256xf32>
    %cst_130 = arith.constant 5.000000e-01 : f32
    %445 = vector.broadcast %cst_130 : f32 to vector<8x256xf32>
    %446 = arith.mulf %445, %444 : vector<8x256xf32>
    %447 = math.tanh %446 : vector<8x256xf32>
    %cst_131 = arith.constant 5.000000e-01 : f32
    %448 = vector.broadcast %cst_131 : f32 to vector<8x256xf32>
    %449 = arith.mulf %448, %447 : vector<8x256xf32>
    %cst_132 = arith.constant 5.000000e-01 : f32
    %450 = vector.broadcast %cst_132 : f32 to vector<8x256xf32>
    %451 = arith.addf %449, %450 : vector<8x256xf32>
    %452 = vector.extract_strided_slice %451 {offsets = [0, 0], sizes = [8, 128], strides = [1, 1]} : vector<8x256xf32> to vector<8x128xf32>
    %453 = vector.extract_strided_slice %451 {offsets = [0, 128], sizes = [8, 128], strides = [1, 1]} : vector<8x256xf32> to vector<8x128xf32>
    %454 = vector.extract_strided_slice %443 {offsets = [0, 256], sizes = [8, 128], strides = [1, 1]} : vector<8x512xf32> to vector<8x128xf32>
    %455 = vector.extract_strided_slice %443 {offsets = [0, 384], sizes = [8, 128], strides = [1, 1]} : vector<8x512xf32> to vector<8x128xf32>
    %456 = arith.mulf %452, %455 : vector<8x128xf32>
    %457 = arith.addf %454, %456 : vector<8x128xf32>
    %458 = math.tanh %457 : vector<8x128xf32>
    %cst_133 = arith.constant 1.000000e+00 : f32
    %459 = vector.broadcast %cst_133 : f32 to vector<8x128xf32>
    %460 = arith.subf %459, %453 : vector<8x128xf32>
    %461 = arith.mulf %460, %458 : vector<8x128xf32>
    %462 = arith.mulf %453, %401 : vector<8x128xf32>
    %463 = arith.addf %461, %462 : vector<8x128xf32>
    %464 = arith.mulf %404, %463 : vector<8x128xf32>
    %465 = arith.mulf %406, %401 : vector<8x128xf32>
    %466 = arith.addf %464, %465 : vector<8x128xf32>
    %467 = arith.mulf %404, %466 : vector<8x128xf32>
    %c48_134 = arith.constant 48 : index
    %c0_135 = arith.constant 0 : index
    %468 = vector.load %arg7[%c48_134, %c0_135] : memref<64x128xf32, #tpu.memory_space<vmem>>, vector<8x128xf32>
    tpu.vector_store %arg7[%c48_134, %c0_135], %467 {strides = array<i32>} : memref<64x128xf32, #tpu.memory_space<vmem>>, vector<8x128xf32>,
    %c56 = arith.constant 56 : index
    %c0_136 = arith.constant 0 : index
    %469 = vector.load %arg1[%c56, %c0_136] : memref<64x128xf32, #tpu.memory_space<vmem>>, vector<8x128xf32>
    %cst_137 = arith.constant 1.000000e+00 : f32
    %470 = vector.broadcast %cst_137 : f32 to vector<8x128xf32>
    %471 = arith.subf %470, %469 : vector<8x128xf32>
    %c56_138 = arith.constant 56 : index
    %c0_139 = arith.constant 0 : index
    %472 = vector.load %arg6[%c56_138, %c0_139] : memref<64x384xf32, #tpu.memory_space<vmem>>, vector<8x384xf32>
    %473 = vector.extract_strided_slice %436 {offsets = [0, 0], sizes = [8, 32], strides = [1, 1]} : vector<8x128xf32> to vector<8x32xf32>
    %cst_140 = arith.constant dense<0.000000e+00> : vector<8x384xf32>
    %474 = tpu.matmul %473, %7, %cst_140 {dimension_numbers = #tpu.dot_dimension_numbers<[1], [0], [0], [1], [0, 0, 1, 1], [], []>} : vector<8x32xf32>, vector<32x384xf32>, vector<8x384xf32> -> vector<8x384xf32>
    %475 = vector.broadcast %10 : vector<1x384xf32> to vector<8x384xf32>
    %476 = arith.addf %474, %475 : vector<8x384xf32>
    %477 = vector.extract_strided_slice %472 {offsets = [0, 0], sizes = [8, 256], strides = [1, 1]} : vector<8x384xf32> to vector<8x256xf32>
    %478 = vector.extract_strided_slice %476 {offsets = [0, 0], sizes = [8, 256], strides = [1, 1]} : vector<8x384xf32> to vector<8x256xf32>
    %479 = arith.addf %477, %478 : vector<8x256xf32>
    %cst_141 = arith.constant 5.000000e-01 : f32
    %480 = vector.broadcast %cst_141 : f32 to vector<8x256xf32>
    %481 = arith.mulf %480, %479 : vector<8x256xf32>
    %482 = math.tanh %481 : vector<8x256xf32>
    %cst_142 = arith.constant 5.000000e-01 : f32
    %483 = vector.broadcast %cst_142 : f32 to vector<8x256xf32>
    %484 = arith.mulf %483, %482 : vector<8x256xf32>
    %cst_143 = arith.constant 5.000000e-01 : f32
    %485 = vector.broadcast %cst_143 : f32 to vector<8x256xf32>
    %486 = arith.addf %484, %485 : vector<8x256xf32>
    %487 = vector.extract_strided_slice %486 {offsets = [0, 0], sizes = [8, 128], strides = [1, 1]} : vector<8x256xf32> to vector<8x128xf32>
    %488 = vector.extract_strided_slice %486 {offsets = [0, 128], sizes = [8, 128], strides = [1, 1]} : vector<8x256xf32> to vector<8x128xf32>
    %489 = vector.extract_strided_slice %472 {offsets = [0, 256], sizes = [8, 128], strides = [1, 1]} : vector<8x384xf32> to vector<8x128xf32>
    %490 = vector.extract_strided_slice %476 {offsets = [0, 256], sizes = [8, 128], strides = [1, 1]} : vector<8x384xf32> to vector<8x128xf32>
    %491 = arith.mulf %487, %490 : vector<8x128xf32>
    %492 = arith.addf %489, %491 : vector<8x128xf32>
    %493 = math.tanh %492 : vector<8x128xf32>
    %cst_144 = arith.constant 1.000000e+00 : f32
    %494 = vector.broadcast %cst_144 : f32 to vector<8x128xf32>
    %495 = arith.subf %494, %488 : vector<8x128xf32>
    %496 = arith.mulf %495, %493 : vector<8x128xf32>
    %497 = arith.mulf %488, %436 : vector<8x128xf32>
    %498 = arith.addf %496, %497 : vector<8x128xf32>
    %499 = arith.mulf %469, %498 : vector<8x128xf32>
    %500 = arith.mulf %471, %436 : vector<8x128xf32>
    %501 = arith.addf %499, %500 : vector<8x128xf32>
    %502 = vector.extract_strided_slice %501 {offsets = [0, 0], sizes = [8, 32], strides = [1, 1]} : vector<8x128xf32> to vector<8x32xf32>
    %cst_145 = arith.constant dense<0.000000e+00> : vector<8x512xf32>
    %503 = tpu.matmul %502, %8, %cst_145 {dimension_numbers = #tpu.dot_dimension_numbers<[1], [0], [0], [1], [0, 0, 1, 1], [], []>} : vector<8x32xf32>, vector<32x512xf32>, vector<8x512xf32> -> vector<8x512xf32>
    %504 = vector.extract_strided_slice %466 {offsets = [0, 0], sizes = [8, 32], strides = [1, 1]} : vector<8x128xf32> to vector<8x32xf32>
    %cst_146 = arith.constant dense<0.000000e+00> : vector<8x512xf32>
    %505 = tpu.matmul %504, %9, %cst_146 {dimension_numbers = #tpu.dot_dimension_numbers<[1], [0], [0], [1], [0, 0, 1, 1], [], []>} : vector<8x32xf32>, vector<32x512xf32>, vector<8x512xf32> -> vector<8x512xf32>
    %506 = arith.addf %503, %505 : vector<8x512xf32>
    %507 = vector.broadcast %11 : vector<1x512xf32> to vector<8x512xf32>
    %508 = arith.addf %506, %507 : vector<8x512xf32>
    %509 = vector.extract_strided_slice %508 {offsets = [0, 0], sizes = [8, 256], strides = [1, 1]} : vector<8x512xf32> to vector<8x256xf32>
    %cst_147 = arith.constant 5.000000e-01 : f32
    %510 = vector.broadcast %cst_147 : f32 to vector<8x256xf32>
    %511 = arith.mulf %510, %509 : vector<8x256xf32>
    %512 = math.tanh %511 : vector<8x256xf32>
    %cst_148 = arith.constant 5.000000e-01 : f32
    %513 = vector.broadcast %cst_148 : f32 to vector<8x256xf32>
    %514 = arith.mulf %513, %512 : vector<8x256xf32>
    %cst_149 = arith.constant 5.000000e-01 : f32
    %515 = vector.broadcast %cst_149 : f32 to vector<8x256xf32>
    %516 = arith.addf %514, %515 : vector<8x256xf32>
    %517 = vector.extract_strided_slice %516 {offsets = [0, 0], sizes = [8, 128], strides = [1, 1]} : vector<8x256xf32> to vector<8x128xf32>
    %518 = vector.extract_strided_slice %516 {offsets = [0, 128], sizes = [8, 128], strides = [1, 1]} : vector<8x256xf32> to vector<8x128xf32>
    %519 = vector.extract_strided_slice %508 {offsets = [0, 256], sizes = [8, 128], strides = [1, 1]} : vector<8x512xf32> to vector<8x128xf32>
    %520 = vector.extract_strided_slice %508 {offsets = [0, 384], sizes = [8, 128], strides = [1, 1]} : vector<8x512xf32> to vector<8x128xf32>
    %521 = arith.mulf %517, %520 : vector<8x128xf32>
    %522 = arith.addf %519, %521 : vector<8x128xf32>
    %523 = math.tanh %522 : vector<8x128xf32>
    %cst_150 = arith.constant 1.000000e+00 : f32
    %524 = vector.broadcast %cst_150 : f32 to vector<8x128xf32>
    %525 = arith.subf %524, %518 : vector<8x128xf32>
    %526 = arith.mulf %525, %523 : vector<8x128xf32>
    %527 = arith.mulf %518, %466 : vector<8x128xf32>
    %528 = arith.addf %526, %527 : vector<8x128xf32>
    %529 = arith.mulf %469, %528 : vector<8x128xf32>
    %530 = arith.mulf %471, %466 : vector<8x128xf32>
    %531 = arith.addf %529, %530 : vector<8x128xf32>
    %532 = arith.mulf %469, %531 : vector<8x128xf32>
    %c56_151 = arith.constant 56 : index
    %c0_152 = arith.constant 0 : index
    %533 = vector.load %arg7[%c56_151, %c0_152] : memref<64x128xf32, #tpu.memory_space<vmem>>, vector<8x128xf32>
    tpu.vector_store %arg7[%c56_151, %c0_152], %532 {strides = array<i32>} : memref<64x128xf32, #tpu.memory_space<vmem>>, vector<8x128xf32>,
    %c0_153 = arith.constant 0 : index
    %c1408 = arith.constant 1408 : index
    %534 = vector.load %arg3[%c0_153, %c1408] : memref<128x1536xf32, #tpu.memory_space<vmem>>, vector<128x128xf32>
    %c0_154 = arith.constant 0 : index
    %c1280 = arith.constant 1280 : index
    %535 = vector.load %arg4[%c0_154, %c1280] : memref<1x1408xf32, #tpu.memory_space<vmem>>, vector<1x128xf32>
    %c0_155 = arith.constant 0 : index
    %c0_156 = arith.constant 0 : index
    %536 = vector.load %arg7[%c0_155, %c0_156] : memref<64x128xf32, #tpu.memory_space<vmem>>, vector<64x128xf32>
    %cst_157 = arith.constant dense<0.000000e+00> : vector<64x128xf32>
    %537 = tpu.matmul %536, %534, %cst_157 {dimension_numbers = #tpu.dot_dimension_numbers<[1], [0], [0], [1], [0, 0, 1, 1], [], []>} : vector<64x128xf32>, vector<128x128xf32>, vector<64x128xf32> -> vector<64x128xf32>
    %538 = vector.broadcast %535 : vector<1x128xf32> to vector<64x128xf32>
    %539 = arith.addf %537, %538 : vector<64x128xf32>
    %540 = math.tanh %539 : vector<64x128xf32>
    %c0_158 = arith.constant 0 : index
    %c0_159 = arith.constant 0 : index
    %541 = vector.load %arg5[%c0_158, %c0_159] : memref<64x128xf32, #tpu.memory_space<vmem>>, vector<64x128xf32>
    tpu.vector_store %arg5[%c0_158, %c0_159], %540 {strides = array<i32>} : memref<64x128xf32, #tpu.memory_space<vmem>>, vector<64x128xf32>,
    return
  }
}

</mosaic_0001>

<llo_original>
// kernel: _generator_forward_jit.1
$region0: #{_generator_forward_jit.1}
  #allocation0 [shape = 'u32[]', space=smem, size = 0x4, offset = 0x4, fixed_abs, tag = 'smem constant byte address 0x4 - core index']
  #allocation1 [shape = 'u32[144,128]{1,0:T(1,128)}', space=vmem, size = 0x12000, scoped, tag = 'internal scratch']
  #allocation2 [shape = 'f32[64,384]{1,0:T(8,128)}', space=vmem, size = 0x18000, scoped, tag = 'scratch operand']
  #allocation3 [shape = 'f32[64,128]{1,0:T(8,128)}', space=vmem, size = 0x8000, scoped, tag = 'scratch operand']
  %s0 = inlined_call_operand.vmem [shape: f32[64,8], index: 0, kind: input, shape index: {}]
  %s1 = inlined_call_operand.vmem [shape: f32[64,128], index: 1, kind: input, shape index: {}]
  %s2 = inlined_call_operand.vmem [shape: f32[8,384], index: 2, kind: input, shape index: {}]
  %s3 = inlined_call_operand.hbm [shape: f32[128,1536], index: 3, kind: input, shape index: {}]
  %s4 = inlined_call_operand.vmem [shape: f32[1,1408], index: 4, kind: input, shape index: {}]
  %s5 = inlined_call_operand.vmem [shape: f32[64,128], index: 5, kind: output, shape index: {}]
  %s6 = sld [smem:[#allocation0]]
  $region34: #{_generator_forward_jit.1} parent=0
    _
  %s8 = ssub.s32 1, %s6
  %s9 = scalar_select 0, %s8, %s6
  $region1: #{_generator_forward_jit.1} parent=0
    #allocation4 [shape = 'u8[786432]{0}', space=vmem, size = 0xc0000, scoped, tag = 'input window, operand 3, single buffered']
    #allocation5 [shape = 's32[1]{0}', space=sflag, size = 0x4, scoped, tag = 'scoped memory for _generator_forward_jit.1']
    %10 = vsyncpa [#allocation5], 0
    // Predicated region
    $region2: #{_generator_forward_jit.1} parent=1 // pred_check
      _
    $region3: #{_generator_forward_jit.1} parent=1 // pred_check_branch
      %12 = sbr.rel (0) target = $region5
    $region4: #{_generator_forward_jit.1} parent=1 // pred_region
      _
    $region5: #{_generator_forward_jit.1} parent=1 // pred_fallthru
      _
    // Predicated region
    $region6: #{_generator_forward_jit.1} parent=1 // pred_check
      _
    $region7: #{_generator_forward_jit.1} parent=1 // pred_check_branch
      %14 = sbr.rel (0) target = $region9
    $region8: #{_generator_forward_jit.1} parent=1 // pred_region
      _
    $region9: #{_generator_forward_jit.1} parent=1 // pred_fallthru
      _
    // Predicated region
    $region10: #{_generator_forward_jit.1} parent=1 // pred_check
      _
    $region11: #{_generator_forward_jit.1} parent=1 // pred_check_branch
      %16 = sbr.rel (0) target = $region13
    $region12: #{_generator_forward_jit.1} parent=1 // pred_region
      _
    $region13: #{_generator_forward_jit.1} parent=1 // pred_fallthru
      _
    // Predicated region
    $region14: #{_generator_forward_jit.1} parent=1 // pred_check
      _
    $region15: #{_generator_forward_jit.1} parent=1 // pred_check_branch
      %18 = sbr.rel (0) target = $region17
    $region16: #{_generator_forward_jit.1} parent=1 // pred_region
      %s20 = ssub.s32 24576, 24576
      %21 = vsyncadd [#allocation5], %s20
      %s22 = sshll.u32 [#allocation4], 4
      %s23 = int_to_ptr.vmem [resolvable:$true] %s22
      %28 = dma.hbm_to_vmem [thread:$0]  %s3, 24576, %s23, [#allocation5], 1536, 1536, 96
    $region17: #{_generator_forward_jit.1} parent=1 // pred_fallthru
      _
    // Predicated region
    $region18: #{_generator_forward_jit.1} parent=1 // pred_check
      _
    $region19: #{_generator_forward_jit.1} parent=1 // pred_check_branch
      %30 = sbr.rel (0) target = $region21
    $region20: #{_generator_forward_jit.1} parent=1 // pred_region
      _
    $region21: #{_generator_forward_jit.1} parent=1 // pred_fallthru
      _
    // Predicated region
    $region22: #{_generator_forward_jit.1} parent=1 // pred_check
      _
    $region23: #{_generator_forward_jit.1} parent=1 // pred_check_branch
      %32 = sbr.rel (0) target = $region25
    $region24: #{_generator_forward_jit.1} parent=1 // pred_region
      %33 = dma.done [#allocation5], 24576
    $region25: #{_generator_forward_jit.1} parent=1 // pred_fallthru
      _
    %v34 = vld [vmem:[%s0] sm:$0xff]
    %v35 = vld [vmem:[%s0 + $0x8] sm:$0xff]
    %v36 = vld [vmem:[%s0 + $0x10] sm:$0xff]
    %v37 = vld [vmem:[%s0 + $0x18] sm:$0xff]
    %v38 = vld [vmem:[%s0 + $0x20] sm:$0xff]
    %v39 = vld [vmem:[%s0 + $0x28] sm:$0xff]
    %v40 = vld [vmem:[%s0 + $0x30] sm:$0xff]
    %v41 = vld [vmem:[%s0 + $0x38] sm:$0xff]
    %v42 = vld [vmem:[%s2] sm:$0xff]
    %v43 = vld [vmem:[%s2 + $0x8] sm:$0xff]
    %v44 = vld [vmem:[%s2 + $0x10] sm:$0xff]
    %v45 = vld [vmem:[%s4] sm:$0x7]
    %v47 = vlaneseq
    %v48 = vshrl.u32 %v47, 7
    %v49 = vsub.s32 0, %v48
    %v50 = vrot.slane %v45, %v49
    %v51 = vlaneseq
    %v52 = vshrl.u32 %v51, 7
    %v53 = vsub.s32 1, %v52
    %v54 = vrot.slane %v45, %v53
    %v55 = vlaneseq
    %v56 = vshrl.u32 %v55, 7
    %v57 = vsub.s32 2, %v56
    %v58 = vrot.slane %v45, %v57
    %vm62 = vcmask 64512
    %v64 = vsel %vm62, %v34, 0
    %v67 = vsel %vm62, %v35, 0
    %v70 = vsel %vm62, %v36, 0
    %v73 = vsel %vm62, %v37, 0
    %v76 = vsel %vm62, %v38, 0
    %v79 = vsel %vm62, %v39, 0
    %v82 = vsel %vm62, %v40, 0
    %v85 = vsel %vm62, %v41, 0
    %87 = vmatprep.subr.mxu0 %v43
    %88 = vmatpush1.msra.mxu0 %v42
    %89 = vmatprep.subr.mxu0 0.0
    %90 = vmatpush1.msra.mxu0 0.0
    %91 = vmatprep.subr.mxu0 0.0
    %92 = vmatpush1.msra.mxu0 0.0
    %93 = vmatprep.subr.mxu0 0.0
    %94 = vmatpush1.msra.mxu0 0.0
    %95 = vmatprep.subr.mxu0 0.0
    %96 = vmatpush1.msra.mxu0 0.0
    %97 = vmatprep.subr.mxu0 0.0
    %98 = vmatpush1.msra.mxu0 0.0
    %99 = vmatprep.subr.mxu0 0.0
    %100 = vmatpush1.msra.mxu0 0.0
    %101 = vmatprep.subr.mxu0 0.0
    %102 = vmatpush1.msra.mxu0 0.0
    %103 = vmatprep.subr.mxu0 0.0
    %104 = vmatpush1.msra.mxu0 0.0
    %105 = vmatprep.subr.mxu0 0.0
    %106 = vmatpush1.msra.mxu0 0.0
    %107 = vmatprep.subr.mxu0 0.0
    %108 = vmatpush1.msra.mxu0 0.0
    %109 = vmatprep.subr.mxu0 0.0
    %110 = vmatpush1.msra.mxu0 0.0
    %111 = vmatprep.subr.mxu0 0.0
    %112 = vmatpush1.msra.mxu0 0.0
    %113 = vmatprep.subr.mxu0 0.0
    %114 = vmatpush1.msra.mxu0 0.0
    %115 = vmatprep.subr.mxu0 0.0
    %116 = vmatpush1.msra.mxu0 0.0
    %117 = vmatprep.subr.mxu0 0.0
    %118 = vmatpush1.msra.mxu0 0.0
    %119 = vmatprep.subr.mxu0 0.0
    %120 = vmatpush1.msra.mxu0 0.0
    %121 = vmatprep.subr.mxu0 0.0
    %122 = vmatpush1.msra.mxu0 0.0
    %123 = vmatprep.subr.mxu0 0.0
    %124 = vmatpush1.msra.mxu0 0.0
    %125 = vmatprep.subr.mxu0 0.0
    %126 = vmatpush1.msra.mxu0 0.0
    %127 = vmatprep.subr.mxu0 0.0
    %128 = vmatpush1.msra.mxu0 0.0
    %129 = vmatprep.subr.mxu0 0.0
    %130 = vmatpush1.msra.mxu0 0.0
    %131 = vmatprep.subr.mxu0 0.0
    %132 = vmatpush1.msra.mxu0 0.0
    %133 = vmatprep.subr.mxu0 0.0
    %134 = vmatpush1.msra.mxu0 0.0
    %135 = vmatprep.subr.mxu0 0.0
    %136 = vmatpush1.msra.mxu0 0.0
    %137 = vmatprep.subr.mxu0 0.0
    %138 = vmatpush1.msra.mxu0 0.0
    %139 = vmatprep.subr.mxu0 0.0
    %140 = vmatpush1.msra.mxu0 0.0
    %141 = vmatprep.subr.mxu0 0.0
    %142 = vmatpush1.msra.mxu0 0.0
    %143 = vmatprep.subr.mxu0 0.0
    %144 = vmatpush1.msra.mxu0 0.0
    %145 = vmatprep.subr.mxu0 0.0
    %146 = vmatpush1.msra.mxu0 0.0
    %147 = vmatprep.subr.mxu0 0.0
    %148 = vmatpush1.msra.mxu0 0.0
    %149 = vmatprep.subr.mxu0 0.0
    %150 = vmatpush1.msra.mxu0 0.0
    %151 = vmatprep.mubr.f32.mxu0 0.0
    %152 = vmatmul.mubr.f32.gmra.mrb[0].mxu0 %v64
    %v153 = vpop.f32.mrb[0].mxu0
    %v154 = vadd.f32 %v50, %v153
    %v155 = vpop.f32.mrb[0].mxu0
    %v156 = vadd.f32 %v54, %v155
    %157 = vmatprep.mubr.f32.mxu0 0.0
    %158 = vmatmul.mubr.f32.gmra.mrb[0].mxu0 %v67
    %v159 = vpop.f32.mrb[0].mxu0
    %v160 = vadd.f32 %v50, %v159
    %v161 = vpop.f32.mrb[0].mxu0
    %v162 = vadd.f32 %v54, %v161
    %163 = vmatprep.mubr.f32.mxu0 0.0
    %164 = vmatmul.mubr.f32.gmra.mrb[0].mxu0 %v70
    %v165 = vpop.f32.mrb[0].mxu0
    %v166 = vadd.f32 %v50, %v165
    %v167 = vpop.f32.mrb[0].mxu0
    %v168 = vadd.f32 %v54, %v167
    %169 = vmatprep.mubr.f32.mxu0 0.0
    %170 = vmatmul.mubr.f32.gmra.mrb[0].mxu0 %v73
    %v171 = vpop.f32.mrb[0].mxu0
    %v172 = vadd.f32 %v50, %v171
    %v173 = vpop.f32.mrb[0].mxu0
    %v174 = vadd.f32 %v54, %v173
    %175 = vmatprep.mubr.f32.mxu0 0.0
    %176 = vmatmul.mubr.f32.gmra.mrb[0].mxu0 %v76
    %v177 = vpop.f32.mrb[0].mxu0
    %v178 = vadd.f32 %v50, %v177
    %v179 = vpop.f32.mrb[0].mxu0
    %v180 = vadd.f32 %v54, %v179
    %181 = vmatprep.mubr.f32.mxu0 0.0
    %182 = vmatmul.mubr.f32.gmra.mrb[0].mxu0 %v79
    %v183 = vpop.f32.mrb[0].mxu0
    %v184 = vadd.f32 %v50, %v183
    %v185 = vpop.f32.mrb[0].mxu0
    %v186 = vadd.f32 %v54, %v185
    %187 = vmatprep.mubr.f32.mxu0 0.0
    %188 = vmatmul.mubr.f32.gmra.mrb[0].mxu0 %v82
    %v189 = vpop.f32.mrb[0].mxu0
    %v190 = vadd.f32 %v50, %v189
    %v191 = vpop.f32.mrb[0].mxu0
    %v192 = vadd.f32 %v54, %v191
    %193 = vmatprep.mubr.f32.mxu0 0.0
    %194 = vmatmul.mubr.f32.gmra.mrb[0].mxu0 %v85
    %v195 = vpop.f32.mrb[0].mxu0
    %v196 = vadd.f32 %v50, %v195
    %v197 = vpop.f32.mrb[0].mxu0
    %v198 = vadd.f32 %v54, %v197
    %199 = vdwg.mxu0
    %200 = vmatprep.subr.mxu0 0.0
    %201 = vmatpush1.msra.mxu0 %v44
    %202 = vmatprep.subr.mxu0 0.0
    %203 = vmatpush1.msra.mxu0 0.0
    %204 = vmatprep.subr.mxu0 0.0
    %205 = vmatpush1.msra.mxu0 0.0
    %206 = vmatprep.subr.mxu0 0.0
    %207 = vmatpush1.msra.mxu0 0.0
    %208 = vmatprep.subr.mxu0 0.0
    %209 = vmatpush1.msra.mxu0 0.0
    %210 = vmatprep.subr.mxu0 0.0
    %211 = vmatpush1.msra.mxu0 0.0
    %212 = vmatprep.subr.mxu0 0.0
    %213 = vmatpush1.msra.mxu0 0.0
    %214 = vmatprep.subr.mxu0 0.0
    %215 = vmatpush1.msra.mxu0 0.0
    %216 = vmatprep.subr.mxu0 0.0
    %217 = vmatpush1.msra.mxu0 0.0
    %218 = vmatprep.subr.mxu0 0.0
    %219 = vmatpush1.msra.mxu0 0.0
    %220 = vmatprep.subr.mxu0 0.0
    %221 = vmatpush1.msra.mxu0 0.0
    %222 = vmatprep.subr.mxu0 0.0
    %223 = vmatpush1.msra.mxu0 0.0
    %224 = vmatprep.subr.mxu0 0.0
    %225 = vmatpush1.msra.mxu0 0.0
    %226 = vmatprep.subr.mxu0 0.0
    %227 = vmatpush1.msra.mxu0 0.0
    %228 = vmatprep.subr.mxu0 0.0
    %229 = vmatpush1.msra.mxu0 0.0
    %230 = vmatprep.subr.mxu0 0.0
    %231 = vmatpush1.msra.mxu0 0.0
    %232 = vmatprep.subr.mxu0 0.0
    %233 = vmatpush1.msra.mxu0 0.0
    %234 = vmatprep.subr.mxu0 0.0
    %235 = vmatpush1.msra.mxu0 0.0
    %236 = vmatprep.subr.mxu0 0.0
    %237 = vmatpush1.msra.mxu0 0.0
    %238 = vmatprep.subr.mxu0 0.0
    %239 = vmatpush1.msra.mxu0 0.0
    %240 = vmatprep.subr.mxu0 0.0
    %241 = vmatpush1.msra.mxu0 0.0
    %242 = vmatprep.subr.mxu0 0.0
    %243 = vmatpush1.msra.mxu0 0.0
    %244 = vmatprep.subr.mxu0 0.0
    %245 = vmatpush1.msra.mxu0 0.0
    %246 = vmatprep.subr.mxu0 0.0
    %247 = vmatpush1.msra.mxu0 0.0
    %248 = vmatprep.subr.mxu0 0.0
    %249 = vmatpush1.msra.mxu0 0.0
    %250 = vmatprep.subr.mxu0 0.0
    %251 = vmatpush1.msra.mxu0 0.0
    %252 = vmatprep.subr.mxu0 0.0
    %253 = vmatpush1.msra.mxu0 0.0
    %254 = vmatprep.subr.mxu0 0.0
    %255 = vmatpush1.msra.mxu0 0.0
    %256 = vmatprep.subr.mxu0 0.0
    %257 = vmatpush1.msra.mxu0 0.0
    %258 = vmatprep.subr.mxu0 0.0
    %259 = vmatpush1.msra.mxu0 0.0
    %260 = vmatprep.subr.mxu0 0.0
    %261 = vmatpush1.msra.mxu0 0.0
    %262 = vmatprep.subr.mxu0 0.0
    %263 = vmatpush1.msra.mxu0 0.0
    %264 = vmatprep.mubr.f32.mxu0 0.0
    %265 = vmatmul.mubr.f32.gmra.mrb[0].mxu0 %v64
    %v266 = vpop.f32.mrb[0].mxu0
    %v267 = vadd.f32 %v58, %v266
    %v268 = vpop.f32.mrb[0].mxu0
    %269 = vmatprep.mubr.f32.mxu0 0.0
    %270 = vmatmul.mubr.f32.gmra.mrb[0].mxu0 %v67
    %v271 = vpop.f32.mrb[0].mxu0
    %v272 = vadd.f32 %v58, %v271
    %v273 = vpop.f32.mrb[0].mxu0
    %274 = vmatprep.mubr.f32.mxu0 0.0
    %275 = vmatmul.mubr.f32.gmra.mrb[0].mxu0 %v70
    %v276 = vpop.f32.mrb[0].mxu0
    %v277 = vadd.f32 %v58, %v276
    %v278 = vpop.f32.mrb[0].mxu0
    %279 = vmatprep.mubr.f32.mxu0 0.0
    %280 = vmatmul.mubr.f32.gmra.mrb[0].mxu0 %v73
    %v281 = vpop.f32.mrb[0].mxu0
    %v282 = vadd.f32 %v58, %v281
    %v283 = vpop.f32.mrb[0].mxu0
    %284 = vmatprep.mubr.f32.mxu0 0.0
    %285 = vmatmul.mubr.f32.gmra.mrb[0].mxu0 %v76
    %v286 = vpop.f32.mrb[0].mxu0
    %v287 = vadd.f32 %v58, %v286
    %v288 = vpop.f32.mrb[0].mxu0
    %289 = vmatprep.mubr.f32.mxu0 0.0
    %290 = vmatmul.mubr.f32.gmra.mrb[0].mxu0 %v79
    %v291 = vpop.f32.mrb[0].mxu0
    %v292 = vadd.f32 %v58, %v291
    %v293 = vpop.f32.mrb[0].mxu0
    %294 = vmatprep.mubr.f32.mxu0 0.0
    %295 = vmatmul.mubr.f32.gmra.mrb[0].mxu0 %v82
    %v296 = vpop.f32.mrb[0].mxu0
    %v297 = vadd.f32 %v58, %v296
    %v298 = vpop.f32.mrb[0].mxu0
    %299 = vmatprep.mubr.f32.mxu0 0.0
    %300 = vmatmul.mubr.f32.gmra.mrb[0].mxu0 %v85
    %v301 = vpop.f32.mrb[0].mxu0
    %v302 = vadd.f32 %v58, %v301
    %v303 = vpop.f32.mrb[0].mxu0
    %304 = vdwg.mxu0
    %305 = vst [vmem:[#allocation2] sm:$0xff] %v154
    %306 = vst [vmem:[#allocation2 + $0x8] sm:$0xff] %v156
    %307 = vst [vmem:[#allocation2 + $0x10] sm:$0xff] %v267
    %308 = vst [vmem:[#allocation2 + $0x18] sm:$0xff] %v160
    %309 = vst [vmem:[#allocation2 + $0x20] sm:$0xff] %v162
    %310 = vst [vmem:[#allocation2 + $0x28] sm:$0xff] %v272
    %311 = vst [vmem:[#allocation2 + $0x30] sm:$0xff] %v166
    %312 = vst [vmem:[#allocation2 + $0x38] sm:$0xff] %v168
    %313 = vst [vmem:[#allocation2 + $0x40] sm:$0xff] %v277
    %314 = vst [vmem:[#allocation2 + $0x48] sm:$0xff] %v172
    %315 = vst [vmem:[#allocation2 + $0x50] sm:$0xff] %v174
    %316 = vst [vmem:[#allocation2 + $0x58] sm:$0xff] %v282
    %317 = vst [vmem:[#allocation2 + $0x60] sm:$0xff] %v178
    %318 = vst [vmem:[#allocation2 + $0x68] sm:$0xff] %v180
    %319 = vst [vmem:[#allocation2 + $0x70] sm:$0xff] %v287
    %320 = vst [vmem:[#allocation2 + $0x78] sm:$0xff] %v184
    %321 = vst [vmem:[#allocation2 + $0x80] sm:$0xff] %v186
    %322 = vst [vmem:[#allocation2 + $0x88] sm:$0xff] %v292
    %323 = vst [vmem:[#allocation2 + $0x90] sm:$0xff] %v190
    %324 = vst [vmem:[#allocation2 + $0x98] sm:$0xff] %v192
    %325 = vst [vmem:[#allocation2 + $0xa0] sm:$0xff] %v297
    %326 = vst [vmem:[#allocation2 + $0xa8] sm:$0xff] %v196
    %327 = vst [vmem:[#allocation2 + $0xb0] sm:$0xff] %v198
    %328 = vst [vmem:[#allocation2 + $0xb8] sm:$0xff] %v302
    %v329 = vld [vmem:[#allocation4] sm:$0xff]
    %v330 = vld [vmem:[#allocation4 + $0x8] sm:$0xff]
    %v331 = vld [vmem:[#allocation4 + $0x10] sm:$0xff]
    %v332 = vld [vmem:[#allocation4 + $0x60] sm:$0xff]
    %v333 = vld [vmem:[#allocation4 + $0x68] sm:$0xff]
    %v334 = vld [vmem:[#allocation4 + $0x70] sm:$0xff]
    %v335 = vld [vmem:[#allocation4 + $0xc0] sm:$0xff]
    %v336 = vld [vmem:[#allocation4 + $0xc8] sm:$0xff]
    %v337 = vld [vmem:[#allocation4 + $0xd0] sm:$0xff]
    %v338 = vld [vmem:[#allocation4 + $0x120] sm:$0xff]
    %v339 = vld [vmem:[#allocation4 + $0x128] sm:$0xff]
    %v340 = vld [vmem:[#allocation4 + $0x130] sm:$0xff]
    %v341 = vld [vmem:[#allocation4 + $0x18] sm:$0xff]
    %v342 = vld [vmem:[#allocation4 + $0x20] sm:$0xff]
    %v343 = vld [vmem:[#allocation4 + $0x28] sm:$0xff]
    %v344 = vld [vmem:[#allocation4 + $0x30] sm:$0xff]
    %v345 = vld [vmem:[#allocation4 + $0x78] sm:$0xff]
    %v346 = vld [vmem:[#allocation4 + $0x80] sm:$0xff]
    %v347 = vld [vmem:[#allocation4 + $0x88] sm:$0xff]
    %v348 = vld [vmem:[#allocation4 + $0x90] sm:$0xff]
    %v349 = vld [vmem:[#allocation4 + $0xd8] sm:$0xff]
    %v350 = vld [vmem:[#allocation4 + $0xe0] sm:$0xff]
    %v351 = vld [vmem:[#allocation4 + $0xe8] sm:$0xff]
    %v352 = vld [vmem:[#allocation4 + $0xf0] sm:$0xff]
    %v353 = vld [vmem:[#allocation4 + $0x138] sm:$0xff]
    %v354 = vld [vmem:[#allocation4 + $0x140] sm:$0xff]
    %v355 = vld [vmem:[#allocation4 + $0x148] sm:$0xff]
    %v356 = vld [vmem:[#allocation4 + $0x150] sm:$0xff]
    %v357 = vld [vmem:[#allocation4 + $0x38] sm:$0xff]
    %v358 = vld [vmem:[#allocation4 + $0x40] sm:$0xff]
    %v359 = vld [vmem:[#allocation4 + $0x48] sm:$0xff]
    %v360 = vld [vmem:[#allocation4 + $0x50] sm:$0xff]
    %v361 = vld [vmem:[#allocation4 + $0x98] sm:$0xff]
    %v362 = vld [vmem:[#allocation4 + $0xa0] sm:$0xff]
    %v363 = vld [vmem:[#allocation4 + $0xa8] sm:$0xff]
    %v364 = vld [vmem:[#allocation4 + $0xb0] sm:$0xff]
    %v365 = vld [vmem:[#allocation4 + $0xf8] sm:$0xff]
    %v366 = vld [vmem:[#allocation4 + $0x100] sm:$0xff]
    %v367 = vld [vmem:[#allocation4 + $0x108] sm:$0xff]
    %v368 = vld [vmem:[#allocation4 + $0x110] sm:$0xff]
    %v369 = vld [vmem:[#allocation4 + $0x158] sm:$0xff]
    %v370 = vld [vmem:[#allocation4 + $0x160] sm:$0xff]
    %v371 = vld [vmem:[#allocation4 + $0x168] sm:$0xff]
    %v372 = vld [vmem:[#allocation4 + $0x170] sm:$0xff]
    %v373 = vld [vmem:[%s4 + $0x3] sm:$0x7]
    %v374 = vld [vmem:[%s4 + $0x6] sm:$0xf]
    %v375 = vld [vmem:[%s1] sm:$0xff]
    %v376 = vsub.f32 1.0, %v375
    %v377 = vld [vmem:[#allocation2] sm:$0xff]
    %v378 = vld [vmem:[#allocation2 + $0x8] sm:$0xff]
    %v379 = vld [vmem:[#allocation2 + $0x10] sm:$0xff]
    %v381 = vlaneseq
    %v382 = vshrl.u32 %v381, 7
    %v383 = vsub.s32 0, %v382
    %v384 = vrot.slane %v373, %v383
    %v385 = vlaneseq
    %v386 = vshrl.u32 %v385, 7
    %v387 = vsub.s32 1, %v386
    %v388 = vrot.slane %v373, %v387
    %v389 = vlaneseq
    %v390 = vshrl.u32 %v389, 7
    %v391 = vsub.s32 2, %v390
    %v392 = vrot.slane %v373, %v391
    %vm396 = vcmask 261120
    %v398 = vsel %vm396, 0.0, 0
    %400 = vmatprep.subr.mxu0 %v330
    %401 = vmatpush1.msra.mxu0 %v329
    %402 = vmatprep.subr.mxu0 %v333
    %403 = vmatpush1.msra.mxu0 %v332
    %404 = vmatprep.subr.mxu0 %v336
    %405 = vmatpush1.msra.mxu0 %v335
    %406 = vmatprep.subr.mxu0 %v339
    %407 = vmatpush1.msra.mxu0 %v338
    %408 = vmatprep.subr.mxu0 0.0
    %409 = vmatpush1.msra.mxu0 0.0
    %410 = vmatprep.subr.mxu0 0.0
    %411 = vmatpush1.msra.mxu0 0.0
    %412 = vmatprep.subr.mxu0 0.0
    %413 = vmatpush1.msra.mxu0 0.0
    %414 = vmatprep.subr.mxu0 0.0
    %415 = vmatpush1.msra.mxu0 0.0
    %416 = vmatprep.subr.mxu0 0.0
    %417 = vmatpush1.msra.mxu0 0.0
    %418 = vmatprep.subr.mxu0 0.0
    %419 = vmatpush1.msra.mxu0 0.0
    %420 = vmatprep.subr.mxu0 0.0
    %421 = vmatpush1.msra.mxu0 0.0
    %422 = vmatprep.subr.mxu0 0.0
    %423 = vmatpush1.msra.mxu0 0.0
    %424 = vmatprep.subr.mxu0 0.0
    %425 = vmatpush1.msra.mxu0 0.0
    %426 = vmatprep.subr.mxu0 0.0
    %427 = vmatpush1.msra.mxu0 0.0
    %428 = vmatprep.subr.mxu0 0.0
    %429 = vmatpush1.msra.mxu0 0.0
    %430 = vmatprep.subr.mxu0 0.0
    %431 = vmatpush1.msra.mxu0 0.0
    %432 = vmatprep.subr.mxu0 0.0
    %433 = vmatpush1.msra.mxu0 0.0
    %434 = vmatprep.subr.mxu0 0.0
    %435 = vmatpush1.msra.mxu0 0.0
    %436 = vmatprep.subr.mxu0 0.0
    %437 = vmatpush1.msra.mxu0 0.0
    %438 = vmatprep.subr.mxu0 0.0
    %439 = vmatpush1.msra.mxu0 0.0
    %440 = vmatprep.subr.mxu0 0.0
    %441 = vmatpush1.msra.mxu0 0.0
    %442 = vmatprep.subr.mxu0 0.0
    %443 = vmatpush1.msra.mxu0 0.0
    %444 = vmatprep.subr.mxu0 0.0
    %445 = vmatpush1.msra.mxu0 0.0
    %446 = vmatprep.subr.mxu0 0.0
    %447 = vmatpush1.msra.mxu0 0.0
    %448 = vmatprep.subr.mxu0 0.0
    %449 = vmatpush1.msra.mxu0 0.0
    %450 = vmatprep.subr.mxu0 0.0
    %451 = vmatpush1.msra.mxu0 0.0
    %452 = vmatprep.subr.mxu0 0.0
    %453 = vmatpush1.msra.mxu0 0.0
    %454 = vmatprep.subr.mxu0 0.0
    %455 = vmatpush1.msra.mxu0 0.0
    %456 = vmatprep.subr.mxu0 0.0
    %457 = vmatpush1.msra.mxu0 0.0
    %458 = vmatprep.subr.mxu0 0.0
    %459 = vmatpush1.msra.mxu0 0.0
    %460 = vmatprep.subr.mxu0 0.0
    %461 = vmatpush1.msra.mxu0 0.0
    %462 = vmatprep.subr.mxu0 0.0
    %463 = vmatpush1.msra.mxu0 0.0
    %464 = vmatprep.mubr.f32.mxu0 0.0
    %465 = vmatmul.mubr.f32.gmra.mrb[0].mxu0 %v398
    %v466 = vpop.f32.mrb[0].mxu0
    %v467 = vadd.f32 %v384, %v466
    %v468 = vpop.f32.mrb[0].mxu0
    %v469 = vadd.f32 %v388, %v468
    %470 = vdwg.mxu0
    %471 = vmatprep.subr.mxu0 0.0
    %472 = vmatpush1.msra.mxu0 %v331
    %473 = vmatprep.subr.mxu0 0.0
    %474 = vmatpush1.msra.mxu0 %v334
    %475 = vmatprep.subr.mxu0 0.0
    %476 = vmatpush1.msra.mxu0 %v337
    %477 = vmatprep.subr.mxu0 0.0
    %478 = vmatpush1.msra.mxu0 %v340
    %479 = vmatprep.subr.mxu0 0.0
    %480 = vmatpush1.msra.mxu0 0.0
    %481 = vmatprep.subr.mxu0 0.0
    %482 = vmatpush1.msra.mxu0 0.0
    %483 = vmatprep.subr.mxu0 0.0
    %484 = vmatpush1.msra.mxu0 0.0
    %485 = vmatprep.subr.mxu0 0.0
    %486 = vmatpush1.msra.mxu0 0.0
    %487 = vmatprep.subr.mxu0 0.0
    %488 = vmatpush1.msra.mxu0 0.0
    %489 = vmatprep.subr.mxu0 0.0
    %490 = vmatpush1.msra.mxu0 0.0
    %491 = vmatprep.subr.mxu0 0.0
    %492 = vmatpush1.msra.mxu0 0.0
    %493 = vmatprep.subr.mxu0 0.0
    %494 = vmatpush1.msra.mxu0 0.0
    %495 = vmatprep.subr.mxu0 0.0
    %496 = vmatpush1.msra.mxu0 0.0
    %497 = vmatprep.subr.mxu0 0.0
    %498 = vmatpush1.msra.mxu0 0.0
    %499 = vmatprep.subr.mxu0 0.0
    %500 = vmatpush1.msra.mxu0 0.0
    %501 = vmatprep.subr.mxu0 0.0
    %502 = vmatpush1.msra.mxu0 0.0
    %503 = vmatprep.subr.mxu0 0.0
    %504 = vmatpush1.msra.mxu0 0.0
    %505 = vmatprep.subr.mxu0 0.0
    %506 = vmatpush1.msra.mxu0 0.0
    %507 = vmatprep.subr.mxu0 0.0
    %508 = vmatpush1.msra.mxu0 0.0
    %509 = vmatprep.subr.mxu0 0.0
    %510 = vmatpush1.msra.mxu0 0.0
    %511 = vmatprep.subr.mxu0 0.0
    %512 = vmatpush1.msra.mxu0 0.0
    %513 = vmatprep.subr.mxu0 0.0
    %514 = vmatpush1.msra.mxu0 0.0
    %515 = vmatprep.subr.mxu0 0.0
    %516 = vmatpush1.msra.mxu0 0.0
    %517 = vmatprep.subr.mxu0 0.0
    %518 = vmatpush1.msra.mxu0 0.0
    %519 = vmatprep.subr.mxu0 0.0
    %520 = vmatpush1.msra.mxu0 0.0
    %521 = vmatprep.subr.mxu0 0.0
    %522 = vmatpush1.msra.mxu0 0.0
    %523 = vmatprep.subr.mxu0 0.0
    %524 = vmatpush1.msra.mxu0 0.0
    %525 = vmatprep.subr.mxu0 0.0
    %526 = vmatpush1.msra.mxu0 0.0
    %527 = vmatprep.subr.mxu0 0.0
    %528 = vmatpush1.msra.mxu0 0.0
    %529 = vmatprep.subr.mxu0 0.0
    %530 = vmatpush1.msra.mxu0 0.0
    %531 = vmatprep.subr.mxu0 0.0
    %532 = vmatpush1.msra.mxu0 0.0
    %533 = vmatprep.subr.mxu0 0.0
    %534 = vmatpush1.msra.mxu0 0.0
    %535 = vmatprep.mubr.f32.mxu0 0.0
    %536 = vmatmul.mubr.f32.gmra.mrb[0].mxu0 %v398
    %v537 = vpop.f32.mrb[0].mxu0
    %v538 = vadd.f32 %v392, %v537
    %v539 = vpop.f32.mrb[0].mxu0
    %540 = vdwg.mxu0
    %v541 = vadd.f32 %v377, %v467
    %v542 = vadd.f32 %v378, %v469
    %v543 = vmul.f32 %v541, 0.5
    %v544 = vmul.f32 %v542, 0.5
    %v545 = vtanh.pop %v543
    %v546 = vtanh.pop %v544
    %v547 = vmul.f32 %v545, 0.5
    %v548 = vmul.f32 %v546, 0.5
    %v549 = vadd.f32 %v547, 0.5
    %v550 = vadd.f32 %v548, 0.5
    %v551 = vmul.f32 %v549, %v538
    %v552 = vadd.f32 %v379, %v551
    %v553 = vtanh.pop %v552
    %v554 = vsub.f32 1.0, %v550
    %v555 = vmul.f32 %v554, %v553
    %v556 = vmul.f32 %v550, 0.0
    %v557 = vadd.f32 %v555, %v556
    %v558 = vmul.f32 %v375, %v557
    %v559 = vmul.f32 %v376, 0.0
    %v560 = vadd.f32 %v558, %v559
    %561 = vmatprep.subr.mxu0 %v358
    %562 = vmatpush1.msra.mxu0 %v357
    %563 = vmatprep.subr.mxu0 %v362
    %564 = vmatpush1.msra.mxu0 %v361
    %565 = vmatprep.subr.mxu0 %v366
    %566 = vmatpush1.msra.mxu0 %v365
    %567 = vmatprep.subr.mxu0 %v370
    %568 = vmatpush1.msra.mxu0 %v369
    %569 = vmatprep.subr.mxu0 0.0
    %570 = vmatpush1.msra.mxu0 0.0
    %571 = vmatprep.subr.mxu0 0.0
    %572 = vmatpush1.msra.mxu0 0.0
    %573 = vmatprep.subr.mxu0 0.0
    %574 = vmatpush1.msra.mxu0 0.0
    %575 = vmatprep.subr.mxu0 0.0
    %576 = vmatpush1.msra.mxu0 0.0
    %577 = vmatprep.subr.mxu0 0.0
    %578 = vmatpush1.msra.mxu0 0.0
    %579 = vmatprep.subr.mxu0 0.0
    %580 = vmatpush1.msra.mxu0 0.0
    %581 = vmatprep.subr.mxu0 0.0
    %582 = vmatpush1.msra.mxu0 0.0
    %583 = vmatprep.subr.mxu0 0.0
    %584 = vmatpush1.msra.mxu0 0.0
    %585 = vmatprep.subr.mxu0 0.0
    %586 = vmatpush1.msra.mxu0 0.0
    %587 = vmatprep.subr.mxu0 0.0
    %588 = vmatpush1.msra.mxu0 0.0
    %589 = vmatprep.subr.mxu0 0.0
    %590 = vmatpush1.msra.mxu0 0.0
    %591 = vmatprep.subr.mxu0 0.0
    %592 = vmatpush1.msra.mxu0 0.0
    %593 = vmatprep.subr.mxu0 0.0
    %594 = vmatpush1.msra.mxu0 0.0
    %595 = vmatprep.subr.mxu0 0.0
    %596 = vmatpush1.msra.mxu0 0.0
    %597 = vmatprep.subr.mxu0 0.0
    %598 = vmatpush1.msra.mxu0 0.0
    %599 = vmatprep.subr.mxu0 0.0
    %600 = vmatpush1.msra.mxu0 0.0
    %601 = vmatprep.subr.mxu0 0.0
    %602 = vmatpush1.msra.mxu0 0.0
    %603 = vmatprep.subr.mxu0 0.0
    %604 = vmatpush1.msra.mxu0 0.0
    %605 = vmatprep.subr.mxu0 0.0
    %606 = vmatpush1.msra.mxu0 0.0
    %607 = vmatprep.subr.mxu0 0.0
    %608 = vmatpush1.msra.mxu0 0.0
    %609 = vmatprep.subr.mxu0 0.0
    %610 = vmatpush1.msra.mxu0 0.0
    %611 = vmatprep.subr.mxu0 0.0
    %612 = vmatpush1.msra.mxu0 0.0
    %613 = vmatprep.subr.mxu0 0.0
    %614 = vmatpush1.msra.mxu0 0.0
    %615 = vmatprep.subr.mxu0 0.0
    %616 = vmatpush1.msra.mxu0 0.0
    %617 = vmatprep.subr.mxu0 0.0
    %618 = vmatpush1.msra.mxu0 0.0
    %619 = vmatprep.subr.mxu0 0.0
    %620 = vmatpush1.msra.mxu0 0.0
    %621 = vmatprep.subr.mxu0 0.0
    %622 = vmatpush1.msra.mxu0 0.0
    %623 = vmatprep.subr.mxu0 0.0
    %624 = vmatpush1.msra.mxu0 0.0
    %625 = vmatprep.mubr.f32.mxu0 0.0
    %626 = vmatmul.mubr.f32.gmra.mrb[0].mxu0 %v398
    %v627 = vpop.f32.mrb[0].mxu0
    %v628 = vadd.f32 0.0, %v627
    %v629 = vpop.f32.mrb[0].mxu0
    %v630 = vadd.f32 0.0, %v629
    %631 = vdwg.mxu0
    %632 = vmatprep.subr.mxu0 %v360
    %633 = vmatpush1.msra.mxu0 %v359
    %634 = vmatprep.subr.mxu0 %v364
    %635 = vmatpush1.msra.mxu0 %v363
    %636 = vmatprep.subr.mxu0 %v368
    %637 = vmatpush1.msra.mxu0 %v367
    %638 = vmatprep.subr.mxu0 %v372
    %639 = vmatpush1.msra.mxu0 %v371
    %640 = vmatprep.subr.mxu0 0.0
    %641 = vmatpush1.msra.mxu0 0.0
    %642 = vmatprep.subr.mxu0 0.0
    %643 = vmatpush1.msra.mxu0 0.0
    %644 = vmatprep.subr.mxu0 0.0
    %645 = vmatpush1.msra.mxu0 0.0
    %646 = vmatprep.subr.mxu0 0.0
    %647 = vmatpush1.msra.mxu0 0.0
    %648 = vmatprep.subr.mxu0 0.0
    %649 = vmatpush1.msra.mxu0 0.0
    %650 = vmatprep.subr.mxu0 0.0
    %651 = vmatpush1.msra.mxu0 0.0
    %652 = vmatprep.subr.mxu0 0.0
    %653 = vmatpush1.msra.mxu0 0.0
    %654 = vmatprep.subr.mxu0 0.0
    %655 = vmatpush1.msra.mxu0 0.0
    %656 = vmatprep.subr.mxu0 0.0
    %657 = vmatpush1.msra.mxu0 0.0
    %658 = vmatprep.subr.mxu0 0.0
    %659 = vmatpush1.msra.mxu0 0.0
    %660 = vmatprep.subr.mxu0 0.0
    %661 = vmatpush1.msra.mxu0 0.0
    %662 = vmatprep.subr.mxu0 0.0
    %663 = vmatpush1.msra.mxu0 0.0
    %664 = vmatprep.subr.mxu0 0.0
    %665 = vmatpush1.msra.mxu0 0.0
    %666 = vmatprep.subr.mxu0 0.0
    %667 = vmatpush1.msra.mxu0 0.0
    %668 = vmatprep.subr.mxu0 0.0
    %669 = vmatpush1.msra.mxu0 0.0
    %670 = vmatprep.subr.mxu0 0.0
    %671 = vmatpush1.msra.mxu0 0.0
    %672 = vmatprep.subr.mxu0 0.0
    %673 = vmatpush1.msra.mxu0 0.0
    %674 = vmatprep.subr.mxu0 0.0
    %675 = vmatpush1.msra.mxu0 0.0
    %676 = vmatprep.subr.mxu0 0.0
    %677 = vmatpush1.msra.mxu0 0.0
    %678 = vmatprep.subr.mxu0 0.0
    %679 = vmatpush1.msra.mxu0 0.0
    %680 = vmatprep.subr.mxu0 0.0
    %681 = vmatpush1.msra.mxu0 0.0
    %682 = vmatprep.subr.mxu0 0.0
    %683 = vmatpush1.msra.mxu0 0.0
    %684 = vmatprep.subr.mxu0 0.0
    %685 = vmatpush1.msra.mxu0 0.0
    %686 = vmatprep.subr.mxu0 0.0
    %687 = vmatpush1.msra.mxu0 0.0
    %688 = vmatprep.subr.mxu0 0.0
    %689 = vmatpush1.msra.mxu0 0.0
    %690 = vmatprep.subr.mxu0 0.0
    %691 = vmatpush1.msra.mxu0 0.0
    %692 = vmatprep.subr.mxu0 0.0
    %693 = vmatpush1.msra.mxu0 0.0
    %694 = vmatprep.subr.mxu0 0.0
    %695 = vmatpush1.msra.mxu0 0.0
    %696 = vmatprep.mubr.f32.mxu0 0.0
    %697 = vmatmul.mubr.f32.gmra.mrb[0].mxu0 %v398
    %v698 = vpop.f32.mrb[0].mxu0
    %v699 = vadd.f32 0.0, %v698
    %v700 = vpop.f32.mrb[0].mxu0
    %v701 = vadd.f32 0.0, %v700
    %702 = vdwg.mxu0
    %v704 = vsel %vm396, %v560, 0
    %706 = vmatprep.subr.mxu0 %v342
    %707 = vmatpush1.msra.mxu0 %v341
    %708 = vmatprep.subr.mxu0 %v346
    %709 = vmatpush1.msra.mxu0 %v345
    %710 = vmatprep.subr.mxu0 %v350
    %711 = vmatpush1.msra.mxu0 %v349
    %712 = vmatprep.subr.mxu0 %v354
    %713 = vmatpush1.msra.mxu0 %v353
    %714 = vmatprep.subr.mxu0 0.0
    %715 = vmatpush1.msra.mxu0 0.0
    %716 = vmatprep.subr.mxu0 0.0
    %717 = vmatpush1.msra.mxu0 0.0
    %718 = vmatprep.subr.mxu0 0.0
    %719 = vmatpush1.msra.mxu0 0.0
    %720 = vmatprep.subr.mxu0 0.0
    %721 = vmatpush1.msra.mxu0 0.0
    %722 = vmatprep.subr.mxu0 0.0
    %723 = vmatpush1.msra.mxu0 0.0
    %724 = vmatprep.subr.mxu0 0.0
    %725 = vmatpush1.msra.mxu0 0.0
    %726 = vmatprep.subr.mxu0 0.0
    %727 = vmatpush1.msra.mxu0 0.0
    %728 = vmatprep.subr.mxu0 0.0
    %729 = vmatpush1.msra.mxu0 0.0
    %730 = vmatprep.subr.mxu0 0.0
    %731 = vmatpush1.msra.mxu0 0.0
    %732 = vmatprep.subr.mxu0 0.0
    %733 = vmatpush1.msra.mxu0 0.0
    %734 = vmatprep.subr.mxu0 0.0
    %735 = vmatpush1.msra.mxu0 0.0
    %736 = vmatprep.subr.mxu0 0.0
    %737 = vmatpush1.msra.mxu0 0.0
    %738 = vmatprep.subr.mxu0 0.0
    %739 = vmatpush1.msra.mxu0 0.0
    %740 = vmatprep.subr.mxu0 0.0
    %741 = vmatpush1.msra.mxu0 0.0
    %742 = vmatprep.subr.mxu0 0.0
    %743 = vmatpush1.msra.mxu0 0.0
    %744 = vmatprep.subr.mxu0 0.0
    %745 = vmatpush1.msra.mxu0 0.0
    %746 = vmatprep.subr.mxu0 0.0
    %747 = vmatpush1.msra.mxu0 0.0
    %748 = vmatprep.subr.mxu0 0.0
    %749 = vmatpush1.msra.mxu0 0.0
    %750 = vmatprep.subr.mxu0 0.0
    %751 = vmatpush1.msra.mxu0 0.0
    %752 = vmatprep.subr.mxu0 0.0
    %753 = vmatpush1.msra.mxu0 0.0
    %754 = vmatprep.subr.mxu0 0.0
    %755 = vmatpush1.msra.mxu0 0.0
    %756 = vmatprep.subr.mxu0 0.0
    %757 = vmatpush1.msra.mxu0 0.0
    %758 = vmatprep.subr.mxu0 0.0
    %759 = vmatpush1.msra.mxu0 0.0
    %760 = vmatprep.subr.mxu0 0.0
    %761 = vmatpush1.msra.mxu0 0.0
    %762 = vmatprep.subr.mxu0 0.0
    %763 = vmatpush1.msra.mxu0 0.0
    %764 = vmatprep.subr.mxu0 0.0
    %765 = vmatpush1.msra.mxu0 0.0
    %766 = vmatprep.subr.mxu0 0.0
    %767 = vmatpush1.msra.mxu0 0.0
    %768 = vmatprep.subr.mxu0 0.0
    %769 = vmatpush1.msra.mxu0 0.0
    %770 = vmatprep.mubr.f32.mxu0 0.0
    %771 = vmatmul.mubr.f32.gmra.mrb[0].mxu0 %v704
    %v772 = vpop.f32.mrb[0].mxu0
    %v773 = vadd.f32 %v628, %v772
    %v774 = vpop.f32.mrb[0].mxu0
    %v775 = vadd.f32 %v630, %v774
    %776 = vdwg.mxu0
    %777 = vmatprep.subr.mxu0 %v344
    %778 = vmatpush1.msra.mxu0 %v343
    %779 = vmatprep.subr.mxu0 %v348
    %780 = vmatpush1.msra.mxu0 %v347
    %781 = vmatprep.subr.mxu0 %v352
    %782 = vmatpush1.msra.mxu0 %v351
    %783 = vmatprep.subr.mxu0 %v356
    %784 = vmatpush1.msra.mxu0 %v355
    %785 = vmatprep.subr.mxu0 0.0
    %786 = vmatpush1.msra.mxu0 0.0
    %787 = vmatprep.subr.mxu0 0.0
    %788 = vmatpush1.msra.mxu0 0.0
    %789 = vmatprep.subr.mxu0 0.0
    %790 = vmatpush1.msra.mxu0 0.0
    %791 = vmatprep.subr.mxu0 0.0
    %792 = vmatpush1.msra.mxu0 0.0
    %793 = vmatprep.subr.mxu0 0.0
    %794 = vmatpush1.msra.mxu0 0.0
    %795 = vmatprep.subr.mxu0 0.0
    %796 = vmatpush1.msra.mxu0 0.0
    %797 = vmatprep.subr.mxu0 0.0
    %798 = vmatpush1.msra.mxu0 0.0
    %799 = vmatprep.subr.mxu0 0.0
    %800 = vmatpush1.msra.mxu0 0.0
    %801 = vmatprep.subr.mxu0 0.0
    %802 = vmatpush1.msra.mxu0 0.0
    %803 = vmatprep.subr.mxu0 0.0
    %804 = vmatpush1.msra.mxu0 0.0
    %805 = vmatprep.subr.mxu0 0.0
    %806 = vmatpush1.msra.mxu0 0.0
    %807 = vmatprep.subr.mxu0 0.0
    %808 = vmatpush1.msra.mxu0 0.0
    %809 = vmatprep.subr.mxu0 0.0
    %810 = vmatpush1.msra.mxu0 0.0
    %811 = vmatprep.subr.mxu0 0.0
    %812 = vmatpush1.msra.mxu0 0.0
    %813 = vmatprep.subr.mxu0 0.0
    %814 = vmatpush1.msra.mxu0 0.0
    %815 = vmatprep.subr.mxu0 0.0
    %816 = vmatpush1.msra.mxu0 0.0
    %817 = vmatprep.subr.mxu0 0.0
    %818 = vmatpush1.msra.mxu0 0.0
    %819 = vmatprep.subr.mxu0 0.0
    %820 = vmatpush1.msra.mxu0 0.0
    %821 = vmatprep.subr.mxu0 0.0
    %822 = vmatpush1.msra.mxu0 0.0
    %823 = vmatprep.subr.mxu0 0.0
    %824 = vmatpush1.msra.mxu0 0.0
    %825 = vmatprep.subr.mxu0 0.0
    %826 = vmatpush1.msra.mxu0 0.0
    %827 = vmatprep.subr.mxu0 0.0
    %828 = vmatpush1.msra.mxu0 0.0
    %829 = vmatprep.subr.mxu0 0.0
    %830 = vmatpush1.msra.mxu0 0.0
    %831 = vmatprep.subr.mxu0 0.0
    %832 = vmatpush1.msra.mxu0 0.0
    %833 = vmatprep.subr.mxu0 0.0
    %834 = vmatpush1.msra.mxu0 0.0
    %835 = vmatprep.subr.mxu0 0.0
    %836 = vmatpush1.msra.mxu0 0.0
    %837 = vmatprep.subr.mxu0 0.0
    %838 = vmatpush1.msra.mxu0 0.0
    %839 = vmatprep.subr.mxu0 0.0
    %840 = vmatpush1.msra.mxu0 0.0
    %841 = vmatprep.mubr.f32.mxu0 0.0
    %842 = vmatmul.mubr.f32.gmra.mrb[0].mxu0 %v704
    %v843 = vpop.f32.mrb[0].mxu0
    %v844 = vadd.f32 %v699, %v843
    %v845 = vpop.f32.mrb[0].mxu0
    %v846 = vadd.f32 %v701, %v845
    %847 = vdwg.mxu0
    %v849 = vlaneseq
    %v850 = vshrl.u32 %v849, 7
    %v851 = vsub.s32 0, %v850
    %v852 = vrot.slane %v374, %v851
    %v853 = vlaneseq
    %v854 = vshrl.u32 %v853, 7
    %v855 = vsub.s32 1, %v854
    %v856 = vrot.slane %v374, %v855
    %v857 = vlaneseq
    %v858 = vshrl.u32 %v857, 7
    %v859 = vsub.s32 2, %v858
    %v860 = vrot.slane %v374, %v859
    %v861 = vlaneseq
    %v862 = vshrl.u32 %v861, 7
    %v863 = vsub.s32 3, %v862
    %v864 = vrot.slane %v374, %v863
    %v869 = vadd.f32 %v773, %v852
    %v870 = vadd.f32 %v775, %v856
    %v871 = vadd.f32 %v844, %v860
    %v872 = vadd.f32 %v846, %v864
    %v873 = vmul.f32 %v869, 0.5
    %v874 = vmul.f32 %v870, 0.5
    %v875 = vtanh.pop %v873
    %v876 = vtanh.pop %v874
    %v877 = vmul.f32 %v875, 0.5
    %v878 = vmul.f32 %v876, 0.5
    %v879 = vadd.f32 %v877, 0.5
    %v880 = vadd.f32 %v878, 0.5
    %v881 = vmul.f32 %v879, %v872
    %v882 = vadd.f32 %v871, %v881
    %v883 = vtanh.pop %v882
    %v884 = vsub.f32 1.0, %v880
    %v885 = vmul.f32 %v884, %v883
    %v886 = vmul.f32 %v880, 0.0
    %v887 = vadd.f32 %v885, %v886
    %v888 = vmul.f32 %v375, %v887
    %v889 = vadd.f32 %v888, %v559
    %v890 = vmul.f32 %v375, %v889
    %891 = vst [vmem:[#allocation3] sm:$0xff] %v890
    %v892 = vld [vmem:[%s1 + $0x8] sm:$0xff]
    %v893 = vsub.f32 1.0, %v892
    %v894 = vld [vmem:[#allocation2 + $0x18] sm:$0xff]
    %v895 = vld [vmem:[#allocation2 + $0x20] sm:$0xff]
    %v896 = vld [vmem:[#allocation2 + $0x28] sm:$0xff]
    %897 = vmatprep.subr.mxu0 %v330
    %898 = vmatpush1.msra.mxu0 %v329
    %899 = vmatprep.subr.mxu0 %v333
    %900 = vmatpush1.msra.mxu0 %v332
    %901 = vmatprep.subr.mxu0 %v336
    %902 = vmatpush1.msra.mxu0 %v335
    %903 = vmatprep.subr.mxu0 %v339
    %904 = vmatpush1.msra.mxu0 %v338
    %905 = vmatprep.subr.mxu0 0.0
    %906 = vmatpush1.msra.mxu0 0.0
    %907 = vmatprep.subr.mxu0 0.0
    %908 = vmatpush1.msra.mxu0 0.0
    %909 = vmatprep.subr.mxu0 0.0
    %910 = vmatpush1.msra.mxu0 0.0
    %911 = vmatprep.subr.mxu0 0.0
    %912 = vmatpush1.msra.mxu0 0.0
    %913 = vmatprep.subr.mxu0 0.0
    %914 = vmatpush1.msra.mxu0 0.0
    %915 = vmatprep.subr.mxu0 0.0
    %916 = vmatpush1.msra.mxu0 0.0
    %917 = vmatprep.subr.mxu0 0.0
    %918 = vmatpush1.msra.mxu0 0.0
    %919 = vmatprep.subr.mxu0 0.0
    %920 = vmatpush1.msra.mxu0 0.0
    %921 = vmatprep.subr.mxu0 0.0
    %922 = vmatpush1.msra.mxu0 0.0
    %923 = vmatprep.subr.mxu0 0.0
    %924 = vmatpush1.msra.mxu0 0.0
    %925 = vmatprep.subr.mxu0 0.0
    %926 = vmatpush1.msra.mxu0 0.0
    %927 = vmatprep.subr.mxu0 0.0
    %928 = vmatpush1.msra.mxu0 0.0
    %929 = vmatprep.subr.mxu0 0.0
    %930 = vmatpush1.msra.mxu0 0.0
    %931 = vmatprep.subr.mxu0 0.0
    %932 = vmatpush1.msra.mxu0 0.0
    %933 = vmatprep.subr.mxu0 0.0
    %934 = vmatpush1.msra.mxu0 0.0
    %935 = vmatprep.subr.mxu0 0.0
    %936 = vmatpush1.msra.mxu0 0.0
    %937 = vmatprep.subr.mxu0 0.0
    %938 = vmatpush1.msra.mxu0 0.0
    %939 = vmatprep.subr.mxu0 0.0
    %940 = vmatpush1.msra.mxu0 0.0
    %941 = vmatprep.subr.mxu0 0.0
    %942 = vmatpush1.msra.mxu0 0.0
    %943 = vmatprep.subr.mxu0 0.0
    %944 = vmatpush1.msra.mxu0 0.0
    %945 = vmatprep.subr.mxu0 0.0
    %946 = vmatpush1.msra.mxu0 0.0
    %947 = vmatprep.subr.mxu0 0.0
    %948 = vmatpush1.msra.mxu0 0.0
    %949 = vmatprep.subr.mxu0 0.0
    %950 = vmatpush1.msra.mxu0 0.0
    %951 = vmatprep.subr.mxu0 0.0
    %952 = vmatpush1.msra.mxu0 0.0
    %953 = vmatprep.subr.mxu0 0.0
    %954 = vmatpush1.msra.mxu0 0.0
    %955 = vmatprep.subr.mxu0 0.0
    %956 = vmatpush1.msra.mxu0 0.0
    %957 = vmatprep.subr.mxu0 0.0
    %958 = vmatpush1.msra.mxu0 0.0
    %959 = vmatprep.subr.mxu0 0.0
    %960 = vmatpush1.msra.mxu0 0.0
    %961 = vmatprep.mubr.f32.mxu0 0.0
    %962 = vmatmul.mubr.f32.gmra.mrb[0].mxu0 %v704
    %v963 = vpop.f32.mrb[0].mxu0
    %v964 = vadd.f32 %v384, %v963
    %v965 = vpop.f32.mrb[0].mxu0
    %v966 = vadd.f32 %v388, %v965
    %967 = vdwg.mxu0
    %968 = vmatprep.subr.mxu0 0.0
    %969 = vmatpush1.msra.mxu0 %v331
    %970 = vmatprep.subr.mxu0 0.0
    %971 = vmatpush1.msra.mxu0 %v334
    %972 = vmatprep.subr.mxu0 0.0
    %973 = vmatpush1.msra.mxu0 %v337
    %974 = vmatprep.subr.mxu0 0.0
    %975 = vmatpush1.msra.mxu0 %v340
    %976 = vmatprep.subr.mxu0 0.0
    %977 = vmatpush1.msra.mxu0 0.0
    %978 = vmatprep.subr.mxu0 0.0
    %979 = vmatpush1.msra.mxu0 0.0
    %980 = vmatprep.subr.mxu0 0.0
    %981 = vmatpush1.msra.mxu0 0.0
    %982 = vmatprep.subr.mxu0 0.0
    %983 = vmatpush1.msra.mxu0 0.0
    %984 = vmatprep.subr.mxu0 0.0
    %985 = vmatpush1.msra.mxu0 0.0
    %986 = vmatprep.subr.mxu0 0.0
    %987 = vmatpush1.msra.mxu0 0.0
    %988 = vmatprep.subr.mxu0 0.0
    %989 = vmatpush1.msra.mxu0 0.0
    %990 = vmatprep.subr.mxu0 0.0
    %991 = vmatpush1.msra.mxu0 0.0
    %992 = vmatprep.subr.mxu0 0.0
    %993 = vmatpush1.msra.mxu0 0.0
    %994 = vmatprep.subr.mxu0 0.0
    %995 = vmatpush1.msra.mxu0 0.0
    %996 = vmatprep.subr.mxu0 0.0
    %997 = vmatpush1.msra.mxu0 0.0
    %998 = vmatprep.subr.mxu0 0.0
    %999 = vmatpush1.msra.mxu0 0.0
    %1000 = vmatprep.subr.mxu0 0.0
    %1001 = vmatpush1.msra.mxu0 0.0
    %1002 = vmatprep.subr.mxu0 0.0
    %1003 = vmatpush1.msra.mxu0 0.0
    %1004 = vmatprep.subr.mxu0 0.0
    %1005 = vmatpush1.msra.mxu0 0.0
    %1006 = vmatprep.subr.mxu0 0.0
    %1007 = vmatpush1.msra.mxu0 0.0
    %1008 = vmatprep.subr.mxu0 0.0
    %1009 = vmatpush1.msra.mxu0 0.0
    %1010 = vmatprep.subr.mxu0 0.0
    %1011 = vmatpush1.msra.mxu0 0.0
    %1012 = vmatprep.subr.mxu0 0.0
    %1013 = vmatpush1.msra.mxu0 0.0
    %1014 = vmatprep.subr.mxu0 0.0
    %1015 = vmatpush1.msra.mxu0 0.0
    %1016 = vmatprep.subr.mxu0 0.0
    %1017 = vmatpush1.msra.mxu0 0.0
    %1018 = vmatprep.subr.mxu0 0.0
    %1019 = vmatpush1.msra.mxu0 0.0
    %1020 = vmatprep.subr.mxu0 0.0
    %1021 = vmatpush1.msra.mxu0 0.0
    %1022 = vmatprep.subr.mxu0 0.0
    %1023 = vmatpush1.msra.mxu0 0.0
    %1024 = vmatprep.subr.mxu0 0.0
    %1025 = vmatpush1.msra.mxu0 0.0
    %1026 = vmatprep.subr.mxu0 0.0
    %1027 = vmatpush1.msra.mxu0 0.0
    %1028 = vmatprep.subr.mxu0 0.0
    %1029 = vmatpush1.msra.mxu0 0.0
    %1030 = vmatprep.subr.mxu0 0.0
    %1031 = vmatpush1.msra.mxu0 0.0
    %1032 = vmatprep.mubr.f32.mxu0 0.0
    %1033 = vmatmul.mubr.f32.gmra.mrb[0].mxu0 %v704
    %v1034 = vpop.f32.mrb[0].mxu0
    %v1035 = vadd.f32 %v392, %v1034
    %v1036 = vpop.f32.mrb[0].mxu0
    %1037 = vdwg.mxu0
    %v1038 = vadd.f32 %v894, %v964
    %v1039 = vadd.f32 %v895, %v966
    %v1040 = vmul.f32 %v1038, 0.5
    %v1041 = vmul.f32 %v1039, 0.5
    %v1042 = vtanh.pop %v1040
    %v1043 = vtanh.pop %v1041
    %v1044 = vmul.f32 %v1042, 0.5
    %v1045 = vmul.f32 %v1043, 0.5
    %v1046 = vadd.f32 %v1044, 0.5
    %v1047 = vadd.f32 %v1045, 0.5
    %v1048 = vmul.f32 %v1046, %v1035
    %v1049 = vadd.f32 %v896, %v1048
    %v1050 = vtanh.pop %v1049
    %v1051 = vsub.f32 1.0, %v1047
    %v1052 = vmul.f32 %v1051, %v1050
    %v1053 = vmul.f32 %v1047, %v560
    %v1054 = vadd.f32 %v1052, %v1053
    %v1055 = vmul.f32 %v892, %v1054
    %v1056 = vmul.f32 %v893, %v560
    %v1057 = vadd.f32 %v1055, %v1056
    %v1059 = vsel %vm396, %v889, 0
    %1061 = vmatprep.subr.mxu0 %v358
    %1062 = vmatpush1.msra.mxu0 %v357
    %1063 = vmatprep.subr.mxu0 %v362
    %1064 = vmatpush1.msra.mxu0 %v361
    %1065 = vmatprep.subr.mxu0 %v366
    %1066 = vmatpush1.msra.mxu0 %v365
    %1067 = vmatprep.subr.mxu0 %v370
    %1068 = vmatpush1.msra.mxu0 %v369
    %1069 = vmatprep.subr.mxu0 0.0
    %1070 = vmatpush1.msra.mxu0 0.0
    %1071 = vmatprep.subr.mxu0 0.0
    %1072 = vmatpush1.msra.mxu0 0.0
    %1073 = vmatprep.subr.mxu0 0.0
    %1074 = vmatpush1.msra.mxu0 0.0
    %1075 = vmatprep.subr.mxu0 0.0
    %1076 = vmatpush1.msra.mxu0 0.0
    %1077 = vmatprep.subr.mxu0 0.0
    %1078 = vmatpush1.msra.mxu0 0.0
    %1079 = vmatprep.subr.mxu0 0.0
    %1080 = vmatpush1.msra.mxu0 0.0
    %1081 = vmatprep.subr.mxu0 0.0
    %1082 = vmatpush1.msra.mxu0 0.0
    %1083 = vmatprep.subr.mxu0 0.0
    %1084 = vmatpush1.msra.mxu0 0.0
    %1085 = vmatprep.subr.mxu0 0.0
    %1086 = vmatpush1.msra.mxu0 0.0
    %1087 = vmatprep.subr.mxu0 0.0
    %1088 = vmatpush1.msra.mxu0 0.0
    %1089 = vmatprep.subr.mxu0 0.0
    %1090 = vmatpush1.msra.mxu0 0.0
    %1091 = vmatprep.subr.mxu0 0.0
    %1092 = vmatpush1.msra.mxu0 0.0
    %1093 = vmatprep.subr.mxu0 0.0
    %1094 = vmatpush1.msra.mxu0 0.0
    %1095 = vmatprep.subr.mxu0 0.0
    %1096 = vmatpush1.msra.mxu0 0.0
    %1097 = vmatprep.subr.mxu0 0.0
    %1098 = vmatpush1.msra.mxu0 0.0
    %1099 = vmatprep.subr.mxu0 0.0
    %1100 = vmatpush1.msra.mxu0 0.0
    %1101 = vmatprep.subr.mxu0 0.0
    %1102 = vmatpush1.msra.mxu0 0.0
    %1103 = vmatprep.subr.mxu0 0.0
    %1104 = vmatpush1.msra.mxu0 0.0
    %1105 = vmatprep.subr.mxu0 0.0
    %1106 = vmatpush1.msra.mxu0 0.0
    %1107 = vmatprep.subr.mxu0 0.0
    %1108 = vmatpush1.msra.mxu0 0.0
    %1109 = vmatprep.subr.mxu0 0.0
    %1110 = vmatpush1.msra.mxu0 0.0
    %1111 = vmatprep.subr.mxu0 0.0
    %1112 = vmatpush1.msra.mxu0 0.0
    %1113 = vmatprep.subr.mxu0 0.0
    %1114 = vmatpush1.msra.mxu0 0.0
    %1115 = vmatprep.subr.mxu0 0.0
    %1116 = vmatpush1.msra.mxu0 0.0
    %1117 = vmatprep.subr.mxu0 0.0
    %1118 = vmatpush1.msra.mxu0 0.0
    %1119 = vmatprep.subr.mxu0 0.0
    %1120 = vmatpush1.msra.mxu0 0.0
    %1121 = vmatprep.subr.mxu0 0.0
    %1122 = vmatpush1.msra.mxu0 0.0
    %1123 = vmatprep.subr.mxu0 0.0
    %1124 = vmatpush1.msra.mxu0 0.0
    %1125 = vmatprep.mubr.f32.mxu0 0.0
    %1126 = vmatmul.mubr.f32.gmra.mrb[0].mxu0 %v1059
    %v1127 = vpop.f32.mrb[0].mxu0
    %v1128 = vadd.f32 0.0, %v1127
    %v1129 = vpop.f32.mrb[0].mxu0
    %v1130 = vadd.f32 0.0, %v1129
    %1131 = vdwg.mxu0
    %1132 = vmatprep.subr.mxu0 %v360
    %1133 = vmatpush1.msra.mxu0 %v359
    %1134 = vmatprep.subr.mxu0 %v364
    %1135 = vmatpush1.msra.mxu0 %v363
    %1136 = vmatprep.subr.mxu0 %v368
    %1137 = vmatpush1.msra.mxu0 %v367
    %1138 = vmatprep.subr.mxu0 %v372
    %1139 = vmatpush1.msra.mxu0 %v371
    %1140 = vmatprep.subr.mxu0 0.0
    %1141 = vmatpush1.msra.mxu0 0.0
    %1142 = vmatprep.subr.mxu0 0.0
    %1143 = vmatpush1.msra.mxu0 0.0
    %1144 = vmatprep.subr.mxu0 0.0
    %1145 = vmatpush1.msra.mxu0 0.0
    %1146 = vmatprep.subr.mxu0 0.0
    %1147 = vmatpush1.msra.mxu0 0.0
    %1148 = vmatprep.subr.mxu0 0.0
    %1149 = vmatpush1.msra.mxu0 0.0
    %1150 = vmatprep.subr.mxu0 0.0
    %1151 = vmatpush1.msra.mxu0 0.0
    %1152 = vmatprep.subr.mxu0 0.0
    %1153 = vmatpush1.msra.mxu0 0.0
    %1154 = vmatprep.subr.mxu0 0.0
    %1155 = vmatpush1.msra.mxu0 0.0
    %1156 = vmatprep.subr.mxu0 0.0
    %1157 = vmatpush1.msra.mxu0 0.0
    %1158 = vmatprep.subr.mxu0 0.0
    %1159 = vmatpush1.msra.mxu0 0.0
    %1160 = vmatprep.subr.mxu0 0.0
    %1161 = vmatpush1.msra.mxu0 0.0
    %1162 = vmatprep.subr.mxu0 0.0
    %1163 = vmatpush1.msra.mxu0 0.0
    %1164 = vmatprep.subr.mxu0 0.0
    %1165 = vmatpush1.msra.mxu0 0.0
    %1166 = vmatprep.subr.mxu0 0.0
    %1167 = vmatpush1.msra.mxu0 0.0
    %1168 = vmatprep.subr.mxu0 0.0
    %1169 = vmatpush1.msra.mxu0 0.0
    %1170 = vmatprep.subr.mxu0 0.0
    %1171 = vmatpush1.msra.mxu0 0.0
    %1172 = vmatprep.subr.mxu0 0.0
    %1173 = vmatpush1.msra.mxu0 0.0
    %1174 = vmatprep.subr.mxu0 0.0
    %1175 = vmatpush1.msra.mxu0 0.0
    %1176 = vmatprep.subr.mxu0 0.0
    %1177 = vmatpush1.msra.mxu0 0.0
    %1178 = vmatprep.subr.mxu0 0.0
    %1179 = vmatpush1.msra.mxu0 0.0
    %1180 = vmatprep.subr.mxu0 0.0
    %1181 = vmatpush1.msra.mxu0 0.0
    %1182 = vmatprep.subr.mxu0 0.0
    %1183 = vmatpush1.msra.mxu0 0.0
    %1184 = vmatprep.subr.mxu0 0.0
    %1185 = vmatpush1.msra.mxu0 0.0
    %1186 = vmatprep.subr.mxu0 0.0
    %1187 = vmatpush1.msra.mxu0 0.0
    %1188 = vmatprep.subr.mxu0 0.0
    %1189 = vmatpush1.msra.mxu0 0.0
    %1190 = vmatprep.subr.mxu0 0.0
    %1191 = vmatpush1.msra.mxu0 0.0
    %1192 = vmatprep.subr.mxu0 0.0
    %1193 = vmatpush1.msra.mxu0 0.0
    %1194 = vmatprep.subr.mxu0 0.0
    %1195 = vmatpush1.msra.mxu0 0.0
    %1196 = vmatprep.mubr.f32.mxu0 0.0
    %1197 = vmatmul.mubr.f32.gmra.mrb[0].mxu0 %v1059
    %v1198 = vpop.f32.mrb[0].mxu0
    %v1199 = vadd.f32 0.0, %v1198
    %v1200 = vpop.f32.mrb[0].mxu0
    %v1201 = vadd.f32 0.0, %v1200
    %1202 = vdwg.mxu0
    %v1204 = vsel %vm396, %v1057, 0
    %1206 = vmatprep.subr.mxu0 %v342
    %1207 = vmatpush1.msra.mxu0 %v341
    %1208 = vmatprep.subr.mxu0 %v346
    %1209 = vmatpush1.msra.mxu0 %v345
    %1210 = vmatprep.subr.mxu0 %v350
    %1211 = vmatpush1.msra.mxu0 %v349
    %1212 = vmatprep.subr.mxu0 %v354
    %1213 = vmatpush1.msra.mxu0 %v353
    %1214 = vmatprep.subr.mxu0 0.0
    %1215 = vmatpush1.msra.mxu0 0.0
    %1216 = vmatprep.subr.mxu0 0.0
    %1217 = vmatpush1.msra.mxu0 0.0
    %1218 = vmatprep.subr.mxu0 0.0
    %1219 = vmatpush1.msra.mxu0 0.0
    %1220 = vmatprep.subr.mxu0 0.0
    %1221 = vmatpush1.msra.mxu0 0.0
    %1222 = vmatprep.subr.mxu0 0.0
    %1223 = vmatpush1.msra.mxu0 0.0
    %1224 = vmatprep.subr.mxu0 0.0
    %1225 = vmatpush1.msra.mxu0 0.0
    %1226 = vmatprep.subr.mxu0 0.0
    %1227 = vmatpush1.msra.mxu0 0.0
    %1228 = vmatprep.subr.mxu0 0.0
    %1229 = vmatpush1.msra.mxu0 0.0
    %1230 = vmatprep.subr.mxu0 0.0
    %1231 = vmatpush1.msra.mxu0 0.0
    %1232 = vmatprep.subr.mxu0 0.0
    %1233 = vmatpush1.msra.mxu0 0.0
    %1234 = vmatprep.subr.mxu0 0.0
    %1235 = vmatpush1.msra.mxu0 0.0
    %1236 = vmatprep.subr.mxu0 0.0
    %1237 = vmatpush1.msra.mxu0 0.0
    %1238 = vmatprep.subr.mxu0 0.0
    %1239 = vmatpush1.msra.mxu0 0.0
    %1240 = vmatprep.subr.mxu0 0.0
    %1241 = vmatpush1.msra.mxu0 0.0
    %1242 = vmatprep.subr.mxu0 0.0
    %1243 = vmatpush1.msra.mxu0 0.0
    %1244 = vmatprep.subr.mxu0 0.0
    %1245 = vmatpush1.msra.mxu0 0.0
    %1246 = vmatprep.subr.mxu0 0.0
    %1247 = vmatpush1.msra.mxu0 0.0
    %1248 = vmatprep.subr.mxu0 0.0
    %1249 = vmatpush1.msra.mxu0 0.0
    %1250 = vmatprep.subr.mxu0 0.0
    %1251 = vmatpush1.msra.mxu0 0.0
    %1252 = vmatprep.subr.mxu0 0.0
    %1253 = vmatpush1.msra.mxu0 0.0
    %1254 = vmatprep.subr.mxu0 0.0
    %1255 = vmatpush1.msra.mxu0 0.0
    %1256 = vmatprep.subr.mxu0 0.0
    %1257 = vmatpush1.msra.mxu0 0.0
    %1258 = vmatprep.subr.mxu0 0.0
    %1259 = vmatpush1.msra.mxu0 0.0
    %1260 = vmatprep.subr.mxu0 0.0
    %1261 = vmatpush1.msra.mxu0 0.0
    %1262 = vmatprep.subr.mxu0 0.0
    %1263 = vmatpush1.msra.mxu0 0.0
    %1264 = vmatprep.subr.mxu0 0.0
    %1265 = vmatpush1.msra.mxu0 0.0
    %1266 = vmatprep.subr.mxu0 0.0
    %1267 = vmatpush1.msra.mxu0 0.0
    %1268 = vmatprep.subr.mxu0 0.0
    %1269 = vmatpush1.msra.mxu0 0.0
    %1270 = vmatprep.mubr.f32.mxu0 0.0
    %1271 = vmatmul.mubr.f32.gmra.mrb[0].mxu0 %v1204
    %v1272 = vpop.f32.mrb[0].mxu0
    %v1273 = vadd.f32 %v1128, %v1272
    %v1274 = vpop.f32.mrb[0].mxu0
    %v1275 = vadd.f32 %v1130, %v1274
    %1276 = vdwg.mxu0
    %1277 = vmatprep.subr.mxu0 %v344
    %1278 = vmatpush1.msra.mxu0 %v343
    %1279 = vmatprep.subr.mxu0 %v348
    %1280 = vmatpush1.msra.mxu0 %v347
    %1281 = vmatprep.subr.mxu0 %v352
    %1282 = vmatpush1.msra.mxu0 %v351
    %1283 = vmatprep.subr.mxu0 %v356
    %1284 = vmatpush1.msra.mxu0 %v355
    %1285 = vmatprep.subr.mxu0 0.0
    %1286 = vmatpush1.msra.mxu0 0.0
    %1287 = vmatprep.subr.mxu0 0.0
    %1288 = vmatpush1.msra.mxu0 0.0
    %1289 = vmatprep.subr.mxu0 0.0
    %1290 = vmatpush1.msra.mxu0 0.0
    %1291 = vmatprep.subr.mxu0 0.0
    %1292 = vmatpush1.msra.mxu0 0.0
    %1293 = vmatprep.subr.mxu0 0.0
    %1294 = vmatpush1.msra.mxu0 0.0
    %1295 = vmatprep.subr.mxu0 0.0
    %1296 = vmatpush1.msra.mxu0 0.0
    %1297 = vmatprep.subr.mxu0 0.0
    %1298 = vmatpush1.msra.mxu0 0.0
    %1299 = vmatprep.subr.mxu0 0.0
    %1300 = vmatpush1.msra.mxu0 0.0
    %1301 = vmatprep.subr.mxu0 0.0
    %1302 = vmatpush1.msra.mxu0 0.0
    %1303 = vmatprep.subr.mxu0 0.0
    %1304 = vmatpush1.msra.mxu0 0.0
    %1305 = vmatprep.subr.mxu0 0.0
    %1306 = vmatpush1.msra.mxu0 0.0
    %1307 = vmatprep.subr.mxu0 0.0
    %1308 = vmatpush1.msra.mxu0 0.0
    %1309 = vmatprep.subr.mxu0 0.0
    %1310 = vmatpush1.msra.mxu0 0.0
    %1311 = vmatprep.subr.mxu0 0.0
    %1312 = vmatpush1.msra.mxu0 0.0
    %1313 = vmatprep.subr.mxu0 0.0
    %1314 = vmatpush1.msra.mxu0 0.0
    %1315 = vmatprep.subr.mxu0 0.0
    %1316 = vmatpush1.msra.mxu0 0.0
    %1317 = vmatprep.subr.mxu0 0.0
    %1318 = vmatpush1.msra.mxu0 0.0
    %1319 = vmatprep.subr.mxu0 0.0
    %1320 = vmatpush1.msra.mxu0 0.0
    %1321 = vmatprep.subr.mxu0 0.0
    %1322 = vmatpush1.msra.mxu0 0.0
    %1323 = vmatprep.subr.mxu0 0.0
    %1324 = vmatpush1.msra.mxu0 0.0
    %1325 = vmatprep.subr.mxu0 0.0
    %1326 = vmatpush1.msra.mxu0 0.0
    %1327 = vmatprep.subr.mxu0 0.0
    %1328 = vmatpush1.msra.mxu0 0.0
    %1329 = vmatprep.subr.mxu0 0.0
    %1330 = vmatpush1.msra.mxu0 0.0
    %1331 = vmatprep.subr.mxu0 0.0
    %1332 = vmatpush1.msra.mxu0 0.0
    %1333 = vmatprep.subr.mxu0 0.0
    %1334 = vmatpush1.msra.mxu0 0.0
    %1335 = vmatprep.subr.mxu0 0.0
    %1336 = vmatpush1.msra.mxu0 0.0
    %1337 = vmatprep.subr.mxu0 0.0
    %1338 = vmatpush1.msra.mxu0 0.0
    %1339 = vmatprep.subr.mxu0 0.0
    %1340 = vmatpush1.msra.mxu0 0.0
    %1341 = vmatprep.mubr.f32.mxu0 0.0
    %1342 = vmatmul.mubr.f32.gmra.mrb[0].mxu0 %v1204
    %v1343 = vpop.f32.mrb[0].mxu0
    %v1344 = vadd.f32 %v1199, %v1343
    %v1345 = vpop.f32.mrb[0].mxu0
    %v1346 = vadd.f32 %v1201, %v1345
    %1347 = vdwg.mxu0
    %v1348 = vadd.f32 %v1273, %v852
    %v1349 = vadd.f32 %v1275, %v856
    %v1350 = vadd.f32 %v1344, %v860
    %v1351 = vadd.f32 %v1346, %v864
    %v1352 = vmul.f32 %v1348, 0.5
    %v1353 = vmul.f32 %v1349, 0.5
    %v1354 = vtanh.pop %v1352
    %v1355 = vtanh.pop %v1353
    %v1356 = vmul.f32 %v1354, 0.5
    %v1357 = vmul.f32 %v1355, 0.5
    %v1358 = vadd.f32 %v1356, 0.5
    %v1359 = vadd.f32 %v1357, 0.5
    %v1360 = vmul.f32 %v1358, %v1351
    %v1361 = vadd.f32 %v1350, %v1360
    %v1362 = vtanh.pop %v1361
    %v1363 = vsub.f32 1.0, %v1359
    %v1364 = vmul.f32 %v1363, %v1362
    %v1365 = vmul.f32 %v1359, %v889
    %v1366 = vadd.f32 %v1364, %v1365
    %v1367 = vmul.f32 %v892, %v1366
    %v1368 = vmul.f32 %v893, %v889
    %v1369 = vadd.f32 %v1367, %v1368
    %v1370 = vmul.f32 %v892, %v1369
    %1371 = vst [vmem:[#allocation3 + $0x8] sm:$0xff] %v1370
    %v1372 = vld [vmem:[%s1 + $0x10] sm:$0xff]
    %v1373 = vsub.f32 1.0, %v1372
    %v1374 = vld [vmem:[#allocation2 + $0x30] sm:$0xff]
    %v1375 = vld [vmem:[#allocation2 + $0x38] sm:$0xff]
    %v1376 = vld [vmem:[#allocation2 + $0x40] sm:$0xff]
    %1377 = vmatprep.subr.mxu0 %v330
    %1378 = vmatpush1.msra.mxu0 %v329
    %1379 = vmatprep.subr.mxu0 %v333
    %1380 = vmatpush1.msra.mxu0 %v332
    %1381 = vmatprep.subr.mxu0 %v336
    %1382 = vmatpush1.msra.mxu0 %v335
    %1383 = vmatprep.subr.mxu0 %v339
    %1384 = vmatpush1.msra.mxu0 %v338
    %1385 = vmatprep.subr.mxu0 0.0
    %1386 = vmatpush1.msra.mxu0 0.0
    %1387 = vmatprep.subr.mxu0 0.0
    %1388 = vmatpush1.msra.mxu0 0.0
    %1389 = vmatprep.subr.mxu0 0.0
    %1390 = vmatpush1.msra.mxu0 0.0
    %1391 = vmatprep.subr.mxu0 0.0
    %1392 = vmatpush1.msra.mxu0 0.0
    %1393 = vmatprep.subr.mxu0 0.0
    %1394 = vmatpush1.msra.mxu0 0.0
    %1395 = vmatprep.subr.mxu0 0.0
    %1396 = vmatpush1.msra.mxu0 0.0
    %1397 = vmatprep.subr.mxu0 0.0
    %1398 = vmatpush1.msra.mxu0 0.0
    %1399 = vmatprep.subr.mxu0 0.0
    %1400 = vmatpush1.msra.mxu0 0.0
    %1401 = vmatprep.subr.mxu0 0.0
    %1402 = vmatpush1.msra.mxu0 0.0
    %1403 = vmatprep.subr.mxu0 0.0
    %1404 = vmatpush1.msra.mxu0 0.0
    %1405 = vmatprep.subr.mxu0 0.0
    %1406 = vmatpush1.msra.mxu0 0.0
    %1407 = vmatprep.subr.mxu0 0.0
    %1408 = vmatpush1.msra.mxu0 0.0
    %1409 = vmatprep.subr.mxu0 0.0
    %1410 = vmatpush1.msra.mxu0 0.0
    %1411 = vmatprep.subr.mxu0 0.0
    %1412 = vmatpush1.msra.mxu0 0.0
    %1413 = vmatprep.subr.mxu0 0.0
    %1414 = vmatpush1.msra.mxu0 0.0
    %1415 = vmatprep.subr.mxu0 0.0
    %1416 = vmatpush1.msra.mxu0 0.0
    %1417 = vmatprep.subr.mxu0 0.0
    %1418 = vmatpush1.msra.mxu0 0.0
    %1419 = vmatprep.subr.mxu0 0.0
    %1420 = vmatpush1.msra.mxu0 0.0
    %1421 = vmatprep.subr.mxu0 0.0
    %1422 = vmatpush1.msra.mxu0 0.0
    %1423 = vmatprep.subr.mxu0 0.0
    %1424 = vmatpush1.msra.mxu0 0.0
    %1425 = vmatprep.subr.mxu0 0.0
    %1426 = vmatpush1.msra.mxu0 0.0
    %1427 = vmatprep.subr.mxu0 0.0
    %1428 = vmatpush1.msra.mxu0 0.0
    %1429 = vmatprep.subr.mxu0 0.0
    %1430 = vmatpush1.msra.mxu0 0.0
    %1431 = vmatprep.subr.mxu0 0.0
    %1432 = vmatpush1.msra.mxu0 0.0
    %1433 = vmatprep.subr.mxu0 0.0
    %1434 = vmatpush1.msra.mxu0 0.0
    %1435 = vmatprep.subr.mxu0 0.0
    %1436 = vmatpush1.msra.mxu0 0.0
    %1437 = vmatprep.subr.mxu0 0.0
    %1438 = vmatpush1.msra.mxu0 0.0
    %1439 = vmatprep.subr.mxu0 0.0
    %1440 = vmatpush1.msra.mxu0 0.0
    %1441 = vmatprep.mubr.f32.mxu0 0.0
    %1442 = vmatmul.mubr.f32.gmra.mrb[0].mxu0 %v1204
    %v1443 = vpop.f32.mrb[0].mxu0
    %v1444 = vadd.f32 %v384, %v1443
    %v1445 = vpop.f32.mrb[0].mxu0
    %v1446 = vadd.f32 %v388, %v1445
    %1447 = vdwg.mxu0
    %1448 = vmatprep.subr.mxu0 0.0
    %1449 = vmatpush1.msra.mxu0 %v331
    %1450 = vmatprep.subr.mxu0 0.0
    %1451 = vmatpush1.msra.mxu0 %v334
    %1452 = vmatprep.subr.mxu0 0.0
    %1453 = vmatpush1.msra.mxu0 %v337
    %1454 = vmatprep.subr.mxu0 0.0
    %1455 = vmatpush1.msra.mxu0 %v340
    %1456 = vmatprep.subr.mxu0 0.0
    %1457 = vmatpush1.msra.mxu0 0.0
    %1458 = vmatprep.subr.mxu0 0.0
    %1459 = vmatpush1.msra.mxu0 0.0
    %1460 = vmatprep.subr.mxu0 0.0
    %1461 = vmatpush1.msra.mxu0 0.0
    %1462 = vmatprep.subr.mxu0 0.0
    %1463 = vmatpush1.msra.mxu0 0.0
    %1464 = vmatprep.subr.mxu0 0.0
    %1465 = vmatpush1.msra.mxu0 0.0
    %1466 = vmatprep.subr.mxu0 0.0
    %1467 = vmatpush1.msra.mxu0 0.0
    %1468 = vmatprep.subr.mxu0 0.0
    %1469 = vmatpush1.msra.mxu0 0.0
    %1470 = vmatprep.subr.mxu0 0.0
    %1471 = vmatpush1.msra.mxu0 0.0
    %1472 = vmatprep.subr.mxu0 0.0
    %1473 = vmatpush1.msra.mxu0 0.0
    %1474 = vmatprep.subr.mxu0 0.0
    %1475 = vmatpush1.msra.mxu0 0.0
    %1476 = vmatprep.subr.mxu0 0.0
    %1477 = vmatpush1.msra.mxu0 0.0
    %1478 = vmatprep.subr.mxu0 0.0
    %1479 = vmatpush1.msra.mxu0 0.0
    %1480 = vmatprep.subr.mxu0 0.0
    %1481 = vmatpush1.msra.mxu0 0.0
    %1482 = vmatprep.subr.mxu0 0.0
    %1483 = vmatpush1.msra.mxu0 0.0
    %1484 = vmatprep.subr.mxu0 0.0
    %1485 = vmatpush1.msra.mxu0 0.0
    %1486 = vmatprep.subr.mxu0 0.0
    %1487 = vmatpush1.msra.mxu0 0.0
    %1488 = vmatprep.subr.mxu0 0.0
    %1489 = vmatpush1.msra.mxu0 0.0
    %1490 = vmatprep.subr.mxu0 0.0
    %1491 = vmatpush1.msra.mxu0 0.0
    %1492 = vmatprep.subr.mxu0 0.0
    %1493 = vmatpush1.msra.mxu0 0.0
    %1494 = vmatprep.subr.mxu0 0.0
    %1495 = vmatpush1.msra.mxu0 0.0
    %1496 = vmatprep.subr.mxu0 0.0
    %1497 = vmatpush1.msra.mxu0 0.0
    %1498 = vmatprep.subr.mxu0 0.0
    %1499 = vmatpush1.msra.mxu0 0.0
    %1500 = vmatprep.subr.mxu0 0.0
    %1501 = vmatpush1.msra.mxu0 0.0
    %1502 = vmatprep.subr.mxu0 0.0
    %1503 = vmatpush1.msra.mxu0 0.0
    %1504 = vmatprep.subr.mxu0 0.0
    %1505 = vmatpush1.msra.mxu0 0.0
    %1506 = vmatprep.subr.mxu0 0.0
    %1507 = vmatpush1.msra.mxu0 0.0
    %1508 = vmatprep.subr.mxu0 0.0
    %1509 = vmatpush1.msra.mxu0 0.0
    %1510 = vmatprep.subr.mxu0 0.0
    %1511 = vmatpush1.msra.mxu0 0.0
    %1512 = vmatprep.mubr.f32.mxu0 0.0
    %1513 = vmatmul.mubr.f32.gmra.mrb[0].mxu0 %v1204
    %v1514 = vpop.f32.mrb[0].mxu0
    %v1515 = vadd.f32 %v392, %v1514
    %v1516 = vpop.f32.mrb[0].mxu0
    %1517 = vdwg.mxu0
    %v1518 = vadd.f32 %v1374, %v1444
    %v1519 = vadd.f32 %v1375, %v1446
    %v1520 = vmul.f32 %v1518, 0.5
    %v1521 = vmul.f32 %v1519, 0.5
    %v1522 = vtanh.pop %v1520
    %v1523 = vtanh.pop %v1521
    %v1524 = vmul.f32 %v1522, 0.5
    %v1525 = vmul.f32 %v1523, 0.5
    %v1526 = vadd.f32 %v1524, 0.5
    %v1527 = vadd.f32 %v1525, 0.5
    %v1528 = vmul.f32 %v1526, %v1515
    %v1529 = vadd.f32 %v1376, %v1528
    %v1530 = vtanh.pop %v1529
    %v1531 = vsub.f32 1.0, %v1527
    %v1532 = vmul.f32 %v1531, %v1530
    %v1533 = vmul.f32 %v1527, %v1057
    %v1534 = vadd.f32 %v1532, %v1533
    %v1535 = vmul.f32 %v1372, %v1534
    %v1536 = vmul.f32 %v1373, %v1057
    %v1537 = vadd.f32 %v1535, %v1536
    %v1539 = vsel %vm396, %v1369, 0
    %1541 = vmatprep.subr.mxu0 %v358
    %1542 = vmatpush1.msra.mxu0 %v357
    %1543 = vmatprep.subr.mxu0 %v362
    %1544 = vmatpush1.msra.mxu0 %v361
    %1545 = vmatprep.subr.mxu0 %v366
    %1546 = vmatpush1.msra.mxu0 %v365
    %1547 = vmatprep.subr.mxu0 %v370
    %1548 = vmatpush1.msra.mxu0 %v369
    %1549 = vmatprep.subr.mxu0 0.0
    %1550 = vmatpush1.msra.mxu0 0.0
    %1551 = vmatprep.subr.mxu0 0.0
    %1552 = vmatpush1.msra.mxu0 0.0
    %1553 = vmatprep.subr.mxu0 0.0
    %1554 = vmatpush1.msra.mxu0 0.0
    %1555 = vmatprep.subr.mxu0 0.0
    %1556 = vmatpush1.msra.mxu0 0.0
    %1557 = vmatprep.subr.mxu0 0.0
    %1558 = vmatpush1.msra.mxu0 0.0
    %1559 = vmatprep.subr.mxu0 0.0
    %1560 = vmatpush1.msra.mxu0 0.0
    %1561 = vmatprep.subr.mxu0 0.0
    %1562 = vmatpush1.msra.mxu0 0.0
    %1563 = vmatprep.subr.mxu0 0.0
    %1564 = vmatpush1.msra.mxu0 0.0
    %1565 = vmatprep.subr.mxu0 0.0
    %1566 = vmatpush1.msra.mxu0 0.0
    %1567 = vmatprep.subr.mxu0 0.0
    %1568 = vmatpush1.msra.mxu0 0.0
    %1569 = vmatprep.subr.mxu0 0.0
    %1570 = vmatpush1.msra.mxu0 0.0
    %1571 = vmatprep.subr.mxu0 0.0
    %1572 = vmatpush1.msra.mxu0 0.0
    %1573 = vmatprep.subr.mxu0 0.0
    %1574 = vmatpush1.msra.mxu0 0.0
    %1575 = vmatprep.subr.mxu0 0.0
    %1576 = vmatpush1.msra.mxu0 0.0
    %1577 = vmatprep.subr.mxu0 0.0
    %1578 = vmatpush1.msra.mxu0 0.0
    %1579 = vmatprep.subr.mxu0 0.0
    %1580 = vmatpush1.msra.mxu0 0.0
    %1581 = vmatprep.subr.mxu0 0.0
    %1582 = vmatpush1.msra.mxu0 0.0
    %1583 = vmatprep.subr.mxu0 0.0
    %1584 = vmatpush1.msra.mxu0 0.0
    %1585 = vmatprep.subr.mxu0 0.0
    %1586 = vmatpush1.msra.mxu0 0.0
    %1587 = vmatprep.subr.mxu0 0.0
    %1588 = vmatpush1.msra.mxu0 0.0
    %1589 = vmatprep.subr.mxu0 0.0
    %1590 = vmatpush1.msra.mxu0 0.0
    %1591 = vmatprep.subr.mxu0 0.0
    %1592 = vmatpush1.msra.mxu0 0.0
    %1593 = vmatprep.subr.mxu0 0.0
    %1594 = vmatpush1.msra.mxu0 0.0
    %1595 = vmatprep.subr.mxu0 0.0
    %1596 = vmatpush1.msra.mxu0 0.0
    %1597 = vmatprep.subr.mxu0 0.0
    %1598 = vmatpush1.msra.mxu0 0.0
    %1599 = vmatprep.subr.mxu0 0.0
    %1600 = vmatpush1.msra.mxu0 0.0
    %1601 = vmatprep.subr.mxu0 0.0
    %1602 = vmatpush1.msra.mxu0 0.0
    %1603 = vmatprep.subr.mxu0 0.0
    %1604 = vmatpush1.msra.mxu0 0.0
    %1605 = vmatprep.mubr.f32.mxu0 0.0
    %1606 = vmatmul.mubr.f32.gmra.mrb[0].mxu0 %v1539
    %v1607 = vpop.f32.mrb[0].mxu0
    %v1608 = vadd.f32 0.0, %v1607
    %v1609 = vpop.f32.mrb[0].mxu0
    %v1610 = vadd.f32 0.0, %v1609
    %1611 = vdwg.mxu0
    %1612 = vmatprep.subr.mxu0 %v360
    %1613 = vmatpush1.msra.mxu0 %v359
    %1614 = vmatprep.subr.mxu0 %v364
    %1615 = vmatpush1.msra.mxu0 %v363
    %1616 = vmatprep.subr.mxu0 %v368
    %1617 = vmatpush1.msra.mxu0 %v367
    %1618 = vmatprep.subr.mxu0 %v372
    %1619 = vmatpush1.msra.mxu0 %v371
    %1620 = vmatprep.subr.mxu0 0.0
    %1621 = vmatpush1.msra.mxu0 0.0
    %1622 = vmatprep.subr.mxu0 0.0
    %1623 = vmatpush1.msra.mxu0 0.0
    %1624 = vmatprep.subr.mxu0 0.0
    %1625 = vmatpush1.msra.mxu0 0.0
    %1626 = vmatprep.subr.mxu0 0.0
    %1627 = vmatpush1.msra.mxu0 0.0
    %1628 = vmatprep.subr.mxu0 0.0
    %1629 = vmatpush1.msra.mxu0 0.0
    %1630 = vmatprep.subr.mxu0 0.0
    %1631 = vmatpush1.msra.mxu0 0.0
    %1632 = vmatprep.subr.mxu0 0.0
    %1633 = vmatpush1.msra.mxu0 0.0
    %1634 = vmatprep.subr.mxu0 0.0
    %1635 = vmatpush1.msra.mxu0 0.0
    %1636 = vmatprep.subr.mxu0 0.0
    %1637 = vmatpush1.msra.mxu0 0.0
    %1638 = vmatprep.subr.mxu0 0.0
    %1639 = vmatpush1.msra.mxu0 0.0
    %1640 = vmatprep.subr.mxu0 0.0
    %1641 = vmatpush1.msra.mxu0 0.0
    %1642 = vmatprep.subr.mxu0 0.0
    %1643 = vmatpush1.msra.mxu0 0.0
    %1644 = vmatprep.subr.mxu0 0.0
    %1645 = vmatpush1.msra.mxu0 0.0
    %1646 = vmatprep.subr.mxu0 0.0
    %1647 = vmatpush1.msra.mxu0 0.0
    %1648 = vmatprep.subr.mxu0 0.0
    %1649 = vmatpush1.msra.mxu0 0.0
    %1650 = vmatprep.subr.mxu0 0.0
    %1651 = vmatpush1.msra.mxu0 0.0
    %1652 = vmatprep.subr.mxu0 0.0
    %1653 = vmatpush1.msra.mxu0 0.0
    %1654 = vmatprep.subr.mxu0 0.0
    %1655 = vmatpush1.msra.mxu0 0.0
    %1656 = vmatprep.subr.mxu0 0.0
    %1657 = vmatpush1.msra.mxu0 0.0
    %1658 = vmatprep.subr.mxu0 0.0
    %1659 = vmatpush1.msra.mxu0 0.0
    %1660 = vmatprep.subr.mxu0 0.0
    %1661 = vmatpush1.msra.mxu0 0.0
    %1662 = vmatprep.subr.mxu0 0.0
    %1663 = vmatpush1.msra.mxu0 0.0
    %1664 = vmatprep.subr.mxu0 0.0
    %1665 = vmatpush1.msra.mxu0 0.0
    %1666 = vmatprep.subr.mxu0 0.0
    %1667 = vmatpush1.msra.mxu0 0.0
    %1668 = vmatprep.subr.mxu0 0.0
    %1669 = vmatpush1.msra.mxu0 0.0
    %1670 = vmatprep.subr.mxu0 0.0
    %1671 = vmatpush1.msra.mxu0 0.0
    %1672 = vmatprep.subr.mxu0 0.0
    %1673 = vmatpush1.msra.mxu0 0.0
    %1674 = vmatprep.subr.mxu0 0.0
    %1675 = vmatpush1.msra.mxu0 0.0
    %1676 = vmatprep.mubr.f32.mxu0 0.0
    %1677 = vmatmul.mubr.f32.gmra.mrb[0].mxu0 %v1539
    %v1678 = vpop.f32.mrb[0].mxu0
    %v1679 = vadd.f32 0.0, %v1678
    %v1680 = vpop.f32.mrb[0].mxu0
    %v1681 = vadd.f32 0.0, %v1680
    %1682 = vdwg.mxu0
    %v1684 = vsel %vm396, %v1537, 0
    %1686 = vmatprep.subr.mxu0 %v342
    %1687 = vmatpush1.msra.mxu0 %v341
    %1688 = vmatprep.subr.mxu0 %v346
    %1689 = vmatpush1.msra.mxu0 %v345
    %1690 = vmatprep.subr.mxu0 %v350
    %1691 = vmatpush1.msra.mxu0 %v349
    %1692 = vmatprep.subr.mxu0 %v354
    %1693 = vmatpush1.msra.mxu0 %v353
    %1694 = vmatprep.subr.mxu0 0.0
    %1695 = vmatpush1.msra.mxu0 0.0
    %1696 = vmatprep.subr.mxu0 0.0
    %1697 = vmatpush1.msra.mxu0 0.0
    %1698 = vmatprep.subr.mxu0 0.0
    %1699 = vmatpush1.msra.mxu0 0.0
    %1700 = vmatprep.subr.mxu0 0.0
    %1701 = vmatpush1.msra.mxu0 0.0
    %1702 = vmatprep.subr.mxu0 0.0
    %1703 = vmatpush1.msra.mxu0 0.0
    %1704 = vmatprep.subr.mxu0 0.0
    %1705 = vmatpush1.msra.mxu0 0.0
    %1706 = vmatprep.subr.mxu0 0.0
    %1707 = vmatpush1.msra.mxu0 0.0
    %1708 = vmatprep.subr.mxu0 0.0
    %1709 = vmatpush1.msra.mxu0 0.0
    %1710 = vmatprep.subr.mxu0 0.0
    %1711 = vmatpush1.msra.mxu0 0.0
    %1712 = vmatprep.subr.mxu0 0.0
    %1713 = vmatpush1.msra.mxu0 0.0
    %1714 = vmatprep.subr.mxu0 0.0
    %1715 = vmatpush1.msra.mxu0 0.0
    %1716 = vmatprep.subr.mxu0 0.0
    %1717 = vmatpush1.msra.mxu0 0.0
    %1718 = vmatprep.subr.mxu0 0.0
    %1719 = vmatpush1.msra.mxu0 0.0
    %1720 = vmatprep.subr.mxu0 0.0
    %1721 = vmatpush1.msra.mxu0 0.0
    %1722 = vmatprep.subr.mxu0 0.0
    %1723 = vmatpush1.msra.mxu0 0.0
    %1724 = vmatprep.subr.mxu0 0.0
    %1725 = vmatpush1.msra.mxu0 0.0
    %1726 = vmatprep.subr.mxu0 0.0
    %1727 = vmatpush1.msra.mxu0 0.0
    %1728 = vmatprep.subr.mxu0 0.0
    %1729 = vmatpush1.msra.mxu0 0.0
    %1730 = vmatprep.subr.mxu0 0.0
    %1731 = vmatpush1.msra.mxu0 0.0
    %1732 = vmatprep.subr.mxu0 0.0
    %1733 = vmatpush1.msra.mxu0 0.0
    %1734 = vmatprep.subr.mxu0 0.0
    %1735 = vmatpush1.msra.mxu0 0.0
    %1736 = vmatprep.subr.mxu0 0.0
    %1737 = vmatpush1.msra.mxu0 0.0
    %1738 = vmatprep.subr.mxu0 0.0
    %1739 = vmatpush1.msra.mxu0 0.0
    %1740 = vmatprep.subr.mxu0 0.0
    %1741 = vmatpush1.msra.mxu0 0.0
    %1742 = vmatprep.subr.mxu0 0.0
    %1743 = vmatpush1.msra.mxu0 0.0
    %1744 = vmatprep.subr.mxu0 0.0
    %1745 = vmatpush1.msra.mxu0 0.0
    %1746 = vmatprep.subr.mxu0 0.0
    %1747 = vmatpush1.msra.mxu0 0.0
    %1748 = vmatprep.subr.mxu0 0.0
    %1749 = vmatpush1.msra.mxu0 0.0
    %1750 = vmatprep.mubr.f32.mxu0 0.0
    %1751 = vmatmul.mubr.f32.gmra.mrb[0].mxu0 %v1684
    %v1752 = vpop.f32.mrb[0].mxu0
    %v1753 = vadd.f32 %v1608, %v1752
    %v1754 = vpop.f32.mrb[0].mxu0
    %v1755 = vadd.f32 %v1610, %v1754
    %1756 = vdwg.mxu0
    %1757 = vmatprep.subr.mxu0 %v344
    %1758 = vmatpush1.msra.mxu0 %v343
    %1759 = vmatprep.subr.mxu0 %v348
    %1760 = vmatpush1.msra.mxu0 %v347
    %1761 = vmatprep.subr.mxu0 %v352
    %1762 = vmatpush1.msra.mxu0 %v351
    %1763 = vmatprep.subr.mxu0 %v356
    %1764 = vmatpush1.msra.mxu0 %v355
    %1765 = vmatprep.subr.mxu0 0.0
    %1766 = vmatpush1.msra.mxu0 0.0
    %1767 = vmatprep.subr.mxu0 0.0
    %1768 = vmatpush1.msra.mxu0 0.0
    %1769 = vmatprep.subr.mxu0 0.0
    %1770 = vmatpush1.msra.mxu0 0.0
    %1771 = vmatprep.subr.mxu0 0.0
    %1772 = vmatpush1.msra.mxu0 0.0
    %1773 = vmatprep.subr.mxu0 0.0
    %1774 = vmatpush1.msra.mxu0 0.0
    %1775 = vmatprep.subr.mxu0 0.0
    %1776 = vmatpush1.msra.mxu0 0.0
    %1777 = vmatprep.subr.mxu0 0.0
    %1778 = vmatpush1.msra.mxu0 0.0
    %1779 = vmatprep.subr.mxu0 0.0
    %1780 = vmatpush1.msra.mxu0 0.0
    %1781 = vmatprep.subr.mxu0 0.0
    %1782 = vmatpush1.msra.mxu0 0.0
    %1783 = vmatprep.subr.mxu0 0.0
    %1784 = vmatpush1.msra.mxu0 0.0
    %1785 = vmatprep.subr.mxu0 0.0
    %1786 = vmatpush1.msra.mxu0 0.0
    %1787 = vmatprep.subr.mxu0 0.0
    %1788 = vmatpush1.msra.mxu0 0.0
    %1789 = vmatprep.subr.mxu0 0.0
    %1790 = vmatpush1.msra.mxu0 0.0
    %1791 = vmatprep.subr.mxu0 0.0
    %1792 = vmatpush1.msra.mxu0 0.0
    %1793 = vmatprep.subr.mxu0 0.0
    %1794 = vmatpush1.msra.mxu0 0.0
    %1795 = vmatprep.subr.mxu0 0.0
    %1796 = vmatpush1.msra.mxu0 0.0
    %1797 = vmatprep.subr.mxu0 0.0
    %1798 = vmatpush1.msra.mxu0 0.0
    %1799 = vmatprep.subr.mxu0 0.0
    %1800 = vmatpush1.msra.mxu0 0.0
    %1801 = vmatprep.subr.mxu0 0.0
    %1802 = vmatpush1.msra.mxu0 0.0
    %1803 = vmatprep.subr.mxu0 0.0
    %1804 = vmatpush1.msra.mxu0 0.0
    %1805 = vmatprep.subr.mxu0 0.0
    %1806 = vmatpush1.msra.mxu0 0.0
    %1807 = vmatprep.subr.mxu0 0.0
    %1808 = vmatpush1.msra.mxu0 0.0
    %1809 = vmatprep.subr.mxu0 0.0
    %1810 = vmatpush1.msra.mxu0 0.0
    %1811 = vmatprep.subr.mxu0 0.0
    %1812 = vmatpush1.msra.mxu0 0.0
    %1813 = vmatprep.subr.mxu0 0.0
    %1814 = vmatpush1.msra.mxu0 0.0
    %1815 = vmatprep.subr.mxu0 0.0
    %1816 = vmatpush1.msra.mxu0 0.0
    %1817 = vmatprep.subr.mxu0 0.0
    %1818 = vmatpush1.msra.mxu0 0.0
    %1819 = vmatprep.subr.mxu0 0.0
    %1820 = vmatpush1.msra.mxu0 0.0
    %1821 = vmatprep.mubr.f32.mxu0 0.0
    %1822 = vmatmul.mubr.f32.gmra.mrb[0].mxu0 %v1684
    %v1823 = vpop.f32.mrb[0].mxu0
    %v1824 = vadd.f32 %v1679, %v1823
    %v1825 = vpop.f32.mrb[0].mxu0
    %v1826 = vadd.f32 %v1681, %v1825
    %1827 = vdwg.mxu0
    %v1828 = vadd.f32 %v1753, %v852
    %v1829 = vadd.f32 %v1755, %v856
    %v1830 = vadd.f32 %v1824, %v860
    %v1831 = vadd.f32 %v1826, %v864
    %v1832 = vmul.f32 %v1828, 0.5
    %v1833 = vmul.f32 %v1829, 0.5
    %v1834 = vtanh.pop %v1832
    %v1835 = vtanh.pop %v1833
    %v1836 = vmul.f32 %v1834, 0.5
    %v1837 = vmul.f32 %v1835, 0.5
    %v1838 = vadd.f32 %v1836, 0.5
    %v1839 = vadd.f32 %v1837, 0.5
    %v1840 = vmul.f32 %v1838, %v1831
    %v1841 = vadd.f32 %v1830, %v1840
    %v1842 = vtanh.pop %v1841
    %v1843 = vsub.f32 1.0, %v1839
    %v1844 = vmul.f32 %v1843, %v1842
    %v1845 = vmul.f32 %v1839, %v1369
    %v1846 = vadd.f32 %v1844, %v1845
    %v1847 = vmul.f32 %v1372, %v1846
    %v1848 = vmul.f32 %v1373, %v1369
    %v1849 = vadd.f32 %v1847, %v1848
    %v1850 = vmul.f32 %v1372, %v1849
    %1851 = vst [vmem:[#allocation3 + $0x10] sm:$0xff] %v1850
    %v1852 = vld [vmem:[%s1 + $0x18] sm:$0xff]
    %v1853 = vsub.f32 1.0, %v1852
    %v1854 = vld [vmem:[#allocation2 + $0x48] sm:$0xff]
    %v1855 = vld [vmem:[#allocation2 + $0x50] sm:$0xff]
    %v1856 = vld [vmem:[#allocation2 + $0x58] sm:$0xff]
    %1857 = vmatprep.subr.mxu0 %v330
    %1858 = vmatpush1.msra.mxu0 %v329
    %1859 = vmatprep.subr.mxu0 %v333
    %1860 = vmatpush1.msra.mxu0 %v332
    %1861 = vmatprep.subr.mxu0 %v336
    %1862 = vmatpush1.msra.mxu0 %v335
    %1863 = vmatprep.subr.mxu0 %v339
    %1864 = vmatpush1.msra.mxu0 %v338
    %1865 = vmatprep.subr.mxu0 0.0
    %1866 = vmatpush1.msra.mxu0 0.0
    %1867 = vmatprep.subr.mxu0 0.0
    %1868 = vmatpush1.msra.mxu0 0.0
    %1869 = vmatprep.subr.mxu0 0.0
    %1870 = vmatpush1.msra.mxu0 0.0
    %1871 = vmatprep.subr.mxu0 0.0
    %1872 = vmatpush1.msra.mxu0 0.0
    %1873 = vmatprep.subr.mxu0 0.0
    %1874 = vmatpush1.msra.mxu0 0.0
    %1875 = vmatprep.subr.mxu0 0.0
    %1876 = vmatpush1.msra.mxu0 0.0
    %1877 = vmatprep.subr.mxu0 0.0
    %1878 = vmatpush1.msra.mxu0 0.0
    %1879 = vmatprep.subr.mxu0 0.0
    %1880 = vmatpush1.msra.mxu0 0.0
    %1881 = vmatprep.subr.mxu0 0.0
    %1882 = vmatpush1.msra.mxu0 0.0
    %1883 = vmatprep.subr.mxu0 0.0
    %1884 = vmatpush1.msra.mxu0 0.0
    %1885 = vmatprep.subr.mxu0 0.0
    %1886 = vmatpush1.msra.mxu0 0.0
    %1887 = vmatprep.subr.mxu0 0.0
    %1888 = vmatpush1.msra.mxu0 0.0
    %1889 = vmatprep.subr.mxu0 0.0
    %1890 = vmatpush1.msra.mxu0 0.0
    %1891 = vmatprep.subr.mxu0 0.0
    %1892 = vmatpush1.msra.mxu0 0.0
    %1893 = vmatprep.subr.mxu0 0.0
    %1894 = vmatpush1.msra.mxu0 0.0
    %1895 = vmatprep.subr.mxu0 0.0
    %1896 = vmatpush1.msra.mxu0 0.0
    %1897 = vmatprep.subr.mxu0 0.0
    %1898 = vmatpush1.msra.mxu0 0.0
    %1899 = vmatprep.subr.mxu0 0.0
    %1900 = vmatpush1.msra.mxu0 0.0
    %1901 = vmatprep.subr.mxu0 0.0
    %1902 = vmatpush1.msra.mxu0 0.0
    %1903 = vmatprep.subr.mxu0 0.0
    %1904 = vmatpush1.msra.mxu0 0.0
    %1905 = vmatprep.subr.mxu0 0.0
    %1906 = vmatpush1.msra.mxu0 0.0
    %1907 = vmatprep.subr.mxu0 0.0
    %1908 = vmatpush1.msra.mxu0 0.0
    %1909 = vmatprep.subr.mxu0 0.0
    %1910 = vmatpush1.msra.mxu0 0.0
    %1911 = vmatprep.subr.mxu0 0.0
    %1912 = vmatpush1.msra.mxu0 0.0
    %1913 = vmatprep.subr.mxu0 0.0
    %1914 = vmatpush1.msra.mxu0 0.0
    %1915 = vmatprep.subr.mxu0 0.0
    %1916 = vmatpush1.msra.mxu0 0.0
    %1917 = vmatprep.subr.mxu0 0.0
    %1918 = vmatpush1.msra.mxu0 0.0
    %1919 = vmatprep.subr.mxu0 0.0
    %1920 = vmatpush1.msra.mxu0 0.0
    %1921 = vmatprep.mubr.f32.mxu0 0.0
    %1922 = vmatmul.mubr.f32.gmra.mrb[0].mxu0 %v1684
    %v1923 = vpop.f32.mrb[0].mxu0
    %v1924 = vadd.f32 %v384, %v1923
    %v1925 = vpop.f32.mrb[0].mxu0
    %v1926 = vadd.f32 %v388, %v1925
    %1927 = vdwg.mxu0
    %1928 = vmatprep.subr.mxu0 0.0
    %1929 = vmatpush1.msra.mxu0 %v331
    %1930 = vmatprep.subr.mxu0 0.0
    %1931 = vmatpush1.msra.mxu0 %v334
    %1932 = vmatprep.subr.mxu0 0.0
    %1933 = vmatpush1.msra.mxu0 %v337
    %1934 = vmatprep.subr.mxu0 0.0
    %1935 = vmatpush1.msra.mxu0 %v340
    %1936 = vmatprep.subr.mxu0 0.0
    %1937 = vmatpush1.msra.mxu0 0.0
    %1938 = vmatprep.subr.mxu0 0.0
    %1939 = vmatpush1.msra.mxu0 0.0
    %1940 = vmatprep.subr.mxu0 0.0
    %1941 = vmatpush1.msra.mxu0 0.0
    %1942 = vmatprep.subr.mxu0 0.0
    %1943 = vmatpush1.msra.mxu0 0.0
    %1944 = vmatprep.subr.mxu0 0.0
    %1945 = vmatpush1.msra.mxu0 0.0
    %1946 = vmatprep.subr.mxu0 0.0
    %1947 = vmatpush1.msra.mxu0 0.0
    %1948 = vmatprep.subr.mxu0 0.0
    %1949 = vmatpush1.msra.mxu0 0.0
    %1950 = vmatprep.subr.mxu0 0.0
    %1951 = vmatpush1.msra.mxu0 0.0
    %1952 = vmatprep.subr.mxu0 0.0
    %1953 = vmatpush1.msra.mxu0 0.0
    %1954 = vmatprep.subr.mxu0 0.0
    %1955 = vmatpush1.msra.mxu0 0.0
    %1956 = vmatprep.subr.mxu0 0.0
    %1957 = vmatpush1.msra.mxu0 0.0
    %1958 = vmatprep.subr.mxu0 0.0
    %1959 = vmatpush1.msra.mxu0 0.0
    %1960 = vmatprep.subr.mxu0 0.0
    %1961 = vmatpush1.msra.mxu0 0.0
    %1962 = vmatprep.subr.mxu0 0.0
    %1963 = vmatpush1.msra.mxu0 0.0
    %1964 = vmatprep.subr.mxu0 0.0
    %1965 = vmatpush1.msra.mxu0 0.0
    %1966 = vmatprep.subr.mxu0 0.0
    %1967 = vmatpush1.msra.mxu0 0.0
    %1968 = vmatprep.subr.mxu0 0.0
    %1969 = vmatpush1.msra.mxu0 0.0
    %1970 = vmatprep.subr.mxu0 0.0
    %1971 = vmatpush1.msra.mxu0 0.0
    %1972 = vmatprep.subr.mxu0 0.0
    %1973 = vmatpush1.msra.mxu0 0.0
    %1974 = vmatprep.subr.mxu0 0.0
    %1975 = vmatpush1.msra.mxu0 0.0
    %1976 = vmatprep.subr.mxu0 0.0
    %1977 = vmatpush1.msra.mxu0 0.0
    %1978 = vmatprep.subr.mxu0 0.0
    %1979 = vmatpush1.msra.mxu0 0.0
    %1980 = vmatprep.subr.mxu0 0.0
    %1981 = vmatpush1.msra.mxu0 0.0
    %1982 = vmatprep.subr.mxu0 0.0
    %1983 = vmatpush1.msra.mxu0 0.0
    %1984 = vmatprep.subr.mxu0 0.0
    %1985 = vmatpush1.msra.mxu0 0.0
    %1986 = vmatprep.subr.mxu0 0.0
    %1987 = vmatpush1.msra.mxu0 0.0
    %1988 = vmatprep.subr.mxu0 0.0
    %1989 = vmatpush1.msra.mxu0 0.0
    %1990 = vmatprep.subr.mxu0 0.0
    %1991 = vmatpush1.msra.mxu0 0.0
    %1992 = vmatprep.mubr.f32.mxu0 0.0
    %1993 = vmatmul.mubr.f32.gmra.mrb[0].mxu0 %v1684
    %v1994 = vpop.f32.mrb[0].mxu0
    %v1995 = vadd.f32 %v392, %v1994
    %v1996 = vpop.f32.mrb[0].mxu0
    %1997 = vdwg.mxu0
    %v1998 = vadd.f32 %v1854, %v1924
    %v1999 = vadd.f32 %v1855, %v1926
    %v2000 = vmul.f32 %v1998, 0.5
    %v2001 = vmul.f32 %v1999, 0.5
    %v2002 = vtanh.pop %v2000
    %v2003 = vtanh.pop %v2001
    %v2004 = vmul.f32 %v2002, 0.5
    %v2005 = vmul.f32 %v2003, 0.5
    %v2006 = vadd.f32 %v2004, 0.5
    %v2007 = vadd.f32 %v2005, 0.5
    %v2008 = vmul.f32 %v2006, %v1995
    %v2009 = vadd.f32 %v1856, %v2008
    %v2010 = vtanh.pop %v2009
    %v2011 = vsub.f32 1.0, %v2007
    %v2012 = vmul.f32 %v2011, %v2010
    %v2013 = vmul.f32 %v2007, %v1537
    %v2014 = vadd.f32 %v2012, %v2013
    %v2015 = vmul.f32 %v1852, %v2014
    %v2016 = vmul.f32 %v1853, %v1537
    %v2017 = vadd.f32 %v2015, %v2016
    %v2019 = vsel %vm396, %v1849, 0
    %2021 = vmatprep.subr.mxu0 %v358
    %2022 = vmatpush1.msra.mxu0 %v357
    %2023 = vmatprep.subr.mxu0 %v362
    %2024 = vmatpush1.msra.mxu0 %v361
    %2025 = vmatprep.subr.mxu0 %v366
    %2026 = vmatpush1.msra.mxu0 %v365
    %2027 = vmatprep.subr.mxu0 %v370
    %2028 = vmatpush1.msra.mxu0 %v369
    %2029 = vmatprep.subr.mxu0 0.0
    %2030 = vmatpush1.msra.mxu0 0.0
    %2031 = vmatprep.subr.mxu0 0.0
    %2032 = vmatpush1.msra.mxu0 0.0
    %2033 = vmatprep.subr.mxu0 0.0
    %2034 = vmatpush1.msra.mxu0 0.0
    %2035 = vmatprep.subr.mxu0 0.0
    %2036 = vmatpush1.msra.mxu0 0.0
    %2037 = vmatprep.subr.mxu0 0.0
    %2038 = vmatpush1.msra.mxu0 0.0
    %2039 = vmatprep.subr.mxu0 0.0
    %2040 = vmatpush1.msra.mxu0 0.0
    %2041 = vmatprep.subr.mxu0 0.0
    %2042 = vmatpush1.msra.mxu0 0.0
    %2043 = vmatprep.subr.mxu0 0.0
    %2044 = vmatpush1.msra.mxu0 0.0
    %2045 = vmatprep.subr.mxu0 0.0
    %2046 = vmatpush1.msra.mxu0 0.0
    %2047 = vmatprep.subr.mxu0 0.0
    %2048 = vmatpush1.msra.mxu0 0.0
    %2049 = vmatprep.subr.mxu0 0.0
    %2050 = vmatpush1.msra.mxu0 0.0
    %2051 = vmatprep.subr.mxu0 0.0
    %2052 = vmatpush1.msra.mxu0 0.0
    %2053 = vmatprep.subr.mxu0 0.0
    %2054 = vmatpush1.msra.mxu0 0.0
    %2055 = vmatprep.subr.mxu0 0.0
    %2056 = vmatpush1.msra.mxu0 0.0
    %2057 = vmatprep.subr.mxu0 0.0
    %2058 = vmatpush1.msra.mxu0 0.0
    %2059 = vmatprep.subr.mxu0 0.0
    %2060 = vmatpush1.msra.mxu0 0.0
    %2061 = vmatprep.subr.mxu0 0.0
    %2062 = vmatpush1.msra.mxu0 0.0
    %2063 = vmatprep.subr.mxu0 0.0
    %2064 = vmatpush1.msra.mxu0 0.0
    %2065 = vmatprep.subr.mxu0 0.0
    %2066 = vmatpush1.msra.mxu0 0.0
    %2067 = vmatprep.subr.mxu0 0.0
    %2068 = vmatpush1.msra.mxu0 0.0
    %2069 = vmatprep.subr.mxu0 0.0
    %2070 = vmatpush1.msra.mxu0 0.0
    %2071 = vmatprep.subr.mxu0 0.0
    %2072 = vmatpush1.msra.mxu0 0.0
    %2073 = vmatprep.subr.mxu0 0.0
    %2074 = vmatpush1.msra.mxu0 0.0
    %2075 = vmatprep.subr.mxu0 0.0
    %2076 = vmatpush1.msra.mxu0 0.0
    %2077 = vmatprep.subr.mxu0 0.0
    %2078 = vmatpush1.msra.mxu0 0.0
    %2079 = vmatprep.subr.mxu0 0.0
    %2080 = vmatpush1.msra.mxu0 0.0
    %2081 = vmatprep.subr.mxu0 0.0
    %2082 = vmatpush1.msra.mxu0 0.0
    %2083 = vmatprep.subr.mxu0 0.0
    %2084 = vmatpush1.msra.mxu0 0.0
    %2085 = vmatprep.mubr.f32.mxu0 0.0
    %2086 = vmatmul.mubr.f32.gmra.mrb[0].mxu0 %v2019
    %v2087 = vpop.f32.mrb[0].mxu0
    %v2088 = vadd.f32 0.0, %v2087
    %v2089 = vpop.f32.mrb[0].mxu0
    %v2090 = vadd.f32 0.0, %v2089
    %2091 = vdwg.mxu0
    %2092 = vmatprep.subr.mxu0 %v360
    %2093 = vmatpush1.msra.mxu0 %v359
    %2094 = vmatprep.subr.mxu0 %v364
    %2095 = vmatpush1.msra.mxu0 %v363
    %2096 = vmatprep.subr.mxu0 %v368
    %2097 = vmatpush1.msra.mxu0 %v367
    %2098 = vmatprep.subr.mxu0 %v372
    %2099 = vmatpush1.msra.mxu0 %v371
    %2100 = vmatprep.subr.mxu0 0.0
    %2101 = vmatpush1.msra.mxu0 0.0
    %2102 = vmatprep.subr.mxu0 0.0
    %2103 = vmatpush1.msra.mxu0 0.0
    %2104 = vmatprep.subr.mxu0 0.0
    %2105 = vmatpush1.msra.mxu0 0.0
    %2106 = vmatprep.subr.mxu0 0.0
    %2107 = vmatpush1.msra.mxu0 0.0
    %2108 = vmatprep.subr.mxu0 0.0
    %2109 = vmatpush1.msra.mxu0 0.0
    %2110 = vmatprep.subr.mxu0 0.0
    %2111 = vmatpush1.msra.mxu0 0.0
    %2112 = vmatprep.subr.mxu0 0.0
    %2113 = vmatpush1.msra.mxu0 0.0
    %2114 = vmatprep.subr.mxu0 0.0
    %2115 = vmatpush1.msra.mxu0 0.0
    %2116 = vmatprep.subr.mxu0 0.0
    %2117 = vmatpush1.msra.mxu0 0.0
    %2118 = vmatprep.subr.mxu0 0.0
    %2119 = vmatpush1.msra.mxu0 0.0
    %2120 = vmatprep.subr.mxu0 0.0
    %2121 = vmatpush1.msra.mxu0 0.0
    %2122 = vmatprep.subr.mxu0 0.0
    %2123 = vmatpush1.msra.mxu0 0.0
    %2124 = vmatprep.subr.mxu0 0.0
    %2125 = vmatpush1.msra.mxu0 0.0
    %2126 = vmatprep.subr.mxu0 0.0
    %2127 = vmatpush1.msra.mxu0 0.0
    %2128 = vmatprep.subr.mxu0 0.0
    %2129 = vmatpush1.msra.mxu0 0.0
    %2130 = vmatprep.subr.mxu0 0.0
    %2131 = vmatpush1.msra.mxu0 0.0
    %2132 = vmatprep.subr.mxu0 0.0
    %2133 = vmatpush1.msra.mxu0 0.0
    %2134 = vmatprep.subr.mxu0 0.0
    %2135 = vmatpush1.msra.mxu0 0.0
    %2136 = vmatprep.subr.mxu0 0.0
    %2137 = vmatpush1.msra.mxu0 0.0
    %2138 = vmatprep.subr.mxu0 0.0
    %2139 = vmatpush1.msra.mxu0 0.0
    %2140 = vmatprep.subr.mxu0 0.0
    %2141 = vmatpush1.msra.mxu0 0.0
    %2142 = vmatprep.subr.mxu0 0.0
    %2143 = vmatpush1.msra.mxu0 0.0
    %2144 = vmatprep.subr.mxu0 0.0
    %2145 = vmatpush1.msra.mxu0 0.0
    %2146 = vmatprep.subr.mxu0 0.0
    %2147 = vmatpush1.msra.mxu0 0.0
    %2148 = vmatprep.subr.mxu0 0.0
    %2149 = vmatpush1.msra.mxu0 0.0
    %2150 = vmatprep.subr.mxu0 0.0
    %2151 = vmatpush1.msra.mxu0 0.0
    %2152 = vmatprep.subr.mxu0 0.0
    %2153 = vmatpush1.msra.mxu0 0.0
    %2154 = vmatprep.subr.mxu0 0.0
    %2155 = vmatpush1.msra.mxu0 0.0
    %2156 = vmatprep.mubr.f32.mxu0 0.0
    %2157 = vmatmul.mubr.f32.gmra.mrb[0].mxu0 %v2019
    %v2158 = vpop.f32.mrb[0].mxu0
    %v2159 = vadd.f32 0.0, %v2158
    %v2160 = vpop.f32.mrb[0].mxu0
    %v2161 = vadd.f32 0.0, %v2160
    %2162 = vdwg.mxu0
    %v2164 = vsel %vm396, %v2017, 0
    %2166 = vmatprep.subr.mxu0 %v342
    %2167 = vmatpush1.msra.mxu0 %v341
    %2168 = vmatprep.subr.mxu0 %v346
    %2169 = vmatpush1.msra.mxu0 %v345
    %2170 = vmatprep.subr.mxu0 %v350
    %2171 = vmatpush1.msra.mxu0 %v349
    %2172 = vmatprep.subr.mxu0 %v354
    %2173 = vmatpush1.msra.mxu0 %v353
    %2174 = vmatprep.subr.mxu0 0.0
    %2175 = vmatpush1.msra.mxu0 0.0
    %2176 = vmatprep.subr.mxu0 0.0
    %2177 = vmatpush1.msra.mxu0 0.0
    %2178 = vmatprep.subr.mxu0 0.0
    %2179 = vmatpush1.msra.mxu0 0.0
    %2180 = vmatprep.subr.mxu0 0.0
    %2181 = vmatpush1.msra.mxu0 0.0
    %2182 = vmatprep.subr.mxu0 0.0
    %2183 = vmatpush1.msra.mxu0 0.0
    %2184 = vmatprep.subr.mxu0 0.0
    %2185 = vmatpush1.msra.mxu0 0.0
    %2186 = vmatprep.subr.mxu0 0.0
    %2187 = vmatpush1.msra.mxu0 0.0
    %2188 = vmatprep.subr.mxu0 0.0
    %2189 = vmatpush1.msra.mxu0 0.0
    %2190 = vmatprep.subr.mxu0 0.0
    %2191 = vmatpush1.msra.mxu0 0.0
    %2192 = vmatprep.subr.mxu0 0.0
    %2193 = vmatpush1.msra.mxu0 0.0
    %2194 = vmatprep.subr.mxu0 0.0
    %2195 = vmatpush1.msra.mxu0 0.0
    %2196 = vmatprep.subr.mxu0 0.0
    %2197 = vmatpush1.msra.mxu0 0.0
    %2198 = vmatprep.subr.mxu0 0.0
    %2199 = vmatpush1.msra.mxu0 0.0
    %2200 = vmatprep.subr.mxu0 0.0
    %2201 = vmatpush1.msra.mxu0 0.0
    %2202 = vmatprep.subr.mxu0 0.0
    %2203 = vmatpush1.msra.mxu0 0.0
    %2204 = vmatprep.subr.mxu0 0.0
    %2205 = vmatpush1.msra.mxu0 0.0
    %2206 = vmatprep.subr.mxu0 0.0
    %2207 = vmatpush1.msra.mxu0 0.0
    %2208 = vmatprep.subr.mxu0 0.0
    %2209 = vmatpush1.msra.mxu0 0.0
    %2210 = vmatprep.subr.mxu0 0.0
    %2211 = vmatpush1.msra.mxu0 0.0
    %2212 = vmatprep.subr.mxu0 0.0
    %2213 = vmatpush1.msra.mxu0 0.0
    %2214 = vmatprep.subr.mxu0 0.0
    %2215 = vmatpush1.msra.mxu0 0.0
    %2216 = vmatprep.subr.mxu0 0.0
    %2217 = vmatpush1.msra.mxu0 0.0
    %2218 = vmatprep.subr.mxu0 0.0
    %2219 = vmatpush1.msra.mxu0 0.0
    %2220 = vmatprep.subr.mxu0 0.0
    %2221 = vmatpush1.msra.mxu0 0.0
    %2222 = vmatprep.subr.mxu0 0.0
    %2223 = vmatpush1.msra.mxu0 0.0
    %2224 = vmatprep.subr.mxu0 0.0
    %2225 = vmatpush1.msra.mxu0 0.0
    %2226 = vmatprep.subr.mxu0 0.0
    %2227 = vmatpush1.msra.mxu0 0.0
    %2228 = vmatprep.subr.mxu0 0.0
    %2229 = vmatpush1.msra.mxu0 0.0
    %2230 = vmatprep.mubr.f32.mxu0 0.0
    %2231 = vmatmul.mubr.f32.gmra.mrb[0].mxu0 %v2164
    %v2232 = vpop.f32.mrb[0].mxu0
    %v2233 = vadd.f32 %v2088, %v2232
    %v2234 = vpop.f32.mrb[0].mxu0
    %v2235 = vadd.f32 %v2090, %v2234
    %2236 = vdwg.mxu0
    %2237 = vmatprep.subr.mxu0 %v344
    %2238 = vmatpush1.msra.mxu0 %v343
    %2239 = vmatprep.subr.mxu0 %v348
    %2240 = vmatpush1.msra.mxu0 %v347
    %2241 = vmatprep.subr.mxu0 %v352
    %2242 = vmatpush1.msra.mxu0 %v351
    %2243 = vmatprep.subr.mxu0 %v356
    %2244 = vmatpush1.msra.mxu0 %v355
    %2245 = vmatprep.subr.mxu0 0.0
    %2246 = vmatpush1.msra.mxu0 0.0
    %2247 = vmatprep.subr.mxu0 0.0
    %2248 = vmatpush1.msra.mxu0 0.0
    %2249 = vmatprep.subr.mxu0 0.0
    %2250 = vmatpush1.msra.mxu0 0.0
    %2251 = vmatprep.subr.mxu0 0.0
    %2252 = vmatpush1.msra.mxu0 0.0
    %2253 = vmatprep.subr.mxu0 0.0
    %2254 = vmatpush1.msra.mxu0 0.0
    %2255 = vmatprep.subr.mxu0 0.0
    %2256 = vmatpush1.msra.mxu0 0.0
    %2257 = vmatprep.subr.mxu0 0.0
    %2258 = vmatpush1.msra.mxu0 0.0
    %2259 = vmatprep.subr.mxu0 0.0
    %2260 = vmatpush1.msra.mxu0 0.0
    %2261 = vmatprep.subr.mxu0 0.0
    %2262 = vmatpush1.msra.mxu0 0.0
    %2263 = vmatprep.subr.mxu0 0.0
    %2264 = vmatpush1.msra.mxu0 0.0
    %2265 = vmatprep.subr.mxu0 0.0
    %2266 = vmatpush1.msra.mxu0 0.0
    %2267 = vmatprep.subr.mxu0 0.0
    %2268 = vmatpush1.msra.mxu0 0.0
    %2269 = vmatprep.subr.mxu0 0.0
    %2270 = vmatpush1.msra.mxu0 0.0
    %2271 = vmatprep.subr.mxu0 0.0
    %2272 = vmatpush1.msra.mxu0 0.0
    %2273 = vmatprep.subr.mxu0 0.0
    %2274 = vmatpush1.msra.mxu0 0.0
    %2275 = vmatprep.subr.mxu0 0.0
    %2276 = vmatpush1.msra.mxu0 0.0
    %2277 = vmatprep.subr.mxu0 0.0
    %2278 = vmatpush1.msra.mxu0 0.0
    %2279 = vmatprep.subr.mxu0 0.0
    %2280 = vmatpush1.msra.mxu0 0.0
    %2281 = vmatprep.subr.mxu0 0.0
    %2282 = vmatpush1.msra.mxu0 0.0
    %2283 = vmatprep.subr.mxu0 0.0
    %2284 = vmatpush1.msra.mxu0 0.0
    %2285 = vmatprep.subr.mxu0 0.0
    %2286 = vmatpush1.msra.mxu0 0.0
    %2287 = vmatprep.subr.mxu0 0.0
    %2288 = vmatpush1.msra.mxu0 0.0
    %2289 = vmatprep.subr.mxu0 0.0
    %2290 = vmatpush1.msra.mxu0 0.0
    %2291 = vmatprep.subr.mxu0 0.0
    %2292 = vmatpush1.msra.mxu0 0.0
    %2293 = vmatprep.subr.mxu0 0.0
    %2294 = vmatpush1.msra.mxu0 0.0
    %2295 = vmatprep.subr.mxu0 0.0
    %2296 = vmatpush1.msra.mxu0 0.0
    %2297 = vmatprep.subr.mxu0 0.0
    %2298 = vmatpush1.msra.mxu0 0.0
    %2299 = vmatprep.subr.mxu0 0.0
    %2300 = vmatpush1.msra.mxu0 0.0
    %2301 = vmatprep.mubr.f32.mxu0 0.0
    %2302 = vmatmul.mubr.f32.gmra.mrb[0].mxu0 %v2164
    %v2303 = vpop.f32.mrb[0].mxu0
    %v2304 = vadd.f32 %v2159, %v2303
    %v2305 = vpop.f32.mrb[0].mxu0
    %v2306 = vadd.f32 %v2161, %v2305
    %2307 = vdwg.mxu0
    %v2308 = vadd.f32 %v2233, %v852
    %v2309 = vadd.f32 %v2235, %v856
    %v2310 = vadd.f32 %v2304, %v860
    %v2311 = vadd.f32 %v2306, %v864
    %v2312 = vmul.f32 %v2308, 0.5
    %v2313 = vmul.f32 %v2309, 0.5
    %v2314 = vtanh.pop %v2312
    %v2315 = vtanh.pop %v2313
    %v2316 = vmul.f32 %v2314, 0.5
    %v2317 = vmul.f32 %v2315, 0.5
    %v2318 = vadd.f32 %v2316, 0.5
    %v2319 = vadd.f32 %v2317, 0.5
    %v2320 = vmul.f32 %v2318, %v2311
    %v2321 = vadd.f32 %v2310, %v2320
    %v2322 = vtanh.pop %v2321
    %v2323 = vsub.f32 1.0, %v2319
    %v2324 = vmul.f32 %v2323, %v2322
    %v2325 = vmul.f32 %v2319, %v1849
    %v2326 = vadd.f32 %v2324, %v2325
    %v2327 = vmul.f32 %v1852, %v2326
    %v2328 = vmul.f32 %v1853, %v1849
    %v2329 = vadd.f32 %v2327, %v2328
    %v2330 = vmul.f32 %v1852, %v2329
    %2331 = vst [vmem:[#allocation3 + $0x18] sm:$0xff] %v2330
    %v2332 = vld [vmem:[%s1 + $0x20] sm:$0xff]
    %v2333 = vsub.f32 1.0, %v2332
    %v2334 = vld [vmem:[#allocation2 + $0x60] sm:$0xff]
    %v2335 = vld [vmem:[#allocation2 + $0x68] sm:$0xff]
    %v2336 = vld [vmem:[#allocation2 + $0x70] sm:$0xff]
    %2337 = vmatprep.subr.mxu0 %v330
    %2338 = vmatpush1.msra.mxu0 %v329
    %2339 = vmatprep.subr.mxu0 %v333
    %2340 = vmatpush1.msra.mxu0 %v332
    %2341 = vmatprep.subr.mxu0 %v336
    %2342 = vmatpush1.msra.mxu0 %v335
    %2343 = vmatprep.subr.mxu0 %v339
    %2344 = vmatpush1.msra.mxu0 %v338
    %2345 = vmatprep.subr.mxu0 0.0
    %2346 = vmatpush1.msra.mxu0 0.0
    %2347 = vmatprep.subr.mxu0 0.0
    %2348 = vmatpush1.msra.mxu0 0.0
    %2349 = vmatprep.subr.mxu0 0.0
    %2350 = vmatpush1.msra.mxu0 0.0
    %2351 = vmatprep.subr.mxu0 0.0
    %2352 = vmatpush1.msra.mxu0 0.0
    %2353 = vmatprep.subr.mxu0 0.0
    %2354 = vmatpush1.msra.mxu0 0.0
    %2355 = vmatprep.subr.mxu0 0.0
    %2356 = vmatpush1.msra.mxu0 0.0
    %2357 = vmatprep.subr.mxu0 0.0
    %2358 = vmatpush1.msra.mxu0 0.0
    %2359 = vmatprep.subr.mxu0 0.0
    %2360 = vmatpush1.msra.mxu0 0.0
    %2361 = vmatprep.subr.mxu0 0.0
    %2362 = vmatpush1.msra.mxu0 0.0
    %2363 = vmatprep.subr.mxu0 0.0
    %2364 = vmatpush1.msra.mxu0 0.0
    %2365 = vmatprep.subr.mxu0 0.0
    %2366 = vmatpush1.msra.mxu0 0.0
    %2367 = vmatprep.subr.mxu0 0.0
    %2368 = vmatpush1.msra.mxu0 0.0
    %2369 = vmatprep.subr.mxu0 0.0
    %2370 = vmatpush1.msra.mxu0 0.0
    %2371 = vmatprep.subr.mxu0 0.0
    %2372 = vmatpush1.msra.mxu0 0.0
    %2373 = vmatprep.subr.mxu0 0.0
    %2374 = vmatpush1.msra.mxu0 0.0
    %2375 = vmatprep.subr.mxu0 0.0
    %2376 = vmatpush1.msra.mxu0 0.0
    %2377 = vmatprep.subr.mxu0 0.0
    %2378 = vmatpush1.msra.mxu0 0.0
    %2379 = vmatprep.subr.mxu0 0.0
    %2380 = vmatpush1.msra.mxu0 0.0
    %2381 = vmatprep.subr.mxu0 0.0
    %2382 = vmatpush1.msra.mxu0 0.0
    %2383 = vmatprep.subr.mxu0 0.0
    %2384 = vmatpush1.msra.mxu0 0.0
    %2385 = vmatprep.subr.mxu0 0.0
    %2386 = vmatpush1.msra.mxu0 0.0
    %2387 = vmatprep.subr.mxu0 0.0
    %2388 = vmatpush1.msra.mxu0 0.0
    %2389 = vmatprep.subr.mxu0 0.0
    %2390 = vmatpush1.msra.mxu0 0.0
    %2391 = vmatprep.subr.mxu0 0.0
    %2392 = vmatpush1.msra.mxu0 0.0
    %2393 = vmatprep.subr.mxu0 0.0
    %2394 = vmatpush1.msra.mxu0 0.0
    %2395 = vmatprep.subr.mxu0 0.0
    %2396 = vmatpush1.msra.mxu0 0.0
    %2397 = vmatprep.subr.mxu0 0.0
    %2398 = vmatpush1.msra.mxu0 0.0
    %2399 = vmatprep.subr.mxu0 0.0
    %2400 = vmatpush1.msra.mxu0 0.0
    %2401 = vmatprep.mubr.f32.mxu0 0.0
    %2402 = vmatmul.mubr.f32.gmra.mrb[0].mxu0 %v2164
    %v2403 = vpop.f32.mrb[0].mxu0
    %v2404 = vadd.f32 %v384, %v2403
    %v2405 = vpop.f32.mrb[0].mxu0
    %v2406 = vadd.f32 %v388, %v2405
    %2407 = vdwg.mxu0
    %2408 = vmatprep.subr.mxu0 0.0
    %2409 = vmatpush1.msra.mxu0 %v331
    %2410 = vmatprep.subr.mxu0 0.0
    %2411 = vmatpush1.msra.mxu0 %v334
    %2412 = vmatprep.subr.mxu0 0.0
    %2413 = vmatpush1.msra.mxu0 %v337
    %2414 = vmatprep.subr.mxu0 0.0
    %2415 = vmatpush1.msra.mxu0 %v340
    %2416 = vmatprep.subr.mxu0 0.0
    %2417 = vmatpush1.msra.mxu0 0.0
    %2418 = vmatprep.subr.mxu0 0.0
    %2419 = vmatpush1.msra.mxu0 0.0
    %2420 = vmatprep.subr.mxu0 0.0
    %2421 = vmatpush1.msra.mxu0 0.0
    %2422 = vmatprep.subr.mxu0 0.0
    %2423 = vmatpush1.msra.mxu0 0.0
    %2424 = vmatprep.subr.mxu0 0.0
    %2425 = vmatpush1.msra.mxu0 0.0
    %2426 = vmatprep.subr.mxu0 0.0
    %2427 = vmatpush1.msra.mxu0 0.0
    %2428 = vmatprep.subr.mxu0 0.0
    %2429 = vmatpush1.msra.mxu0 0.0
    %2430 = vmatprep.subr.mxu0 0.0
    %2431 = vmatpush1.msra.mxu0 0.0
    %2432 = vmatprep.subr.mxu0 0.0
    %2433 = vmatpush1.msra.mxu0 0.0
    %2434 = vmatprep.subr.mxu0 0.0
    %2435 = vmatpush1.msra.mxu0 0.0
    %2436 = vmatprep.subr.mxu0 0.0
    %2437 = vmatpush1.msra.mxu0 0.0
    %2438 = vmatprep.subr.mxu0 0.0
    %2439 = vmatpush1.msra.mxu0 0.0
    %2440 = vmatprep.subr.mxu0 0.0
    %2441 = vmatpush1.msra.mxu0 0.0
    %2442 = vmatprep.subr.mxu0 0.0
    %2443 = vmatpush1.msra.mxu0 0.0
    %2444 = vmatprep.subr.mxu0 0.0
    %2445 = vmatpush1.msra.mxu0 0.0
    %2446 = vmatprep.subr.mxu0 0.0
    %2447 = vmatpush1.msra.mxu0 0.0
    %2448 = vmatprep.subr.mxu0 0.0
    %2449 = vmatpush1.msra.mxu0 0.0
    %2450 = vmatprep.subr.mxu0 0.0
    %2451 = vmatpush1.msra.mxu0 0.0
    %2452 = vmatprep.subr.mxu0 0.0
    %2453 = vmatpush1.msra.mxu0 0.0
    %2454 = vmatprep.subr.mxu0 0.0
    %2455 = vmatpush1.msra.mxu0 0.0
    %2456 = vmatprep.subr.mxu0 0.0
    %2457 = vmatpush1.msra.mxu0 0.0
    %2458 = vmatprep.subr.mxu0 0.0
    %2459 = vmatpush1.msra.mxu0 0.0
    %2460 = vmatprep.subr.mxu0 0.0
    %2461 = vmatpush1.msra.mxu0 0.0
    %2462 = vmatprep.subr.mxu0 0.0
    %2463 = vmatpush1.msra.mxu0 0.0
    %2464 = vmatprep.subr.mxu0 0.0
    %2465 = vmatpush1.msra.mxu0 0.0
    %2466 = vmatprep.subr.mxu0 0.0
    %2467 = vmatpush1.msra.mxu0 0.0
    %2468 = vmatprep.subr.mxu0 0.0
    %2469 = vmatpush1.msra.mxu0 0.0
    %2470 = vmatprep.subr.mxu0 0.0
    %2471 = vmatpush1.msra.mxu0 0.0
    %2472 = vmatprep.mubr.f32.mxu0 0.0
    %2473 = vmatmul.mubr.f32.gmra.mrb[0].mxu0 %v2164
    %v2474 = vpop.f32.mrb[0].mxu0
    %v2475 = vadd.f32 %v392, %v2474
    %v2476 = vpop.f32.mrb[0].mxu0
    %2477 = vdwg.mxu0
    %v2478 = vadd.f32 %v2334, %v2404
    %v2479 = vadd.f32 %v2335, %v2406
    %v2480 = vmul.f32 %v2478, 0.5
    %v2481 = vmul.f32 %v2479, 0.5
    %v2482 = vtanh.pop %v2480
    %v2483 = vtanh.pop %v2481
    %v2484 = vmul.f32 %v2482, 0.5
    %v2485 = vmul.f32 %v2483, 0.5
    %v2486 = vadd.f32 %v2484, 0.5
    %v2487 = vadd.f32 %v2485, 0.5
    %v2488 = vmul.f32 %v2486, %v2475
    %v2489 = vadd.f32 %v2336, %v2488
    %v2490 = vtanh.pop %v2489
    %v2491 = vsub.f32 1.0, %v2487
    %v2492 = vmul.f32 %v2491, %v2490
    %v2493 = vmul.f32 %v2487, %v2017
    %v2494 = vadd.f32 %v2492, %v2493
    %v2495 = vmul.f32 %v2332, %v2494
    %v2496 = vmul.f32 %v2333, %v2017
    %v2497 = vadd.f32 %v2495, %v2496
    %v2499 = vsel %vm396, %v2329, 0
    %2501 = vmatprep.subr.mxu0 %v358
    %2502 = vmatpush1.msra.mxu0 %v357
    %2503 = vmatprep.subr.mxu0 %v362
    %2504 = vmatpush1.msra.mxu0 %v361
    %2505 = vmatprep.subr.mxu0 %v366
    %2506 = vmatpush1.msra.mxu0 %v365
    %2507 = vmatprep.subr.mxu0 %v370
    %2508 = vmatpush1.msra.mxu0 %v369
    %2509 = vmatprep.subr.mxu0 0.0
    %2510 = vmatpush1.msra.mxu0 0.0
    %2511 = vmatprep.subr.mxu0 0.0
    %2512 = vmatpush1.msra.mxu0 0.0
    %2513 = vmatprep.subr.mxu0 0.0
    %2514 = vmatpush1.msra.mxu0 0.0
    %2515 = vmatprep.subr.mxu0 0.0
    %2516 = vmatpush1.msra.mxu0 0.0
    %2517 = vmatprep.subr.mxu0 0.0
    %2518 = vmatpush1.msra.mxu0 0.0
    %2519 = vmatprep.subr.mxu0 0.0
    %2520 = vmatpush1.msra.mxu0 0.0
    %2521 = vmatprep.subr.mxu0 0.0
    %2522 = vmatpush1.msra.mxu0 0.0
    %2523 = vmatprep.subr.mxu0 0.0
    %2524 = vmatpush1.msra.mxu0 0.0
    %2525 = vmatprep.subr.mxu0 0.0
    %2526 = vmatpush1.msra.mxu0 0.0
    %2527 = vmatprep.subr.mxu0 0.0
    %2528 = vmatpush1.msra.mxu0 0.0
    %2529 = vmatprep.subr.mxu0 0.0
    %2530 = vmatpush1.msra.mxu0 0.0
    %2531 = vmatprep.subr.mxu0 0.0
    %2532 = vmatpush1.msra.mxu0 0.0
    %2533 = vmatprep.subr.mxu0 0.0
    %2534 = vmatpush1.msra.mxu0 0.0
    %2535 = vmatprep.subr.mxu0 0.0
    %2536 = vmatpush1.msra.mxu0 0.0
    %2537 = vmatprep.subr.mxu0 0.0
    %2538 = vmatpush1.msra.mxu0 0.0
    %2539 = vmatprep.subr.mxu0 0.0
    %2540 = vmatpush1.msra.mxu0 0.0
    %2541 = vmatprep.subr.mxu0 0.0
    %2542 = vmatpush1.msra.mxu0 0.0
    %2543 = vmatprep.subr.mxu0 0.0
    %2544 = vmatpush1.msra.mxu0 0.0
    %2545 = vmatprep.subr.mxu0 0.0
    %2546 = vmatpush1.msra.mxu0 0.0
    %2547 = vmatprep.subr.mxu0 0.0
    %2548 = vmatpush1.msra.mxu0 0.0
    %2549 = vmatprep.subr.mxu0 0.0
    %2550 = vmatpush1.msra.mxu0 0.0
    %2551 = vmatprep.subr.mxu0 0.0
    %2552 = vmatpush1.msra.mxu0 0.0
    %2553 = vmatprep.subr.mxu0 0.0
    %2554 = vmatpush1.msra.mxu0 0.0
    %2555 = vmatprep.subr.mxu0 0.0
    %2556 = vmatpush1.msra.mxu0 0.0
    %2557 = vmatprep.subr.mxu0 0.0
    %2558 = vmatpush1.msra.mxu0 0.0
    %2559 = vmatprep.subr.mxu0 0.0
    %2560 = vmatpush1.msra.mxu0 0.0
    %2561 = vmatprep.subr.mxu0 0.0
    %2562 = vmatpush1.msra.mxu0 0.0
    %2563 = vmatprep.subr.mxu0 0.0
    %2564 = vmatpush1.msra.mxu0 0.0
    %2565 = vmatprep.mubr.f32.mxu0 0.0
    %2566 = vmatmul.mubr.f32.gmra.mrb[0].mxu0 %v2499
    %v2567 = vpop.f32.mrb[0].mxu0
    %v2568 = vadd.f32 0.0, %v2567
    %v2569 = vpop.f32.mrb[0].mxu0
    %v2570 = vadd.f32 0.0, %v2569
    %2571 = vdwg.mxu0
    %2572 = vmatprep.subr.mxu0 %v360
    %2573 = vmatpush1.msra.mxu0 %v359
    %2574 = vmatprep.subr.mxu0 %v364
    %2575 = vmatpush1.msra.mxu0 %v363
    %2576 = vmatprep.subr.mxu0 %v368
    %2577 = vmatpush1.msra.mxu0 %v367
    %2578 = vmatprep.subr.mxu0 %v372
    %2579 = vmatpush1.msra.mxu0 %v371
    %2580 = vmatprep.subr.mxu0 0.0
    %2581 = vmatpush1.msra.mxu0 0.0
    %2582 = vmatprep.subr.mxu0 0.0
    %2583 = vmatpush1.msra.mxu0 0.0
    %2584 = vmatprep.subr.mxu0 0.0
    %2585 = vmatpush1.msra.mxu0 0.0
    %2586 = vmatprep.subr.mxu0 0.0
    %2587 = vmatpush1.msra.mxu0 0.0
    %2588 = vmatprep.subr.mxu0 0.0
    %2589 = vmatpush1.msra.mxu0 0.0
    %2590 = vmatprep.subr.mxu0 0.0
    %2591 = vmatpush1.msra.mxu0 0.0
    %2592 = vmatprep.subr.mxu0 0.0
    %2593 = vmatpush1.msra.mxu0 0.0
    %2594 = vmatprep.subr.mxu0 0.0
    %2595 = vmatpush1.msra.mxu0 0.0
    %2596 = vmatprep.subr.mxu0 0.0
    %2597 = vmatpush1.msra.mxu0 0.0
    %2598 = vmatprep.subr.mxu0 0.0
    %2599 = vmatpush1.msra.mxu0 0.0
    %2600 = vmatprep.subr.mxu0 0.0
    %2601 = vmatpush1.msra.mxu0 0.0
    %2602 = vmatprep.subr.mxu0 0.0
    %2603 = vmatpush1.msra.mxu0 0.0
    %2604 = vmatprep.subr.mxu0 0.0
    %2605 = vmatpush1.msra.mxu0 0.0
    %2606 = vmatprep.subr.mxu0 0.0
    %2607 = vmatpush1.msra.mxu0 0.0
    %2608 = vmatprep.subr.mxu0 0.0
    %2609 = vmatpush1.msra.mxu0 0.0
    %2610 = vmatprep.subr.mxu0 0.0
    %2611 = vmatpush1.msra.mxu0 0.0
    %2612 = vmatprep.subr.mxu0 0.0
    %2613 = vmatpush1.msra.mxu0 0.0
    %2614 = vmatprep.subr.mxu0 0.0
    %2615 = vmatpush1.msra.mxu0 0.0
    %2616 = vmatprep.subr.mxu0 0.0
    %2617 = vmatpush1.msra.mxu0 0.0
    %2618 = vmatprep.subr.mxu0 0.0
    %2619 = vmatpush1.msra.mxu0 0.0
    %2620 = vmatprep.subr.mxu0 0.0
    %2621 = vmatpush1.msra.mxu0 0.0
    %2622 = vmatprep.subr.mxu0 0.0
    %2623 = vmatpush1.msra.mxu0 0.0
    %2624 = vmatprep.subr.mxu0 0.0
    %2625 = vmatpush1.msra.mxu0 0.0
    %2626 = vmatprep.subr.mxu0 0.0
    %2627 = vmatpush1.msra.mxu0 0.0
    %2628 = vmatprep.subr.mxu0 0.0
    %2629 = vmatpush1.msra.mxu0 0.0
    %2630 = vmatprep.subr.mxu0 0.0
    %2631 = vmatpush1.msra.mxu0 0.0
    %2632 = vmatprep.subr.mxu0 0.0
    %2633 = vmatpush1.msra.mxu0 0.0
    %2634 = vmatprep.subr.mxu0 0.0
    %2635 = vmatpush1.msra.mxu0 0.0
    %2636 = vmatprep.mubr.f32.mxu0 0.0
    %2637 = vmatmul.mubr.f32.gmra.mrb[0].mxu0 %v2499
    %v2638 = vpop.f32.mrb[0].mxu0
    %v2639 = vadd.f32 0.0, %v2638
    %v2640 = vpop.f32.mrb[0].mxu0
    %v2641 = vadd.f32 0.0, %v2640
    %2642 = vdwg.mxu0
    %v2644 = vsel %vm396, %v2497, 0
    %2646 = vmatprep.subr.mxu0 %v342
    %2647 = vmatpush1.msra.mxu0 %v341
    %2648 = vmatprep.subr.mxu0 %v346
    %2649 = vmatpush1.msra.mxu0 %v345
    %2650 = vmatprep.subr.mxu0 %v350
    %2651 = vmatpush1.msra.mxu0 %v349
    %2652 = vmatprep.subr.mxu0 %v354
    %2653 = vmatpush1.msra.mxu0 %v353
    %2654 = vmatprep.subr.mxu0 0.0
    %2655 = vmatpush1.msra.mxu0 0.0
    %2656 = vmatprep.subr.mxu0 0.0
    %2657 = vmatpush1.msra.mxu0 0.0
    %2658 = vmatprep.subr.mxu0 0.0
    %2659 = vmatpush1.msra.mxu0 0.0
    %2660 = vmatprep.subr.mxu0 0.0
    %2661 = vmatpush1.msra.mxu0 0.0
    %2662 = vmatprep.subr.mxu0 0.0
    %2663 = vmatpush1.msra.mxu0 0.0
    %2664 = vmatprep.subr.mxu0 0.0
    %2665 = vmatpush1.msra.mxu0 0.0
    %2666 = vmatprep.subr.mxu0 0.0
    %2667 = vmatpush1.msra.mxu0 0.0
    %2668 = vmatprep.subr.mxu0 0.0
    %2669 = vmatpush1.msra.mxu0 0.0
    %2670 = vmatprep.subr.mxu0 0.0
    %2671 = vmatpush1.msra.mxu0 0.0
    %2672 = vmatprep.subr.mxu0 0.0
    %2673 = vmatpush1.msra.mxu0 0.0
    %2674 = vmatprep.subr.mxu0 0.0
    %2675 = vmatpush1.msra.mxu0 0.0
    %2676 = vmatprep.subr.mxu0 0.0
    %2677 = vmatpush1.msra.mxu0 0.0
    %2678 = vmatprep.subr.mxu0 0.0
    %2679 = vmatpush1.msra.mxu0 0.0
    %2680 = vmatprep.subr.mxu0 0.0
    %2681 = vmatpush1.msra.mxu0 0.0
    %2682 = vmatprep.subr.mxu0 0.0
    %2683 = vmatpush1.msra.mxu0 0.0
    %2684 = vmatprep.subr.mxu0 0.0
    %2685 = vmatpush1.msra.mxu0 0.0
    %2686 = vmatprep.subr.mxu0 0.0
    %2687 = vmatpush1.msra.mxu0 0.0
    %2688 = vmatprep.subr.mxu0 0.0
    %2689 = vmatpush1.msra.mxu0 0.0
    %2690 = vmatprep.subr.mxu0 0.0
    %2691 = vmatpush1.msra.mxu0 0.0
    %2692 = vmatprep.subr.mxu0 0.0
    %2693 = vmatpush1.msra.mxu0 0.0
    %2694 = vmatprep.subr.mxu0 0.0
    %2695 = vmatpush1.msra.mxu0 0.0
    %2696 = vmatprep.subr.mxu0 0.0
    %2697 = vmatpush1.msra.mxu0 0.0
    %2698 = vmatprep.subr.mxu0 0.0
    %2699 = vmatpush1.msra.mxu0 0.0
    %2700 = vmatprep.subr.mxu0 0.0
    %2701 = vmatpush1.msra.mxu0 0.0
    %2702 = vmatprep.subr.mxu0 0.0
    %2703 = vmatpush1.msra.mxu0 0.0
    %2704 = vmatprep.subr.mxu0 0.0
    %2705 = vmatpush1.msra.mxu0 0.0
    %2706 = vmatprep.subr.mxu0 0.0
    %2707 = vmatpush1.msra.mxu0 0.0
    %2708 = vmatprep.subr.mxu0 0.0
    %2709 = vmatpush1.msra.mxu0 0.0
    %2710 = vmatprep.mubr.f32.mxu0 0.0
    %2711 = vmatmul.mubr.f32.gmra.mrb[0].mxu0 %v2644
    %v2712 = vpop.f32.mrb[0].mxu0
    %v2713 = vadd.f32 %v2568, %v2712
    %v2714 = vpop.f32.mrb[0].mxu0
    %v2715 = vadd.f32 %v2570, %v2714
    %2716 = vdwg.mxu0
    %2717 = vmatprep.subr.mxu0 %v344
    %2718 = vmatpush1.msra.mxu0 %v343
    %2719 = vmatprep.subr.mxu0 %v348
    %2720 = vmatpush1.msra.mxu0 %v347
    %2721 = vmatprep.subr.mxu0 %v352
    %2722 = vmatpush1.msra.mxu0 %v351
    %2723 = vmatprep.subr.mxu0 %v356
    %2724 = vmatpush1.msra.mxu0 %v355
    %2725 = vmatprep.subr.mxu0 0.0
    %2726 = vmatpush1.msra.mxu0 0.0
    %2727 = vmatprep.subr.mxu0 0.0
    %2728 = vmatpush1.msra.mxu0 0.0
    %2729 = vmatprep.subr.mxu0 0.0
    %2730 = vmatpush1.msra.mxu0 0.0
    %2731 = vmatprep.subr.mxu0 0.0
    %2732 = vmatpush1.msra.mxu0 0.0
    %2733 = vmatprep.subr.mxu0 0.0
    %2734 = vmatpush1.msra.mxu0 0.0
    %2735 = vmatprep.subr.mxu0 0.0
    %2736 = vmatpush1.msra.mxu0 0.0
    %2737 = vmatprep.subr.mxu0 0.0
    %2738 = vmatpush1.msra.mxu0 0.0
    %2739 = vmatprep.subr.mxu0 0.0
    %2740 = vmatpush1.msra.mxu0 0.0
    %2741 = vmatprep.subr.mxu0 0.0
    %2742 = vmatpush1.msra.mxu0 0.0
    %2743 = vmatprep.subr.mxu0 0.0
    %2744 = vmatpush1.msra.mxu0 0.0
    %2745 = vmatprep.subr.mxu0 0.0
    %2746 = vmatpush1.msra.mxu0 0.0
    %2747 = vmatprep.subr.mxu0 0.0
    %2748 = vmatpush1.msra.mxu0 0.0
    %2749 = vmatprep.subr.mxu0 0.0
    %2750 = vmatpush1.msra.mxu0 0.0
    %2751 = vmatprep.subr.mxu0 0.0
    %2752 = vmatpush1.msra.mxu0 0.0
    %2753 = vmatprep.subr.mxu0 0.0
    %2754 = vmatpush1.msra.mxu0 0.0
    %2755 = vmatprep.subr.mxu0 0.0
    %2756 = vmatpush1.msra.mxu0 0.0
    %2757 = vmatprep.subr.mxu0 0.0
    %2758 = vmatpush1.msra.mxu0 0.0
    %2759 = vmatprep.subr.mxu0 0.0
    %2760 = vmatpush1.msra.mxu0 0.0
    %2761 = vmatprep.subr.mxu0 0.0
    %2762 = vmatpush1.msra.mxu0 0.0
    %2763 = vmatprep.subr.mxu0 0.0
    %2764 = vmatpush1.msra.mxu0 0.0
    %2765 = vmatprep.subr.mxu0 0.0
    %2766 = vmatpush1.msra.mxu0 0.0
    %2767 = vmatprep.subr.mxu0 0.0
    %2768 = vmatpush1.msra.mxu0 0.0
    %2769 = vmatprep.subr.mxu0 0.0
    %2770 = vmatpush1.msra.mxu0 0.0
    %2771 = vmatprep.subr.mxu0 0.0
    %2772 = vmatpush1.msra.mxu0 0.0
    %2773 = vmatprep.subr.mxu0 0.0
    %2774 = vmatpush1.msra.mxu0 0.0
    %2775 = vmatprep.subr.mxu0 0.0
    %2776 = vmatpush1.msra.mxu0 0.0
    %2777 = vmatprep.subr.mxu0 0.0
    %2778 = vmatpush1.msra.mxu0 0.0
    %2779 = vmatprep.subr.mxu0 0.0
    %2780 = vmatpush1.msra.mxu0 0.0
    %2781 = vmatprep.mubr.f32.mxu0 0.0
    %2782 = vmatmul.mubr.f32.gmra.mrb[0].mxu0 %v2644
    %v2783 = vpop.f32.mrb[0].mxu0
    %v2784 = vadd.f32 %v2639, %v2783
    %v2785 = vpop.f32.mrb[0].mxu0
    %v2786 = vadd.f32 %v2641, %v2785
    %2787 = vdwg.mxu0
    %v2788 = vadd.f32 %v2713, %v852
    %v2789 = vadd.f32 %v2715, %v856
    %v2790 = vadd.f32 %v2784, %v860
    %v2791 = vadd.f32 %v2786, %v864
    %v2792 = vmul.f32 %v2788, 0.5
    %v2793 = vmul.f32 %v2789, 0.5
    %v2794 = vtanh.pop %v2792
    %v2795 = vtanh.pop %v2793
    %v2796 = vmul.f32 %v2794, 0.5
    %v2797 = vmul.f32 %v2795, 0.5
    %v2798 = vadd.f32 %v2796, 0.5
    %v2799 = vadd.f32 %v2797, 0.5
    %v2800 = vmul.f32 %v2798, %v2791
    %v2801 = vadd.f32 %v2790, %v2800
    %v2802 = vtanh.pop %v2801
    %v2803 = vsub.f32 1.0, %v2799
    %v2804 = vmul.f32 %v2803, %v2802
    %v2805 = vmul.f32 %v2799, %v2329
    %v2806 = vadd.f32 %v2804, %v2805
    %v2807 = vmul.f32 %v2332, %v2806
    %v2808 = vmul.f32 %v2333, %v2329
    %v2809 = vadd.f32 %v2807, %v2808
    %v2810 = vmul.f32 %v2332, %v2809
    %2811 = vst [vmem:[#allocation3 + $0x20] sm:$0xff] %v2810
    %v2812 = vld [vmem:[%s1 + $0x28] sm:$0xff]
    %v2813 = vsub.f32 1.0, %v2812
    %v2814 = vld [vmem:[#allocation2 + $0x78] sm:$0xff]
    %v2815 = vld [vmem:[#allocation2 + $0x80] sm:$0xff]
    %v2816 = vld [vmem:[#allocation2 + $0x88] sm:$0xff]
    %2817 = vmatprep.subr.mxu0 %v330
    %2818 = vmatpush1.msra.mxu0 %v329
    %2819 = vmatprep.subr.mxu0 %v333
    %2820 = vmatpush1.msra.mxu0 %v332
    %2821 = vmatprep.subr.mxu0 %v336
    %2822 = vmatpush1.msra.mxu0 %v335
    %2823 = vmatprep.subr.mxu0 %v339
    %2824 = vmatpush1.msra.mxu0 %v338
    %2825 = vmatprep.subr.mxu0 0.0
    %2826 = vmatpush1.msra.mxu0 0.0
    %2827 = vmatprep.subr.mxu0 0.0
    %2828 = vmatpush1.msra.mxu0 0.0
    %2829 = vmatprep.subr.mxu0 0.0
    %2830 = vmatpush1.msra.mxu0 0.0
    %2831 = vmatprep.subr.mxu0 0.0
    %2832 = vmatpush1.msra.mxu0 0.0
    %2833 = vmatprep.subr.mxu0 0.0
    %2834 = vmatpush1.msra.mxu0 0.0
    %2835 = vmatprep.subr.mxu0 0.0
    %2836 = vmatpush1.msra.mxu0 0.0
    %2837 = vmatprep.subr.mxu0 0.0
    %2838 = vmatpush1.msra.mxu0 0.0
    %2839 = vmatprep.subr.mxu0 0.0
    %2840 = vmatpush1.msra.mxu0 0.0
    %2841 = vmatprep.subr.mxu0 0.0
    %2842 = vmatpush1.msra.mxu0 0.0
    %2843 = vmatprep.subr.mxu0 0.0
    %2844 = vmatpush1.msra.mxu0 0.0
    %2845 = vmatprep.subr.mxu0 0.0
    %2846 = vmatpush1.msra.mxu0 0.0
    %2847 = vmatprep.subr.mxu0 0.0
    %2848 = vmatpush1.msra.mxu0 0.0
    %2849 = vmatprep.subr.mxu0 0.0
    %2850 = vmatpush1.msra.mxu0 0.0
    %2851 = vmatprep.subr.mxu0 0.0
    %2852 = vmatpush1.msra.mxu0 0.0
    %2853 = vmatprep.subr.mxu0 0.0
    %2854 = vmatpush1.msra.mxu0 0.0
    %2855 = vmatprep.subr.mxu0 0.0
    %2856 = vmatpush1.msra.mxu0 0.0
    %2857 = vmatprep.subr.mxu0 0.0
    %2858 = vmatpush1.msra.mxu0 0.0
    %2859 = vmatprep.subr.mxu0 0.0
    %2860 = vmatpush1.msra.mxu0 0.0
    %2861 = vmatprep.subr.mxu0 0.0
    %2862 = vmatpush1.msra.mxu0 0.0
    %2863 = vmatprep.subr.mxu0 0.0
    %2864 = vmatpush1.msra.mxu0 0.0
    %2865 = vmatprep.subr.mxu0 0.0
    %2866 = vmatpush1.msra.mxu0 0.0
    %2867 = vmatprep.subr.mxu0 0.0
    %2868 = vmatpush1.msra.mxu0 0.0
    %2869 = vmatprep.subr.mxu0 0.0
    %2870 = vmatpush1.msra.mxu0 0.0
    %2871 = vmatprep.subr.mxu0 0.0
    %2872 = vmatpush1.msra.mxu0 0.0
    %2873 = vmatprep.subr.mxu0 0.0
    %2874 = vmatpush1.msra.mxu0 0.0
    %2875 = vmatprep.subr.mxu0 0.0
    %2876 = vmatpush1.msra.mxu0 0.0
    %2877 = vmatprep.subr.mxu0 0.0
    %2878 = vmatpush1.msra.mxu0 0.0
    %2879 = vmatprep.subr.mxu0 0.0
    %2880 = vmatpush1.msra.mxu0 0.0
    %2881 = vmatprep.mubr.f32.mxu0 0.0
    %2882 = vmatmul.mubr.f32.gmra.mrb[0].mxu0 %v2644
    %v2883 = vpop.f32.mrb[0].mxu0
    %v2884 = vadd.f32 %v384, %v2883
    %v2885 = vpop.f32.mrb[0].mxu0
    %v2886 = vadd.f32 %v388, %v2885
    %2887 = vdwg.mxu0
    %2888 = vmatprep.subr.mxu0 0.0
    %2889 = vmatpush1.msra.mxu0 %v331
    %2890 = vmatprep.subr.mxu0 0.0
    %2891 = vmatpush1.msra.mxu0 %v334
    %2892 = vmatprep.subr.mxu0 0.0
    %2893 = vmatpush1.msra.mxu0 %v337
    %2894 = vmatprep.subr.mxu0 0.0
    %2895 = vmatpush1.msra.mxu0 %v340
    %2896 = vmatprep.subr.mxu0 0.0
    %2897 = vmatpush1.msra.mxu0 0.0
    %2898 = vmatprep.subr.mxu0 0.0
    %2899 = vmatpush1.msra.mxu0 0.0
    %2900 = vmatprep.subr.mxu0 0.0
    %2901 = vmatpush1.msra.mxu0 0.0
    %2902 = vmatprep.subr.mxu0 0.0
    %2903 = vmatpush1.msra.mxu0 0.0
    %2904 = vmatprep.subr.mxu0 0.0
    %2905 = vmatpush1.msra.mxu0 0.0
    %2906 = vmatprep.subr.mxu0 0.0
    %2907 = vmatpush1.msra.mxu0 0.0
    %2908 = vmatprep.subr.mxu0 0.0
    %2909 = vmatpush1.msra.mxu0 0.0
    %2910 = vmatprep.subr.mxu0 0.0
    %2911 = vmatpush1.msra.mxu0 0.0
    %2912 = vmatprep.subr.mxu0 0.0
    %2913 = vmatpush1.msra.mxu0 0.0
    %2914 = vmatprep.subr.mxu0 0.0
    %2915 = vmatpush1.msra.mxu0 0.0
    %2916 = vmatprep.subr.mxu0 0.0
    %2917 = vmatpush1.msra.mxu0 0.0
    %2918 = vmatprep.subr.mxu0 0.0
    %2919 = vmatpush1.msra.mxu0 0.0
    %2920 = vmatprep.subr.mxu0 0.0
    %2921 = vmatpush1.msra.mxu0 0.0
    %2922 = vmatprep.subr.mxu0 0.0
    %2923 = vmatpush1.msra.mxu0 0.0
    %2924 = vmatprep.subr.mxu0 0.0
    %2925 = vmatpush1.msra.mxu0 0.0
    %2926 = vmatprep.subr.mxu0 0.0
    %2927 = vmatpush1.msra.mxu0 0.0
    %2928 = vmatprep.subr.mxu0 0.0
    %2929 = vmatpush1.msra.mxu0 0.0
    %2930 = vmatprep.subr.mxu0 0.0
    %2931 = vmatpush1.msra.mxu0 0.0
    %2932 = vmatprep.subr.mxu0 0.0
    %2933 = vmatpush1.msra.mxu0 0.0
    %2934 = vmatprep.subr.mxu0 0.0
    %2935 = vmatpush1.msra.mxu0 0.0
    %2936 = vmatprep.subr.mxu0 0.0
    %2937 = vmatpush1.msra.mxu0 0.0
    %2938 = vmatprep.subr.mxu0 0.0
    %2939 = vmatpush1.msra.mxu0 0.0
    %2940 = vmatprep.subr.mxu0 0.0
    %2941 = vmatpush1.msra.mxu0 0.0
    %2942 = vmatprep.subr.mxu0 0.0
    %2943 = vmatpush1.msra.mxu0 0.0
    %2944 = vmatprep.subr.mxu0 0.0
    %2945 = vmatpush1.msra.mxu0 0.0
    %2946 = vmatprep.subr.mxu0 0.0
    %2947 = vmatpush1.msra.mxu0 0.0
    %2948 = vmatprep.subr.mxu0 0.0
    %2949 = vmatpush1.msra.mxu0 0.0
    %2950 = vmatprep.subr.mxu0 0.0
    %2951 = vmatpush1.msra.mxu0 0.0
    %2952 = vmatprep.mubr.f32.mxu0 0.0
    %2953 = vmatmul.mubr.f32.gmra.mrb[0].mxu0 %v2644
    %v2954 = vpop.f32.mrb[0].mxu0
    %v2955 = vadd.f32 %v392, %v2954
    %v2956 = vpop.f32.mrb[0].mxu0
    %2957 = vdwg.mxu0
    %v2958 = vadd.f32 %v2814, %v2884
    %v2959 = vadd.f32 %v2815, %v2886
    %v2960 = vmul.f32 %v2958, 0.5
    %v2961 = vmul.f32 %v2959, 0.5
    %v2962 = vtanh.pop %v2960
    %v2963 = vtanh.pop %v2961
    %v2964 = vmul.f32 %v2962, 0.5
    %v2965 = vmul.f32 %v2963, 0.5
    %v2966 = vadd.f32 %v2964, 0.5
    %v2967 = vadd.f32 %v2965, 0.5
    %v2968 = vmul.f32 %v2966, %v2955
    %v2969 = vadd.f32 %v2816, %v2968
    %v2970 = vtanh.pop %v2969
    %v2971 = vsub.f32 1.0, %v2967
    %v2972 = vmul.f32 %v2971, %v2970
    %v2973 = vmul.f32 %v2967, %v2497
    %v2974 = vadd.f32 %v2972, %v2973
    %v2975 = vmul.f32 %v2812, %v2974
    %v2976 = vmul.f32 %v2813, %v2497
    %v2977 = vadd.f32 %v2975, %v2976
    %v2979 = vsel %vm396, %v2809, 0
    %2981 = vmatprep.subr.mxu0 %v358
    %2982 = vmatpush1.msra.mxu0 %v357
    %2983 = vmatprep.subr.mxu0 %v362
    %2984 = vmatpush1.msra.mxu0 %v361
    %2985 = vmatprep.subr.mxu0 %v366
    %2986 = vmatpush1.msra.mxu0 %v365
    %2987 = vmatprep.subr.mxu0 %v370
    %2988 = vmatpush1.msra.mxu0 %v369
    %2989 = vmatprep.subr.mxu0 0.0
    %2990 = vmatpush1.msra.mxu0 0.0
    %2991 = vmatprep.subr.mxu0 0.0
    %2992 = vmatpush1.msra.mxu0 0.0
    %2993 = vmatprep.subr.mxu0 0.0
    %2994 = vmatpush1.msra.mxu0 0.0
    %2995 = vmatprep.subr.mxu0 0.0
    %2996 = vmatpush1.msra.mxu0 0.0
    %2997 = vmatprep.subr.mxu0 0.0
    %2998 = vmatpush1.msra.mxu0 0.0
    %2999 = vmatprep.subr.mxu0 0.0
    %3000 = vmatpush1.msra.mxu0 0.0
    %3001 = vmatprep.subr.mxu0 0.0
    %3002 = vmatpush1.msra.mxu0 0.0
    %3003 = vmatprep.subr.mxu0 0.0
    %3004 = vmatpush1.msra.mxu0 0.0
    %3005 = vmatprep.subr.mxu0 0.0
    %3006 = vmatpush1.msra.mxu0 0.0
    %3007 = vmatprep.subr.mxu0 0.0
    %3008 = vmatpush1.msra.mxu0 0.0
    %3009 = vmatprep.subr.mxu0 0.0
    %3010 = vmatpush1.msra.mxu0 0.0
    %3011 = vmatprep.subr.mxu0 0.0
    %3012 = vmatpush1.msra.mxu0 0.0
    %3013 = vmatprep.subr.mxu0 0.0
    %3014 = vmatpush1.msra.mxu0 0.0
    %3015 = vmatprep.subr.mxu0 0.0
    %3016 = vmatpush1.msra.mxu0 0.0
    %3017 = vmatprep.subr.mxu0 0.0
    %3018 = vmatpush1.msra.mxu0 0.0
    %3019 = vmatprep.subr.mxu0 0.0
    %3020 = vmatpush1.msra.mxu0 0.0
    %3021 = vmatprep.subr.mxu0 0.0
    %3022 = vmatpush1.msra.mxu0 0.0
    %3023 = vmatprep.subr.mxu0 0.0
    %3024 = vmatpush1.msra.mxu0 0.0
    %3025 = vmatprep.subr.mxu0 0.0
    %3026 = vmatpush1.msra.mxu0 0.0
    %3027 = vmatprep.subr.mxu0 0.0
    %3028 = vmatpush1.msra.mxu0 0.0
    %3029 = vmatprep.subr.mxu0 0.0
    %3030 = vmatpush1.msra.mxu0 0.0
    %3031 = vmatprep.subr.mxu0 0.0
    %3032 = vmatpush1.msra.mxu0 0.0
    %3033 = vmatprep.subr.mxu0 0.0
    %3034 = vmatpush1.msra.mxu0 0.0
    %3035 = vmatprep.subr.mxu0 0.0
    %3036 = vmatpush1.msra.mxu0 0.0
    %3037 = vmatprep.subr.mxu0 0.0
    %3038 = vmatpush1.msra.mxu0 0.0
    %3039 = vmatprep.subr.mxu0 0.0
    %3040 = vmatpush1.msra.mxu0 0.0
    %3041 = vmatprep.subr.mxu0 0.0
    %3042 = vmatpush1.msra.mxu0 0.0
    %3043 = vmatprep.subr.mxu0 0.0
    %3044 = vmatpush1.msra.mxu0 0.0
    %3045 = vmatprep.mubr.f32.mxu0 0.0
    %3046 = vmatmul.mubr.f32.gmra.mrb[0].mxu0 %v2979
    %v3047 = vpop.f32.mrb[0].mxu0
    %v3048 = vadd.f32 0.0, %v3047
    %v3049 = vpop.f32.mrb[0].mxu0
    %v3050 = vadd.f32 0.0, %v3049
    %3051 = vdwg.mxu0
    %3052 = vmatprep.subr.mxu0 %v360
    %3053 = vmatpush1.msra.mxu0 %v359
    %3054 = vmatprep.subr.mxu0 %v364
    %3055 = vmatpush1.msra.mxu0 %v363
    %3056 = vmatprep.subr.mxu0 %v368
    %3057 = vmatpush1.msra.mxu0 %v367
    %3058 = vmatprep.subr.mxu0 %v372
    %3059 = vmatpush1.msra.mxu0 %v371
    %3060 = vmatprep.subr.mxu0 0.0
    %3061 = vmatpush1.msra.mxu0 0.0
    %3062 = vmatprep.subr.mxu0 0.0
    %3063 = vmatpush1.msra.mxu0 0.0
    %3064 = vmatprep.subr.mxu0 0.0
    %3065 = vmatpush1.msra.mxu0 0.0
    %3066 = vmatprep.subr.mxu0 0.0
    %3067 = vmatpush1.msra.mxu0 0.0
    %3068 = vmatprep.subr.mxu0 0.0
    %3069 = vmatpush1.msra.mxu0 0.0
    %3070 = vmatprep.subr.mxu0 0.0
    %3071 = vmatpush1.msra.mxu0 0.0
    %3072 = vmatprep.subr.mxu0 0.0
    %3073 = vmatpush1.msra.mxu0 0.0
    %3074 = vmatprep.subr.mxu0 0.0
    %3075 = vmatpush1.msra.mxu0 0.0
    %3076 = vmatprep.subr.mxu0 0.0
    %3077 = vmatpush1.msra.mxu0 0.0
    %3078 = vmatprep.subr.mxu0 0.0
    %3079 = vmatpush1.msra.mxu0 0.0
    %3080 = vmatprep.subr.mxu0 0.0
    %3081 = vmatpush1.msra.mxu0 0.0
    %3082 = vmatprep.subr.mxu0 0.0
    %3083 = vmatpush1.msra.mxu0 0.0
    %3084 = vmatprep.subr.mxu0 0.0
    %3085 = vmatpush1.msra.mxu0 0.0
    %3086 = vmatprep.subr.mxu0 0.0
    %3087 = vmatpush1.msra.mxu0 0.0
    %3088 = vmatprep.subr.mxu0 0.0
    %3089 = vmatpush1.msra.mxu0 0.0
    %3090 = vmatprep.subr.mxu0 0.0
    %3091 = vmatpush1.msra.mxu0 0.0
    %3092 = vmatprep.subr.mxu0 0.0
    %3093 = vmatpush1.msra.mxu0 0.0
    %3094 = vmatprep.subr.mxu0 0.0
    %3095 = vmatpush1.msra.mxu0 0.0
    %3096 = vmatprep.subr.mxu0 0.0
    %3097 = vmatpush1.msra.mxu0 0.0
    %3098 = vmatprep.subr.mxu0 0.0
    %3099 = vmatpush1.msra.mxu0 0.0
    %3100 = vmatprep.subr.mxu0 0.0
    %3101 = vmatpush1.msra.mxu0 0.0
    %3102 = vmatprep.subr.mxu0 0.0
    %3103 = vmatpush1.msra.mxu0 0.0
    %3104 = vmatprep.subr.mxu0 0.0
    %3105 = vmatpush1.msra.mxu0 0.0
    %3106 = vmatprep.subr.mxu0 0.0
    %3107 = vmatpush1.msra.mxu0 0.0
    %3108 = vmatprep.subr.mxu0 0.0
    %3109 = vmatpush1.msra.mxu0 0.0
    %3110 = vmatprep.subr.mxu0 0.0
    %3111 = vmatpush1.msra.mxu0 0.0
    %3112 = vmatprep.subr.mxu0 0.0
    %3113 = vmatpush1.msra.mxu0 0.0
    %3114 = vmatprep.subr.mxu0 0.0
    %3115 = vmatpush1.msra.mxu0 0.0
    %3116 = vmatprep.mubr.f32.mxu0 0.0
    %3117 = vmatmul.mubr.f32.gmra.mrb[0].mxu0 %v2979
    %v3118 = vpop.f32.mrb[0].mxu0
    %v3119 = vadd.f32 0.0, %v3118
    %v3120 = vpop.f32.mrb[0].mxu0
    %v3121 = vadd.f32 0.0, %v3120
    %3122 = vdwg.mxu0
    %v3124 = vsel %vm396, %v2977, 0
    %3126 = vmatprep.subr.mxu0 %v342
    %3127 = vmatpush1.msra.mxu0 %v341
    %3128 = vmatprep.subr.mxu0 %v346
    %3129 = vmatpush1.msra.mxu0 %v345
    %3130 = vmatprep.subr.mxu0 %v350
    %3131 = vmatpush1.msra.mxu0 %v349
    %3132 = vmatprep.subr.mxu0 %v354
    %3133 = vmatpush1.msra.mxu0 %v353
    %3134 = vmatprep.subr.mxu0 0.0
    %3135 = vmatpush1.msra.mxu0 0.0
    %3136 = vmatprep.subr.mxu0 0.0
    %3137 = vmatpush1.msra.mxu0 0.0
    %3138 = vmatprep.subr.mxu0 0.0
    %3139 = vmatpush1.msra.mxu0 0.0
    %3140 = vmatprep.subr.mxu0 0.0
    %3141 = vmatpush1.msra.mxu0 0.0
    %3142 = vmatprep.subr.mxu0 0.0
    %3143 = vmatpush1.msra.mxu0 0.0
    %3144 = vmatprep.subr.mxu0 0.0
    %3145 = vmatpush1.msra.mxu0 0.0
    %3146 = vmatprep.subr.mxu0 0.0
    %3147 = vmatpush1.msra.mxu0 0.0
    %3148 = vmatprep.subr.mxu0 0.0
    %3149 = vmatpush1.msra.mxu0 0.0
    %3150 = vmatprep.subr.mxu0 0.0
    %3151 = vmatpush1.msra.mxu0 0.0
    %3152 = vmatprep.subr.mxu0 0.0
    %3153 = vmatpush1.msra.mxu0 0.0
    %3154 = vmatprep.subr.mxu0 0.0
    %3155 = vmatpush1.msra.mxu0 0.0
    %3156 = vmatprep.subr.mxu0 0.0
    %3157 = vmatpush1.msra.mxu0 0.0
    %3158 = vmatprep.subr.mxu0 0.0
    %3159 = vmatpush1.msra.mxu0 0.0
    %3160 = vmatprep.subr.mxu0 0.0
    %3161 = vmatpush1.msra.mxu0 0.0
    %3162 = vmatprep.subr.mxu0 0.0
    %3163 = vmatpush1.msra.mxu0 0.0
    %3164 = vmatprep.subr.mxu0 0.0
    %3165 = vmatpush1.msra.mxu0 0.0
    %3166 = vmatprep.subr.mxu0 0.0
    %3167 = vmatpush1.msra.mxu0 0.0
    %3168 = vmatprep.subr.mxu0 0.0
    %3169 = vmatpush1.msra.mxu0 0.0
    %3170 = vmatprep.subr.mxu0 0.0
    %3171 = vmatpush1.msra.mxu0 0.0
    %3172 = vmatprep.subr.mxu0 0.0
    %3173 = vmatpush1.msra.mxu0 0.0
    %3174 = vmatprep.subr.mxu0 0.0
    %3175 = vmatpush1.msra.mxu0 0.0
    %3176 = vmatprep.subr.mxu0 0.0
    %3177 = vmatpush1.msra.mxu0 0.0
    %3178 = vmatprep.subr.mxu0 0.0
    %3179 = vmatpush1.msra.mxu0 0.0
    %3180 = vmatprep.subr.mxu0 0.0
    %3181 = vmatpush1.msra.mxu0 0.0
    %3182 = vmatprep.subr.mxu0 0.0
    %3183 = vmatpush1.msra.mxu0 0.0
    %3184 = vmatprep.subr.mxu0 0.0
    %3185 = vmatpush1.msra.mxu0 0.0
    %3186 = vmatprep.subr.mxu0 0.0
    %3187 = vmatpush1.msra.mxu0 0.0
    %3188 = vmatprep.subr.mxu0 0.0
    %3189 = vmatpush1.msra.mxu0 0.0
    %3190 = vmatprep.mubr.f32.mxu0 0.0
    %3191 = vmatmul.mubr.f32.gmra.mrb[0].mxu0 %v3124
    %v3192 = vpop.f32.mrb[0].mxu0
    %v3193 = vadd.f32 %v3048, %v3192
    %v3194 = vpop.f32.mrb[0].mxu0
    %v3195 = vadd.f32 %v3050, %v3194
    %3196 = vdwg.mxu0
    %3197 = vmatprep.subr.mxu0 %v344
    %3198 = vmatpush1.msra.mxu0 %v343
    %3199 = vmatprep.subr.mxu0 %v348
    %3200 = vmatpush1.msra.mxu0 %v347
    %3201 = vmatprep.subr.mxu0 %v352
    %3202 = vmatpush1.msra.mxu0 %v351
    %3203 = vmatprep.subr.mxu0 %v356
    %3204 = vmatpush1.msra.mxu0 %v355
    %3205 = vmatprep.subr.mxu0 0.0
    %3206 = vmatpush1.msra.mxu0 0.0
    %3207 = vmatprep.subr.mxu0 0.0
    %3208 = vmatpush1.msra.mxu0 0.0
    %3209 = vmatprep.subr.mxu0 0.0
    %3210 = vmatpush1.msra.mxu0 0.0
    %3211 = vmatprep.subr.mxu0 0.0
    %3212 = vmatpush1.msra.mxu0 0.0
    %3213 = vmatprep.subr.mxu0 0.0
    %3214 = vmatpush1.msra.mxu0 0.0
    %3215 = vmatprep.subr.mxu0 0.0
    %3216 = vmatpush1.msra.mxu0 0.0
    %3217 = vmatprep.subr.mxu0 0.0
    %3218 = vmatpush1.msra.mxu0 0.0
    %3219 = vmatprep.subr.mxu0 0.0
    %3220 = vmatpush1.msra.mxu0 0.0
    %3221 = vmatprep.subr.mxu0 0.0
    %3222 = vmatpush1.msra.mxu0 0.0
    %3223 = vmatprep.subr.mxu0 0.0
    %3224 = vmatpush1.msra.mxu0 0.0
    %3225 = vmatprep.subr.mxu0 0.0
    %3226 = vmatpush1.msra.mxu0 0.0
    %3227 = vmatprep.subr.mxu0 0.0
    %3228 = vmatpush1.msra.mxu0 0.0
    %3229 = vmatprep.subr.mxu0 0.0
    %3230 = vmatpush1.msra.mxu0 0.0
    %3231 = vmatprep.subr.mxu0 0.0
    %3232 = vmatpush1.msra.mxu0 0.0
    %3233 = vmatprep.subr.mxu0 0.0
    %3234 = vmatpush1.msra.mxu0 0.0
    %3235 = vmatprep.subr.mxu0 0.0
    %3236 = vmatpush1.msra.mxu0 0.0
    %3237 = vmatprep.subr.mxu0 0.0
    %3238 = vmatpush1.msra.mxu0 0.0
    %3239 = vmatprep.subr.mxu0 0.0
    %3240 = vmatpush1.msra.mxu0 0.0
    %3241 = vmatprep.subr.mxu0 0.0
    %3242 = vmatpush1.msra.mxu0 0.0
    %3243 = vmatprep.subr.mxu0 0.0
    %3244 = vmatpush1.msra.mxu0 0.0
    %3245 = vmatprep.subr.mxu0 0.0
    %3246 = vmatpush1.msra.mxu0 0.0
    %3247 = vmatprep.subr.mxu0 0.0
    %3248 = vmatpush1.msra.mxu0 0.0
    %3249 = vmatprep.subr.mxu0 0.0
    %3250 = vmatpush1.msra.mxu0 0.0
    %3251 = vmatprep.subr.mxu0 0.0
    %3252 = vmatpush1.msra.mxu0 0.0
    %3253 = vmatprep.subr.mxu0 0.0
    %3254 = vmatpush1.msra.mxu0 0.0
    %3255 = vmatprep.subr.mxu0 0.0
    %3256 = vmatpush1.msra.mxu0 0.0
    %3257 = vmatprep.subr.mxu0 0.0
    %3258 = vmatpush1.msra.mxu0 0.0
    %3259 = vmatprep.subr.mxu0 0.0
    %3260 = vmatpush1.msra.mxu0 0.0
    %3261 = vmatprep.mubr.f32.mxu0 0.0
    %3262 = vmatmul.mubr.f32.gmra.mrb[0].mxu0 %v3124
    %v3263 = vpop.f32.mrb[0].mxu0
    %v3264 = vadd.f32 %v3119, %v3263
    %v3265 = vpop.f32.mrb[0].mxu0
    %v3266 = vadd.f32 %v3121, %v3265
    %3267 = vdwg.mxu0
    %v3268 = vadd.f32 %v3193, %v852
    %v3269 = vadd.f32 %v3195, %v856
    %v3270 = vadd.f32 %v3264, %v860
    %v3271 = vadd.f32 %v3266, %v864
    %v3272 = vmul.f32 %v3268, 0.5
    %v3273 = vmul.f32 %v3269, 0.5
    %v3274 = vtanh.pop %v3272
    %v3275 = vtanh.pop %v3273
    %v3276 = vmul.f32 %v3274, 0.5
    %v3277 = vmul.f32 %v3275, 0.5
    %v3278 = vadd.f32 %v3276, 0.5
    %v3279 = vadd.f32 %v3277, 0.5
    %v3280 = vmul.f32 %v3278, %v3271
    %v3281 = vadd.f32 %v3270, %v3280
    %v3282 = vtanh.pop %v3281
    %v3283 = vsub.f32 1.0, %v3279
    %v3284 = vmul.f32 %v3283, %v3282
    %v3285 = vmul.f32 %v3279, %v2809
    %v3286 = vadd.f32 %v3284, %v3285
    %v3287 = vmul.f32 %v2812, %v3286
    %v3288 = vmul.f32 %v2813, %v2809
    %v3289 = vadd.f32 %v3287, %v3288
    %v3290 = vmul.f32 %v2812, %v3289
    %3291 = vst [vmem:[#allocation3 + $0x28] sm:$0xff] %v3290
    %v3292 = vld [vmem:[%s1 + $0x30] sm:$0xff]
    %v3293 = vsub.f32 1.0, %v3292
    %v3294 = vld [vmem:[#allocation2 + $0x90] sm:$0xff]
    %v3295 = vld [vmem:[#allocation2 + $0x98] sm:$0xff]
    %v3296 = vld [vmem:[#allocation2 + $0xa0] sm:$0xff]
    %3297 = vmatprep.subr.mxu0 %v330
    %3298 = vmatpush1.msra.mxu0 %v329
    %3299 = vmatprep.subr.mxu0 %v333
    %3300 = vmatpush1.msra.mxu0 %v332
    %3301 = vmatprep.subr.mxu0 %v336
    %3302 = vmatpush1.msra.mxu0 %v335
    %3303 = vmatprep.subr.mxu0 %v339
    %3304 = vmatpush1.msra.mxu0 %v338
    %3305 = vmatprep.subr.mxu0 0.0
    %3306 = vmatpush1.msra.mxu0 0.0
    %3307 = vmatprep.subr.mxu0 0.0
    %3308 = vmatpush1.msra.mxu0 0.0
    %3309 = vmatprep.subr.mxu0 0.0
    %3310 = vmatpush1.msra.mxu0 0.0
    %3311 = vmatprep.subr.mxu0 0.0
    %3312 = vmatpush1.msra.mxu0 0.0
    %3313 = vmatprep.subr.mxu0 0.0
    %3314 = vmatpush1.msra.mxu0 0.0
    %3315 = vmatprep.subr.mxu0 0.0
    %3316 = vmatpush1.msra.mxu0 0.0
    %3317 = vmatprep.subr.mxu0 0.0
    %3318 = vmatpush1.msra.mxu0 0.0
    %3319 = vmatprep.subr.mxu0 0.0
    %3320 = vmatpush1.msra.mxu0 0.0
    %3321 = vmatprep.subr.mxu0 0.0
    %3322 = vmatpush1.msra.mxu0 0.0
    %3323 = vmatprep.subr.mxu0 0.0
    %3324 = vmatpush1.msra.mxu0 0.0
    %3325 = vmatprep.subr.mxu0 0.0
    %3326 = vmatpush1.msra.mxu0 0.0
    %3327 = vmatprep.subr.mxu0 0.0
    %3328 = vmatpush1.msra.mxu0 0.0
    %3329 = vmatprep.subr.mxu0 0.0
    %3330 = vmatpush1.msra.mxu0 0.0
    %3331 = vmatprep.subr.mxu0 0.0
    %3332 = vmatpush1.msra.mxu0 0.0
    %3333 = vmatprep.subr.mxu0 0.0
    %3334 = vmatpush1.msra.mxu0 0.0
    %3335 = vmatprep.subr.mxu0 0.0
    %3336 = vmatpush1.msra.mxu0 0.0
    %3337 = vmatprep.subr.mxu0 0.0
    %3338 = vmatpush1.msra.mxu0 0.0
    %3339 = vmatprep.subr.mxu0 0.0
    %3340 = vmatpush1.msra.mxu0 0.0
    %3341 = vmatprep.subr.mxu0 0.0
    %3342 = vmatpush1.msra.mxu0 0.0
    %3343 = vmatprep.subr.mxu0 0.0
    %3344 = vmatpush1.msra.mxu0 0.0
    %3345 = vmatprep.subr.mxu0 0.0
    %3346 = vmatpush1.msra.mxu0 0.0
    %3347 = vmatprep.subr.mxu0 0.0
    %3348 = vmatpush1.msra.mxu0 0.0
    %3349 = vmatprep.subr.mxu0 0.0
    %3350 = vmatpush1.msra.mxu0 0.0
    %3351 = vmatprep.subr.mxu0 0.0
    %3352 = vmatpush1.msra.mxu0 0.0
    %3353 = vmatprep.subr.mxu0 0.0
    %3354 = vmatpush1.msra.mxu0 0.0
    %3355 = vmatprep.subr.mxu0 0.0
    %3356 = vmatpush1.msra.mxu0 0.0
    %3357 = vmatprep.subr.mxu0 0.0
    %3358 = vmatpush1.msra.mxu0 0.0
    %3359 = vmatprep.subr.mxu0 0.0
    %3360 = vmatpush1.msra.mxu0 0.0
    %3361 = vmatprep.mubr.f32.mxu0 0.0
    %3362 = vmatmul.mubr.f32.gmra.mrb[0].mxu0 %v3124
    %v3363 = vpop.f32.mrb[0].mxu0
    %v3364 = vadd.f32 %v384, %v3363
    %v3365 = vpop.f32.mrb[0].mxu0
    %v3366 = vadd.f32 %v388, %v3365
    %3367 = vdwg.mxu0
    %3368 = vmatprep.subr.mxu0 0.0
    %3369 = vmatpush1.msra.mxu0 %v331
    %3370 = vmatprep.subr.mxu0 0.0
    %3371 = vmatpush1.msra.mxu0 %v334
    %3372 = vmatprep.subr.mxu0 0.0
    %3373 = vmatpush1.msra.mxu0 %v337
    %3374 = vmatprep.subr.mxu0 0.0
    %3375 = vmatpush1.msra.mxu0 %v340
    %3376 = vmatprep.subr.mxu0 0.0
    %3377 = vmatpush1.msra.mxu0 0.0
    %3378 = vmatprep.subr.mxu0 0.0
    %3379 = vmatpush1.msra.mxu0 0.0
    %3380 = vmatprep.subr.mxu0 0.0
    %3381 = vmatpush1.msra.mxu0 0.0
    %3382 = vmatprep.subr.mxu0 0.0
    %3383 = vmatpush1.msra.mxu0 0.0
    %3384 = vmatprep.subr.mxu0 0.0
    %3385 = vmatpush1.msra.mxu0 0.0
    %3386 = vmatprep.subr.mxu0 0.0
    %3387 = vmatpush1.msra.mxu0 0.0
    %3388 = vmatprep.subr.mxu0 0.0
    %3389 = vmatpush1.msra.mxu0 0.0
    %3390 = vmatprep.subr.mxu0 0.0
    %3391 = vmatpush1.msra.mxu0 0.0
    %3392 = vmatprep.subr.mxu0 0.0
    %3393 = vmatpush1.msra.mxu0 0.0
    %3394 = vmatprep.subr.mxu0 0.0
    %3395 = vmatpush1.msra.mxu0 0.0
    %3396 = vmatprep.subr.mxu0 0.0
    %3397 = vmatpush1.msra.mxu0 0.0
    %3398 = vmatprep.subr.mxu0 0.0
    %3399 = vmatpush1.msra.mxu0 0.0
    %3400 = vmatprep.subr.mxu0 0.0
    %3401 = vmatpush1.msra.mxu0 0.0
    %3402 = vmatprep.subr.mxu0 0.0
    %3403 = vmatpush1.msra.mxu0 0.0
    %3404 = vmatprep.subr.mxu0 0.0
    %3405 = vmatpush1.msra.mxu0 0.0
    %3406 = vmatprep.subr.mxu0 0.0
    %3407 = vmatpush1.msra.mxu0 0.0
    %3408 = vmatprep.subr.mxu0 0.0
    %3409 = vmatpush1.msra.mxu0 0.0
    %3410 = vmatprep.subr.mxu0 0.0
    %3411 = vmatpush1.msra.mxu0 0.0
    %3412 = vmatprep.subr.mxu0 0.0
    %3413 = vmatpush1.msra.mxu0 0.0
    %3414 = vmatprep.subr.mxu0 0.0
    %3415 = vmatpush1.msra.mxu0 0.0
    %3416 = vmatprep.subr.mxu0 0.0
    %3417 = vmatpush1.msra.mxu0 0.0
    %3418 = vmatprep.subr.mxu0 0.0
    %3419 = vmatpush1.msra.mxu0 0.0
    %3420 = vmatprep.subr.mxu0 0.0
    %3421 = vmatpush1.msra.mxu0 0.0
    %3422 = vmatprep.subr.mxu0 0.0
    %3423 = vmatpush1.msra.mxu0 0.0
    %3424 = vmatprep.subr.mxu0 0.0
    %3425 = vmatpush1.msra.mxu0 0.0
    %3426 = vmatprep.subr.mxu0 0.0
    %3427 = vmatpush1.msra.mxu0 0.0
    %3428 = vmatprep.subr.mxu0 0.0
    %3429 = vmatpush1.msra.mxu0 0.0
    %3430 = vmatprep.subr.mxu0 0.0
    %3431 = vmatpush1.msra.mxu0 0.0
    %3432 = vmatprep.mubr.f32.mxu0 0.0
    %3433 = vmatmul.mubr.f32.gmra.mrb[0].mxu0 %v3124
    %v3434 = vpop.f32.mrb[0].mxu0
    %v3435 = vadd.f32 %v392, %v3434
    %v3436 = vpop.f32.mrb[0].mxu0
    %3437 = vdwg.mxu0
    %v3438 = vadd.f32 %v3294, %v3364
    %v3439 = vadd.f32 %v3295, %v3366
    %v3440 = vmul.f32 %v3438, 0.5
    %v3441 = vmul.f32 %v3439, 0.5
    %v3442 = vtanh.pop %v3440
    %v3443 = vtanh.pop %v3441
    %v3444 = vmul.f32 %v3442, 0.5
    %v3445 = vmul.f32 %v3443, 0.5
    %v3446 = vadd.f32 %v3444, 0.5
    %v3447 = vadd.f32 %v3445, 0.5
    %v3448 = vmul.f32 %v3446, %v3435
    %v3449 = vadd.f32 %v3296, %v3448
    %v3450 = vtanh.pop %v3449
    %v3451 = vsub.f32 1.0, %v3447
    %v3452 = vmul.f32 %v3451, %v3450
    %v3453 = vmul.f32 %v3447, %v2977
    %v3454 = vadd.f32 %v3452, %v3453
    %v3455 = vmul.f32 %v3292, %v3454
    %v3456 = vmul.f32 %v3293, %v2977
    %v3457 = vadd.f32 %v3455, %v3456
    %v3459 = vsel %vm396, %v3289, 0
    %3461 = vmatprep.subr.mxu0 %v358
    %3462 = vmatpush1.msra.mxu0 %v357
    %3463 = vmatprep.subr.mxu0 %v362
    %3464 = vmatpush1.msra.mxu0 %v361
    %3465 = vmatprep.subr.mxu0 %v366
    %3466 = vmatpush1.msra.mxu0 %v365
    %3467 = vmatprep.subr.mxu0 %v370
    %3468 = vmatpush1.msra.mxu0 %v369
    %3469 = vmatprep.subr.mxu0 0.0
    %3470 = vmatpush1.msra.mxu0 0.0
    %3471 = vmatprep.subr.mxu0 0.0
    %3472 = vmatpush1.msra.mxu0 0.0
    %3473 = vmatprep.subr.mxu0 0.0
    %3474 = vmatpush1.msra.mxu0 0.0
    %3475 = vmatprep.subr.mxu0 0.0
    %3476 = vmatpush1.msra.mxu0 0.0
    %3477 = vmatprep.subr.mxu0 0.0
    %3478 = vmatpush1.msra.mxu0 0.0
    %3479 = vmatprep.subr.mxu0 0.0
    %3480 = vmatpush1.msra.mxu0 0.0
    %3481 = vmatprep.subr.mxu0 0.0
    %3482 = vmatpush1.msra.mxu0 0.0
    %3483 = vmatprep.subr.mxu0 0.0
    %3484 = vmatpush1.msra.mxu0 0.0
    %3485 = vmatprep.subr.mxu0 0.0
    %3486 = vmatpush1.msra.mxu0 0.0
    %3487 = vmatprep.subr.mxu0 0.0
    %3488 = vmatpush1.msra.mxu0 0.0
    %3489 = vmatprep.subr.mxu0 0.0
    %3490 = vmatpush1.msra.mxu0 0.0
    %3491 = vmatprep.subr.mxu0 0.0
    %3492 = vmatpush1.msra.mxu0 0.0
    %3493 = vmatprep.subr.mxu0 0.0
    %3494 = vmatpush1.msra.mxu0 0.0
    %3495 = vmatprep.subr.mxu0 0.0
    %3496 = vmatpush1.msra.mxu0 0.0
    %3497 = vmatprep.subr.mxu0 0.0
    %3498 = vmatpush1.msra.mxu0 0.0
    %3499 = vmatprep.subr.mxu0 0.0
    %3500 = vmatpush1.msra.mxu0 0.0
    %3501 = vmatprep.subr.mxu0 0.0
    %3502 = vmatpush1.msra.mxu0 0.0
    %3503 = vmatprep.subr.mxu0 0.0
    %3504 = vmatpush1.msra.mxu0 0.0
    %3505 = vmatprep.subr.mxu0 0.0
    %3506 = vmatpush1.msra.mxu0 0.0
    %3507 = vmatprep.subr.mxu0 0.0
    %3508 = vmatpush1.msra.mxu0 0.0
    %3509 = vmatprep.subr.mxu0 0.0
    %3510 = vmatpush1.msra.mxu0 0.0
    %3511 = vmatprep.subr.mxu0 0.0
    %3512 = vmatpush1.msra.mxu0 0.0
    %3513 = vmatprep.subr.mxu0 0.0
    %3514 = vmatpush1.msra.mxu0 0.0
    %3515 = vmatprep.subr.mxu0 0.0
    %3516 = vmatpush1.msra.mxu0 0.0
    %3517 = vmatprep.subr.mxu0 0.0
    %3518 = vmatpush1.msra.mxu0 0.0
    %3519 = vmatprep.subr.mxu0 0.0
    %3520 = vmatpush1.msra.mxu0 0.0
    %3521 = vmatprep.subr.mxu0 0.0
    %3522 = vmatpush1.msra.mxu0 0.0
    %3523 = vmatprep.subr.mxu0 0.0
    %3524 = vmatpush1.msra.mxu0 0.0
    %3525 = vmatprep.mubr.f32.mxu0 0.0
    %3526 = vmatmul.mubr.f32.gmra.mrb[0].mxu0 %v3459
    %v3527 = vpop.f32.mrb[0].mxu0
    %v3528 = vadd.f32 0.0, %v3527
    %v3529 = vpop.f32.mrb[0].mxu0
    %v3530 = vadd.f32 0.0, %v3529
    %3531 = vdwg.mxu0
    %3532 = vmatprep.subr.mxu0 %v360
    %3533 = vmatpush1.msra.mxu0 %v359
    %3534 = vmatprep.subr.mxu0 %v364
    %3535 = vmatpush1.msra.mxu0 %v363
    %3536 = vmatprep.subr.mxu0 %v368
    %3537 = vmatpush1.msra.mxu0 %v367
    %3538 = vmatprep.subr.mxu0 %v372
    %3539 = vmatpush1.msra.mxu0 %v371
    %3540 = vmatprep.subr.mxu0 0.0
    %3541 = vmatpush1.msra.mxu0 0.0
    %3542 = vmatprep.subr.mxu0 0.0
    %3543 = vmatpush1.msra.mxu0 0.0
    %3544 = vmatprep.subr.mxu0 0.0
    %3545 = vmatpush1.msra.mxu0 0.0
    %3546 = vmatprep.subr.mxu0 0.0
    %3547 = vmatpush1.msra.mxu0 0.0
    %3548 = vmatprep.subr.mxu0 0.0
    %3549 = vmatpush1.msra.mxu0 0.0
    %3550 = vmatprep.subr.mxu0 0.0
    %3551 = vmatpush1.msra.mxu0 0.0
    %3552 = vmatprep.subr.mxu0 0.0
    %3553 = vmatpush1.msra.mxu0 0.0
    %3554 = vmatprep.subr.mxu0 0.0
    %3555 = vmatpush1.msra.mxu0 0.0
    %3556 = vmatprep.subr.mxu0 0.0
    %3557 = vmatpush1.msra.mxu0 0.0
    %3558 = vmatprep.subr.mxu0 0.0
    %3559 = vmatpush1.msra.mxu0 0.0
    %3560 = vmatprep.subr.mxu0 0.0
    %3561 = vmatpush1.msra.mxu0 0.0
    %3562 = vmatprep.subr.mxu0 0.0
    %3563 = vmatpush1.msra.mxu0 0.0
    %3564 = vmatprep.subr.mxu0 0.0
    %3565 = vmatpush1.msra.mxu0 0.0
    %3566 = vmatprep.subr.mxu0 0.0
    %3567 = vmatpush1.msra.mxu0 0.0
    %3568 = vmatprep.subr.mxu0 0.0
    %3569 = vmatpush1.msra.mxu0 0.0
    %3570 = vmatprep.subr.mxu0 0.0
    %3571 = vmatpush1.msra.mxu0 0.0
    %3572 = vmatprep.subr.mxu0 0.0
    %3573 = vmatpush1.msra.mxu0 0.0
    %3574 = vmatprep.subr.mxu0 0.0
    %3575 = vmatpush1.msra.mxu0 0.0
    %3576 = vmatprep.subr.mxu0 0.0
    %3577 = vmatpush1.msra.mxu0 0.0
    %3578 = vmatprep.subr.mxu0 0.0
    %3579 = vmatpush1.msra.mxu0 0.0
    %3580 = vmatprep.subr.mxu0 0.0
    %3581 = vmatpush1.msra.mxu0 0.0
    %3582 = vmatprep.subr.mxu0 0.0
    %3583 = vmatpush1.msra.mxu0 0.0
    %3584 = vmatprep.subr.mxu0 0.0
    %3585 = vmatpush1.msra.mxu0 0.0
    %3586 = vmatprep.subr.mxu0 0.0
    %3587 = vmatpush1.msra.mxu0 0.0
    %3588 = vmatprep.subr.mxu0 0.0
    %3589 = vmatpush1.msra.mxu0 0.0
    %3590 = vmatprep.subr.mxu0 0.0
    %3591 = vmatpush1.msra.mxu0 0.0
    %3592 = vmatprep.subr.mxu0 0.0
    %3593 = vmatpush1.msra.mxu0 0.0
    %3594 = vmatprep.subr.mxu0 0.0
    %3595 = vmatpush1.msra.mxu0 0.0
    %3596 = vmatprep.mubr.f32.mxu0 0.0
    %3597 = vmatmul.mubr.f32.gmra.mrb[0].mxu0 %v3459
    %v3598 = vpop.f32.mrb[0].mxu0
    %v3599 = vadd.f32 0.0, %v3598
    %v3600 = vpop.f32.mrb[0].mxu0
    %v3601 = vadd.f32 0.0, %v3600
    %3602 = vdwg.mxu0
    %v3604 = vsel %vm396, %v3457, 0
    %3606 = vmatprep.subr.mxu0 %v342
    %3607 = vmatpush1.msra.mxu0 %v341
    %3608 = vmatprep.subr.mxu0 %v346
    %3609 = vmatpush1.msra.mxu0 %v345
    %3610 = vmatprep.subr.mxu0 %v350
    %3611 = vmatpush1.msra.mxu0 %v349
    %3612 = vmatprep.subr.mxu0 %v354
    %3613 = vmatpush1.msra.mxu0 %v353
    %3614 = vmatprep.subr.mxu0 0.0
    %3615 = vmatpush1.msra.mxu0 0.0
    %3616 = vmatprep.subr.mxu0 0.0
    %3617 = vmatpush1.msra.mxu0 0.0
    %3618 = vmatprep.subr.mxu0 0.0
    %3619 = vmatpush1.msra.mxu0 0.0
    %3620 = vmatprep.subr.mxu0 0.0
    %3621 = vmatpush1.msra.mxu0 0.0
    %3622 = vmatprep.subr.mxu0 0.0
    %3623 = vmatpush1.msra.mxu0 0.0
    %3624 = vmatprep.subr.mxu0 0.0
    %3625 = vmatpush1.msra.mxu0 0.0
    %3626 = vmatprep.subr.mxu0 0.0
    %3627 = vmatpush1.msra.mxu0 0.0
    %3628 = vmatprep.subr.mxu0 0.0
    %3629 = vmatpush1.msra.mxu0 0.0
    %3630 = vmatprep.subr.mxu0 0.0
    %3631 = vmatpush1.msra.mxu0 0.0
    %3632 = vmatprep.subr.mxu0 0.0
    %3633 = vmatpush1.msra.mxu0 0.0
    %3634 = vmatprep.subr.mxu0 0.0
    %3635 = vmatpush1.msra.mxu0 0.0
    %3636 = vmatprep.subr.mxu0 0.0
    %3637 = vmatpush1.msra.mxu0 0.0
    %3638 = vmatprep.subr.mxu0 0.0
    %3639 = vmatpush1.msra.mxu0 0.0
    %3640 = vmatprep.subr.mxu0 0.0
    %3641 = vmatpush1.msra.mxu0 0.0
    %3642 = vmatprep.subr.mxu0 0.0
    %3643 = vmatpush1.msra.mxu0 0.0
    %3644 = vmatprep.subr.mxu0 0.0
    %3645 = vmatpush1.msra.mxu0 0.0
    %3646 = vmatprep.subr.mxu0 0.0
    %3647 = vmatpush1.msra.mxu0 0.0
    %3648 = vmatprep.subr.mxu0 0.0
    %3649 = vmatpush1.msra.mxu0 0.0
    %3650 = vmatprep.subr.mxu0 0.0
    %3651 = vmatpush1.msra.mxu0 0.0
    %3652 = vmatprep.subr.mxu0 0.0
    %3653 = vmatpush1.msra.mxu0 0.0
    %3654 = vmatprep.subr.mxu0 0.0
    %3655 = vmatpush1.msra.mxu0 0.0
    %3656 = vmatprep.subr.mxu0 0.0
    %3657 = vmatpush1.msra.mxu0 0.0
    %3658 = vmatprep.subr.mxu0 0.0
    %3659 = vmatpush1.msra.mxu0 0.0
    %3660 = vmatprep.subr.mxu0 0.0
    %3661 = vmatpush1.msra.mxu0 0.0
    %3662 = vmatprep.subr.mxu0 0.0
    %3663 = vmatpush1.msra.mxu0 0.0
    %3664 = vmatprep.subr.mxu0 0.0
    %3665 = vmatpush1.msra.mxu0 0.0
    %3666 = vmatprep.subr.mxu0 0.0
    %3667 = vmatpush1.msra.mxu0 0.0
    %3668 = vmatprep.subr.mxu0 0.0
    %3669 = vmatpush1.msra.mxu0 0.0
    %3670 = vmatprep.mubr.f32.mxu0 0.0
    %3671 = vmatmul.mubr.f32.gmra.mrb[0].mxu0 %v3604
    %v3672 = vpop.f32.mrb[0].mxu0
    %v3673 = vadd.f32 %v3528, %v3672
    %v3674 = vpop.f32.mrb[0].mxu0
    %v3675 = vadd.f32 %v3530, %v3674
    %3676 = vdwg.mxu0
    %3677 = vmatprep.subr.mxu0 %v344
    %3678 = vmatpush1.msra.mxu0 %v343
    %3679 = vmatprep.subr.mxu0 %v348
    %3680 = vmatpush1.msra.mxu0 %v347
    %3681 = vmatprep.subr.mxu0 %v352
    %3682 = vmatpush1.msra.mxu0 %v351
    %3683 = vmatprep.subr.mxu0 %v356
    %3684 = vmatpush1.msra.mxu0 %v355
    %3685 = vmatprep.subr.mxu0 0.0
    %3686 = vmatpush1.msra.mxu0 0.0
    %3687 = vmatprep.subr.mxu0 0.0
    %3688 = vmatpush1.msra.mxu0 0.0
    %3689 = vmatprep.subr.mxu0 0.0
    %3690 = vmatpush1.msra.mxu0 0.0
    %3691 = vmatprep.subr.mxu0 0.0
    %3692 = vmatpush1.msra.mxu0 0.0
    %3693 = vmatprep.subr.mxu0 0.0
    %3694 = vmatpush1.msra.mxu0 0.0
    %3695 = vmatprep.subr.mxu0 0.0
    %3696 = vmatpush1.msra.mxu0 0.0
    %3697 = vmatprep.subr.mxu0 0.0
    %3698 = vmatpush1.msra.mxu0 0.0
    %3699 = vmatprep.subr.mxu0 0.0
    %3700 = vmatpush1.msra.mxu0 0.0
    %3701 = vmatprep.subr.mxu0 0.0
    %3702 = vmatpush1.msra.mxu0 0.0
    %3703 = vmatprep.subr.mxu0 0.0
    %3704 = vmatpush1.msra.mxu0 0.0
    %3705 = vmatprep.subr.mxu0 0.0
    %3706 = vmatpush1.msra.mxu0 0.0
    %3707 = vmatprep.subr.mxu0 0.0
    %3708 = vmatpush1.msra.mxu0 0.0
    %3709 = vmatprep.subr.mxu0 0.0
    %3710 = vmatpush1.msra.mxu0 0.0
    %3711 = vmatprep.subr.mxu0 0.0
    %3712 = vmatpush1.msra.mxu0 0.0
    %3713 = vmatprep.subr.mxu0 0.0
    %3714 = vmatpush1.msra.mxu0 0.0
    %3715 = vmatprep.subr.mxu0 0.0
    %3716 = vmatpush1.msra.mxu0 0.0
    %3717 = vmatprep.subr.mxu0 0.0
    %3718 = vmatpush1.msra.mxu0 0.0
    %3719 = vmatprep.subr.mxu0 0.0
    %3720 = vmatpush1.msra.mxu0 0.0
    %3721 = vmatprep.subr.mxu0 0.0
    %3722 = vmatpush1.msra.mxu0 0.0
    %3723 = vmatprep.subr.mxu0 0.0
    %3724 = vmatpush1.msra.mxu0 0.0
    %3725 = vmatprep.subr.mxu0 0.0
    %3726 = vmatpush1.msra.mxu0 0.0
    %3727 = vmatprep.subr.mxu0 0.0
    %3728 = vmatpush1.msra.mxu0 0.0
    %3729 = vmatprep.subr.mxu0 0.0
    %3730 = vmatpush1.msra.mxu0 0.0
    %3731 = vmatprep.subr.mxu0 0.0
    %3732 = vmatpush1.msra.mxu0 0.0
    %3733 = vmatprep.subr.mxu0 0.0
    %3734 = vmatpush1.msra.mxu0 0.0
    %3735 = vmatprep.subr.mxu0 0.0
    %3736 = vmatpush1.msra.mxu0 0.0
    %3737 = vmatprep.subr.mxu0 0.0
    %3738 = vmatpush1.msra.mxu0 0.0
    %3739 = vmatprep.subr.mxu0 0.0
    %3740 = vmatpush1.msra.mxu0 0.0
    %3741 = vmatprep.mubr.f32.mxu0 0.0
    %3742 = vmatmul.mubr.f32.gmra.mrb[0].mxu0 %v3604
    %v3743 = vpop.f32.mrb[0].mxu0
    %v3744 = vadd.f32 %v3599, %v3743
    %v3745 = vpop.f32.mrb[0].mxu0
    %v3746 = vadd.f32 %v3601, %v3745
    %3747 = vdwg.mxu0
    %v3748 = vadd.f32 %v3673, %v852
    %v3749 = vadd.f32 %v3675, %v856
    %v3750 = vadd.f32 %v3744, %v860
    %v3751 = vadd.f32 %v3746, %v864
    %v3752 = vmul.f32 %v3748, 0.5
    %v3753 = vmul.f32 %v3749, 0.5
    %v3754 = vtanh.pop %v3752
    %v3755 = vtanh.pop %v3753
    %v3756 = vmul.f32 %v3754, 0.5
    %v3757 = vmul.f32 %v3755, 0.5
    %v3758 = vadd.f32 %v3756, 0.5
    %v3759 = vadd.f32 %v3757, 0.5
    %v3760 = vmul.f32 %v3758, %v3751
    %v3761 = vadd.f32 %v3750, %v3760
    %v3762 = vtanh.pop %v3761
    %v3763 = vsub.f32 1.0, %v3759
    %v3764 = vmul.f32 %v3763, %v3762
    %v3765 = vmul.f32 %v3759, %v3289
    %v3766 = vadd.f32 %v3764, %v3765
    %v3767 = vmul.f32 %v3292, %v3766
    %v3768 = vmul.f32 %v3293, %v3289
    %v3769 = vadd.f32 %v3767, %v3768
    %v3770 = vmul.f32 %v3292, %v3769
    %3771 = vst [vmem:[#allocation3 + $0x30] sm:$0xff] %v3770
    %v3772 = vld [vmem:[%s1 + $0x38] sm:$0xff]
    %v3773 = vsub.f32 1.0, %v3772
    %v3774 = vld [vmem:[#allocation2 + $0xa8] sm:$0xff]
    %v3775 = vld [vmem:[#allocation2 + $0xb0] sm:$0xff]
    %v3776 = vld [vmem:[#allocation2 + $0xb8] sm:$0xff]
    %3777 = vmatprep.subr.mxu0 %v330
    %3778 = vmatpush1.msra.mxu0 %v329
    %3779 = vmatprep.subr.mxu0 %v333
    %3780 = vmatpush1.msra.mxu0 %v332
    %3781 = vmatprep.subr.mxu0 %v336
    %3782 = vmatpush1.msra.mxu0 %v335
    %3783 = vmatprep.subr.mxu0 %v339
    %3784 = vmatpush1.msra.mxu0 %v338
    %3785 = vmatprep.subr.mxu0 0.0
    %3786 = vmatpush1.msra.mxu0 0.0
    %3787 = vmatprep.subr.mxu0 0.0
    %3788 = vmatpush1.msra.mxu0 0.0
    %3789 = vmatprep.subr.mxu0 0.0
    %3790 = vmatpush1.msra.mxu0 0.0
    %3791 = vmatprep.subr.mxu0 0.0
    %3792 = vmatpush1.msra.mxu0 0.0
    %3793 = vmatprep.subr.mxu0 0.0
    %3794 = vmatpush1.msra.mxu0 0.0
    %3795 = vmatprep.subr.mxu0 0.0
    %3796 = vmatpush1.msra.mxu0 0.0
    %3797 = vmatprep.subr.mxu0 0.0
    %3798 = vmatpush1.msra.mxu0 0.0
    %3799 = vmatprep.subr.mxu0 0.0
    %3800 = vmatpush1.msra.mxu0 0.0
    %3801 = vmatprep.subr.mxu0 0.0
    %3802 = vmatpush1.msra.mxu0 0.0
    %3803 = vmatprep.subr.mxu0 0.0
    %3804 = vmatpush1.msra.mxu0 0.0
    %3805 = vmatprep.subr.mxu0 0.0
    %3806 = vmatpush1.msra.mxu0 0.0
    %3807 = vmatprep.subr.mxu0 0.0
    %3808 = vmatpush1.msra.mxu0 0.0
    %3809 = vmatprep.subr.mxu0 0.0
    %3810 = vmatpush1.msra.mxu0 0.0
    %3811 = vmatprep.subr.mxu0 0.0
    %3812 = vmatpush1.msra.mxu0 0.0
    %3813 = vmatprep.subr.mxu0 0.0
    %3814 = vmatpush1.msra.mxu0 0.0
    %3815 = vmatprep.subr.mxu0 0.0
    %3816 = vmatpush1.msra.mxu0 0.0
    %3817 = vmatprep.subr.mxu0 0.0
    %3818 = vmatpush1.msra.mxu0 0.0
    %3819 = vmatprep.subr.mxu0 0.0
    %3820 = vmatpush1.msra.mxu0 0.0
    %3821 = vmatprep.subr.mxu0 0.0
    %3822 = vmatpush1.msra.mxu0 0.0
    %3823 = vmatprep.subr.mxu0 0.0
    %3824 = vmatpush1.msra.mxu0 0.0
    %3825 = vmatprep.subr.mxu0 0.0
    %3826 = vmatpush1.msra.mxu0 0.0
    %3827 = vmatprep.subr.mxu0 0.0
    %3828 = vmatpush1.msra.mxu0 0.0
    %3829 = vmatprep.subr.mxu0 0.0
    %3830 = vmatpush1.msra.mxu0 0.0
    %3831 = vmatprep.subr.mxu0 0.0
    %3832 = vmatpush1.msra.mxu0 0.0
    %3833 = vmatprep.subr.mxu0 0.0
    %3834 = vmatpush1.msra.mxu0 0.0
    %3835 = vmatprep.subr.mxu0 0.0
    %3836 = vmatpush1.msra.mxu0 0.0
    %3837 = vmatprep.subr.mxu0 0.0
    %3838 = vmatpush1.msra.mxu0 0.0
    %3839 = vmatprep.subr.mxu0 0.0
    %3840 = vmatpush1.msra.mxu0 0.0
    %3841 = vmatprep.mubr.f32.mxu0 0.0
    %3842 = vmatmul.mubr.f32.gmra.mrb[0].mxu0 %v3604
    %v3843 = vpop.f32.mrb[0].mxu0
    %v3844 = vadd.f32 %v384, %v3843
    %v3845 = vpop.f32.mrb[0].mxu0
    %v3846 = vadd.f32 %v388, %v3845
    %3847 = vdwg.mxu0
    %3848 = vmatprep.subr.mxu0 0.0
    %3849 = vmatpush1.msra.mxu0 %v331
    %3850 = vmatprep.subr.mxu0 0.0
    %3851 = vmatpush1.msra.mxu0 %v334
    %3852 = vmatprep.subr.mxu0 0.0
    %3853 = vmatpush1.msra.mxu0 %v337
    %3854 = vmatprep.subr.mxu0 0.0
    %3855 = vmatpush1.msra.mxu0 %v340
    %3856 = vmatprep.subr.mxu0 0.0
    %3857 = vmatpush1.msra.mxu0 0.0
    %3858 = vmatprep.subr.mxu0 0.0
    %3859 = vmatpush1.msra.mxu0 0.0
    %3860 = vmatprep.subr.mxu0 0.0
    %3861 = vmatpush1.msra.mxu0 0.0
    %3862 = vmatprep.subr.mxu0 0.0
    %3863 = vmatpush1.msra.mxu0 0.0
    %3864 = vmatprep.subr.mxu0 0.0
    %3865 = vmatpush1.msra.mxu0 0.0
    %3866 = vmatprep.subr.mxu0 0.0
    %3867 = vmatpush1.msra.mxu0 0.0
    %3868 = vmatprep.subr.mxu0 0.0
    %3869 = vmatpush1.msra.mxu0 0.0
    %3870 = vmatprep.subr.mxu0 0.0
    %3871 = vmatpush1.msra.mxu0 0.0
    %3872 = vmatprep.subr.mxu0 0.0
    %3873 = vmatpush1.msra.mxu0 0.0
    %3874 = vmatprep.subr.mxu0 0.0
    %3875 = vmatpush1.msra.mxu0 0.0
    %3876 = vmatprep.subr.mxu0 0.0
    %3877 = vmatpush1.msra.mxu0 0.0
    %3878 = vmatprep.subr.mxu0 0.0
    %3879 = vmatpush1.msra.mxu0 0.0
    %3880 = vmatprep.subr.mxu0 0.0
    %3881 = vmatpush1.msra.mxu0 0.0
    %3882 = vmatprep.subr.mxu0 0.0
    %3883 = vmatpush1.msra.mxu0 0.0
    %3884 = vmatprep.subr.mxu0 0.0
    %3885 = vmatpush1.msra.mxu0 0.0
    %3886 = vmatprep.subr.mxu0 0.0
    %3887 = vmatpush1.msra.mxu0 0.0
    %3888 = vmatprep.subr.mxu0 0.0
    %3889 = vmatpush1.msra.mxu0 0.0
    %3890 = vmatprep.subr.mxu0 0.0
    %3891 = vmatpush1.msra.mxu0 0.0
    %3892 = vmatprep.subr.mxu0 0.0
    %3893 = vmatpush1.msra.mxu0 0.0
    %3894 = vmatprep.subr.mxu0 0.0
    %3895 = vmatpush1.msra.mxu0 0.0
    %3896 = vmatprep.subr.mxu0 0.0
    %3897 = vmatpush1.msra.mxu0 0.0
    %3898 = vmatprep.subr.mxu0 0.0
    %3899 = vmatpush1.msra.mxu0 0.0
    %3900 = vmatprep.subr.mxu0 0.0
    %3901 = vmatpush1.msra.mxu0 0.0
    %3902 = vmatprep.subr.mxu0 0.0
    %3903 = vmatpush1.msra.mxu0 0.0
    %3904 = vmatprep.subr.mxu0 0.0
    %3905 = vmatpush1.msra.mxu0 0.0
    %3906 = vmatprep.subr.mxu0 0.0
    %3907 = vmatpush1.msra.mxu0 0.0
    %3908 = vmatprep.subr.mxu0 0.0
    %3909 = vmatpush1.msra.mxu0 0.0
    %3910 = vmatprep.subr.mxu0 0.0
    %3911 = vmatpush1.msra.mxu0 0.0
    %3912 = vmatprep.mubr.f32.mxu0 0.0
    %3913 = vmatmul.mubr.f32.gmra.mrb[0].mxu0 %v3604
    %v3914 = vpop.f32.mrb[0].mxu0
    %v3915 = vadd.f32 %v392, %v3914
    %v3916 = vpop.f32.mrb[0].mxu0
    %3917 = vdwg.mxu0
    %v3918 = vadd.f32 %v3774, %v3844
    %v3919 = vadd.f32 %v3775, %v3846
    %v3920 = vmul.f32 %v3918, 0.5
    %v3921 = vmul.f32 %v3919, 0.5
    %v3922 = vtanh.pop %v3920
    %v3923 = vtanh.pop %v3921
    %v3924 = vmul.f32 %v3922, 0.5
    %v3925 = vmul.f32 %v3923, 0.5
    %v3926 = vadd.f32 %v3924, 0.5
    %v3927 = vadd.f32 %v3925, 0.5
    %v3928 = vmul.f32 %v3926, %v3915
    %v3929 = vadd.f32 %v3776, %v3928
    %v3930 = vtanh.pop %v3929
    %v3931 = vsub.f32 1.0, %v3927
    %v3932 = vmul.f32 %v3931, %v3930
    %v3933 = vmul.f32 %v3927, %v3457
    %v3934 = vadd.f32 %v3932, %v3933
    %v3935 = vmul.f32 %v3772, %v3934
    %v3936 = vmul.f32 %v3773, %v3457
    %v3937 = vadd.f32 %v3935, %v3936
    %v3939 = vsel %vm396, %v3769, 0
    %3941 = vmatprep.subr.mxu0 %v358
    %3942 = vmatpush1.msra.mxu0 %v357
    %3943 = vmatprep.subr.mxu0 %v362
    %3944 = vmatpush1.msra.mxu0 %v361
    %3945 = vmatprep.subr.mxu0 %v366
    %3946 = vmatpush1.msra.mxu0 %v365
    %3947 = vmatprep.subr.mxu0 %v370
    %3948 = vmatpush1.msra.mxu0 %v369
    %3949 = vmatprep.subr.mxu0 0.0
    %3950 = vmatpush1.msra.mxu0 0.0
    %3951 = vmatprep.subr.mxu0 0.0
    %3952 = vmatpush1.msra.mxu0 0.0
    %3953 = vmatprep.subr.mxu0 0.0
    %3954 = vmatpush1.msra.mxu0 0.0
    %3955 = vmatprep.subr.mxu0 0.0
    %3956 = vmatpush1.msra.mxu0 0.0
    %3957 = vmatprep.subr.mxu0 0.0
    %3958 = vmatpush1.msra.mxu0 0.0
    %3959 = vmatprep.subr.mxu0 0.0
    %3960 = vmatpush1.msra.mxu0 0.0
    %3961 = vmatprep.subr.mxu0 0.0
    %3962 = vmatpush1.msra.mxu0 0.0
    %3963 = vmatprep.subr.mxu0 0.0
    %3964 = vmatpush1.msra.mxu0 0.0
    %3965 = vmatprep.subr.mxu0 0.0
    %3966 = vmatpush1.msra.mxu0 0.0
    %3967 = vmatprep.subr.mxu0 0.0
    %3968 = vmatpush1.msra.mxu0 0.0
    %3969 = vmatprep.subr.mxu0 0.0
    %3970 = vmatpush1.msra.mxu0 0.0
    %3971 = vmatprep.subr.mxu0 0.0
    %3972 = vmatpush1.msra.mxu0 0.0
    %3973 = vmatprep.subr.mxu0 0.0
    %3974 = vmatpush1.msra.mxu0 0.0
    %3975 = vmatprep.subr.mxu0 0.0
    %3976 = vmatpush1.msra.mxu0 0.0
    %3977 = vmatprep.subr.mxu0 0.0
    %3978 = vmatpush1.msra.mxu0 0.0
    %3979 = vmatprep.subr.mxu0 0.0
    %3980 = vmatpush1.msra.mxu0 0.0
    %3981 = vmatprep.subr.mxu0 0.0
    %3982 = vmatpush1.msra.mxu0 0.0
    %3983 = vmatprep.subr.mxu0 0.0
    %3984 = vmatpush1.msra.mxu0 0.0
    %3985 = vmatprep.subr.mxu0 0.0
    %3986 = vmatpush1.msra.mxu0 0.0
    %3987 = vmatprep.subr.mxu0 0.0
    %3988 = vmatpush1.msra.mxu0 0.0
    %3989 = vmatprep.subr.mxu0 0.0
    %3990 = vmatpush1.msra.mxu0 0.0
    %3991 = vmatprep.subr.mxu0 0.0
    %3992 = vmatpush1.msra.mxu0 0.0
    %3993 = vmatprep.subr.mxu0 0.0
    %3994 = vmatpush1.msra.mxu0 0.0
    %3995 = vmatprep.subr.mxu0 0.0
    %3996 = vmatpush1.msra.mxu0 0.0
    %3997 = vmatprep.subr.mxu0 0.0
    %3998 = vmatpush1.msra.mxu0 0.0
    %3999 = vmatprep.subr.mxu0 0.0
    %4000 = vmatpush1.msra.mxu0 0.0
    %4001 = vmatprep.subr.mxu0 0.0
    %4002 = vmatpush1.msra.mxu0 0.0
    %4003 = vmatprep.subr.mxu0 0.0
    %4004 = vmatpush1.msra.mxu0 0.0
    %4005 = vmatprep.mubr.f32.mxu0 0.0
    %4006 = vmatmul.mubr.f32.gmra.mrb[0].mxu0 %v3939
    %v4007 = vpop.f32.mrb[0].mxu0
    %v4008 = vadd.f32 0.0, %v4007
    %v4009 = vpop.f32.mrb[0].mxu0
    %v4010 = vadd.f32 0.0, %v4009
    %4011 = vdwg.mxu0
    %4012 = vmatprep.subr.mxu0 %v360
    %4013 = vmatpush1.msra.mxu0 %v359
    %4014 = vmatprep.subr.mxu0 %v364
    %4015 = vmatpush1.msra.mxu0 %v363
    %4016 = vmatprep.subr.mxu0 %v368
    %4017 = vmatpush1.msra.mxu0 %v367
    %4018 = vmatprep.subr.mxu0 %v372
    %4019 = vmatpush1.msra.mxu0 %v371
    %4020 = vmatprep.subr.mxu0 0.0
    %4021 = vmatpush1.msra.mxu0 0.0
    %4022 = vmatprep.subr.mxu0 0.0
    %4023 = vmatpush1.msra.mxu0 0.0
    %4024 = vmatprep.subr.mxu0 0.0
    %4025 = vmatpush1.msra.mxu0 0.0
    %4026 = vmatprep.subr.mxu0 0.0
    %4027 = vmatpush1.msra.mxu0 0.0
    %4028 = vmatprep.subr.mxu0 0.0
    %4029 = vmatpush1.msra.mxu0 0.0
    %4030 = vmatprep.subr.mxu0 0.0
    %4031 = vmatpush1.msra.mxu0 0.0
    %4032 = vmatprep.subr.mxu0 0.0
    %4033 = vmatpush1.msra.mxu0 0.0
    %4034 = vmatprep.subr.mxu0 0.0
    %4035 = vmatpush1.msra.mxu0 0.0
    %4036 = vmatprep.subr.mxu0 0.0
    %4037 = vmatpush1.msra.mxu0 0.0
    %4038 = vmatprep.subr.mxu0 0.0
    %4039 = vmatpush1.msra.mxu0 0.0
    %4040 = vmatprep.subr.mxu0 0.0
    %4041 = vmatpush1.msra.mxu0 0.0
    %4042 = vmatprep.subr.mxu0 0.0
    %4043 = vmatpush1.msra.mxu0 0.0
    %4044 = vmatprep.subr.mxu0 0.0
    %4045 = vmatpush1.msra.mxu0 0.0
    %4046 = vmatprep.subr.mxu0 0.0
    %4047 = vmatpush1.msra.mxu0 0.0
    %4048 = vmatprep.subr.mxu0 0.0
    %4049 = vmatpush1.msra.mxu0 0.0
    %4050 = vmatprep.subr.mxu0 0.0
    %4051 = vmatpush1.msra.mxu0 0.0
    %4052 = vmatprep.subr.mxu0 0.0
    %4053 = vmatpush1.msra.mxu0 0.0
    %4054 = vmatprep.subr.mxu0 0.0
    %4055 = vmatpush1.msra.mxu0 0.0
    %4056 = vmatprep.subr.mxu0 0.0
    %4057 = vmatpush1.msra.mxu0 0.0
    %4058 = vmatprep.subr.mxu0 0.0
    %4059 = vmatpush1.msra.mxu0 0.0
    %4060 = vmatprep.subr.mxu0 0.0
    %4061 = vmatpush1.msra.mxu0 0.0
    %4062 = vmatprep.subr.mxu0 0.0
    %4063 = vmatpush1.msra.mxu0 0.0
    %4064 = vmatprep.subr.mxu0 0.0
    %4065 = vmatpush1.msra.mxu0 0.0
    %4066 = vmatprep.subr.mxu0 0.0
    %4067 = vmatpush1.msra.mxu0 0.0
    %4068 = vmatprep.subr.mxu0 0.0
    %4069 = vmatpush1.msra.mxu0 0.0
    %4070 = vmatprep.subr.mxu0 0.0
    %4071 = vmatpush1.msra.mxu0 0.0
    %4072 = vmatprep.subr.mxu0 0.0
    %4073 = vmatpush1.msra.mxu0 0.0
    %4074 = vmatprep.subr.mxu0 0.0
    %4075 = vmatpush1.msra.mxu0 0.0
    %4076 = vmatprep.mubr.f32.mxu0 0.0
    %4077 = vmatmul.mubr.f32.gmra.mrb[0].mxu0 %v3939
    %v4078 = vpop.f32.mrb[0].mxu0
    %v4079 = vadd.f32 0.0, %v4078
    %v4080 = vpop.f32.mrb[0].mxu0
    %v4081 = vadd.f32 0.0, %v4080
    %4082 = vdwg.mxu0
    %v4084 = vsel %vm396, %v3937, 0
    %4086 = vmatprep.subr.mxu0 %v342
    %4087 = vmatpush1.msra.mxu0 %v341
    %4088 = vmatprep.subr.mxu0 %v346
    %4089 = vmatpush1.msra.mxu0 %v345
    %4090 = vmatprep.subr.mxu0 %v350
    %4091 = vmatpush1.msra.mxu0 %v349
    %4092 = vmatprep.subr.mxu0 %v354
    %4093 = vmatpush1.msra.mxu0 %v353
    %4094 = vmatprep.subr.mxu0 0.0
    %4095 = vmatpush1.msra.mxu0 0.0
    %4096 = vmatprep.subr.mxu0 0.0
    %4097 = vmatpush1.msra.mxu0 0.0
    %4098 = vmatprep.subr.mxu0 0.0
    %4099 = vmatpush1.msra.mxu0 0.0
    %4100 = vmatprep.subr.mxu0 0.0
    %4101 = vmatpush1.msra.mxu0 0.0
    %4102 = vmatprep.subr.mxu0 0.0
    %4103 = vmatpush1.msra.mxu0 0.0
    %4104 = vmatprep.subr.mxu0 0.0
    %4105 = vmatpush1.msra.mxu0 0.0
    %4106 = vmatprep.subr.mxu0 0.0
    %4107 = vmatpush1.msra.mxu0 0.0
    %4108 = vmatprep.subr.mxu0 0.0
    %4109 = vmatpush1.msra.mxu0 0.0
    %4110 = vmatprep.subr.mxu0 0.0
    %4111 = vmatpush1.msra.mxu0 0.0
    %4112 = vmatprep.subr.mxu0 0.0
    %4113 = vmatpush1.msra.mxu0 0.0
    %4114 = vmatprep.subr.mxu0 0.0
    %4115 = vmatpush1.msra.mxu0 0.0
    %4116 = vmatprep.subr.mxu0 0.0
    %4117 = vmatpush1.msra.mxu0 0.0
    %4118 = vmatprep.subr.mxu0 0.0
    %4119 = vmatpush1.msra.mxu0 0.0
    %4120 = vmatprep.subr.mxu0 0.0
    %4121 = vmatpush1.msra.mxu0 0.0
    %4122 = vmatprep.subr.mxu0 0.0
    %4123 = vmatpush1.msra.mxu0 0.0
    %4124 = vmatprep.subr.mxu0 0.0
    %4125 = vmatpush1.msra.mxu0 0.0
    %4126 = vmatprep.subr.mxu0 0.0
    %4127 = vmatpush1.msra.mxu0 0.0
    %4128 = vmatprep.subr.mxu0 0.0
    %4129 = vmatpush1.msra.mxu0 0.0
    %4130 = vmatprep.subr.mxu0 0.0
    %4131 = vmatpush1.msra.mxu0 0.0
    %4132 = vmatprep.subr.mxu0 0.0
    %4133 = vmatpush1.msra.mxu0 0.0
    %4134 = vmatprep.subr.mxu0 0.0
    %4135 = vmatpush1.msra.mxu0 0.0
    %4136 = vmatprep.subr.mxu0 0.0
    %4137 = vmatpush1.msra.mxu0 0.0
    %4138 = vmatprep.subr.mxu0 0.0
    %4139 = vmatpush1.msra.mxu0 0.0
    %4140 = vmatprep.subr.mxu0 0.0
    %4141 = vmatpush1.msra.mxu0 0.0
    %4142 = vmatprep.subr.mxu0 0.0
    %4143 = vmatpush1.msra.mxu0 0.0
    %4144 = vmatprep.subr.mxu0 0.0
    %4145 = vmatpush1.msra.mxu0 0.0
    %4146 = vmatprep.subr.mxu0 0.0
    %4147 = vmatpush1.msra.mxu0 0.0
    %4148 = vmatprep.subr.mxu0 0.0
    %4149 = vmatpush1.msra.mxu0 0.0
    %4150 = vmatprep.mubr.f32.mxu0 0.0
    %4151 = vmatmul.mubr.f32.gmra.mrb[0].mxu0 %v4084
    %v4152 = vpop.f32.mrb[0].mxu0
    %v4153 = vadd.f32 %v4008, %v4152
    %v4154 = vpop.f32.mrb[0].mxu0
    %v4155 = vadd.f32 %v4010, %v4154
    %4156 = vdwg.mxu0
    %4157 = vmatprep.subr.mxu0 %v344
    %4158 = vmatpush1.msra.mxu0 %v343
    %4159 = vmatprep.subr.mxu0 %v348
    %4160 = vmatpush1.msra.mxu0 %v347
    %4161 = vmatprep.subr.mxu0 %v352
    %4162 = vmatpush1.msra.mxu0 %v351
    %4163 = vmatprep.subr.mxu0 %v356
    %4164 = vmatpush1.msra.mxu0 %v355
    %4165 = vmatprep.subr.mxu0 0.0
    %4166 = vmatpush1.msra.mxu0 0.0
    %4167 = vmatprep.subr.mxu0 0.0
    %4168 = vmatpush1.msra.mxu0 0.0
    %4169 = vmatprep.subr.mxu0 0.0
    %4170 = vmatpush1.msra.mxu0 0.0
    %4171 = vmatprep.subr.mxu0 0.0
    %4172 = vmatpush1.msra.mxu0 0.0
    %4173 = vmatprep.subr.mxu0 0.0
    %4174 = vmatpush1.msra.mxu0 0.0
    %4175 = vmatprep.subr.mxu0 0.0
    %4176 = vmatpush1.msra.mxu0 0.0
    %4177 = vmatprep.subr.mxu0 0.0
    %4178 = vmatpush1.msra.mxu0 0.0
    %4179 = vmatprep.subr.mxu0 0.0
    %4180 = vmatpush1.msra.mxu0 0.0
    %4181 = vmatprep.subr.mxu0 0.0
    %4182 = vmatpush1.msra.mxu0 0.0
    %4183 = vmatprep.subr.mxu0 0.0
    %4184 = vmatpush1.msra.mxu0 0.0
    %4185 = vmatprep.subr.mxu0 0.0
    %4186 = vmatpush1.msra.mxu0 0.0
    %4187 = vmatprep.subr.mxu0 0.0
    %4188 = vmatpush1.msra.mxu0 0.0
    %4189 = vmatprep.subr.mxu0 0.0
    %4190 = vmatpush1.msra.mxu0 0.0
    %4191 = vmatprep.subr.mxu0 0.0
    %4192 = vmatpush1.msra.mxu0 0.0
    %4193 = vmatprep.subr.mxu0 0.0
    %4194 = vmatpush1.msra.mxu0 0.0
    %4195 = vmatprep.subr.mxu0 0.0
    %4196 = vmatpush1.msra.mxu0 0.0
    %4197 = vmatprep.subr.mxu0 0.0
    %4198 = vmatpush1.msra.mxu0 0.0
    %4199 = vmatprep.subr.mxu0 0.0
    %4200 = vmatpush1.msra.mxu0 0.0
    %4201 = vmatprep.subr.mxu0 0.0
    %4202 = vmatpush1.msra.mxu0 0.0
    %4203 = vmatprep.subr.mxu0 0.0
    %4204 = vmatpush1.msra.mxu0 0.0
    %4205 = vmatprep.subr.mxu0 0.0
    %4206 = vmatpush1.msra.mxu0 0.0
    %4207 = vmatprep.subr.mxu0 0.0
    %4208 = vmatpush1.msra.mxu0 0.0
    %4209 = vmatprep.subr.mxu0 0.0
    %4210 = vmatpush1.msra.mxu0 0.0
    %4211 = vmatprep.subr.mxu0 0.0
    %4212 = vmatpush1.msra.mxu0 0.0
    %4213 = vmatprep.subr.mxu0 0.0
    %4214 = vmatpush1.msra.mxu0 0.0
    %4215 = vmatprep.subr.mxu0 0.0
    %4216 = vmatpush1.msra.mxu0 0.0
    %4217 = vmatprep.subr.mxu0 0.0
    %4218 = vmatpush1.msra.mxu0 0.0
    %4219 = vmatprep.subr.mxu0 0.0
    %4220 = vmatpush1.msra.mxu0 0.0
    %4221 = vmatprep.mubr.f32.mxu0 0.0
    %4222 = vmatmul.mubr.f32.gmra.mrb[0].mxu0 %v4084
    %v4223 = vpop.f32.mrb[0].mxu0
    %v4224 = vadd.f32 %v4079, %v4223
    %v4225 = vpop.f32.mrb[0].mxu0
    %v4226 = vadd.f32 %v4081, %v4225
    %4227 = vdwg.mxu0
    %v4228 = vadd.f32 %v4153, %v852
    %v4229 = vadd.f32 %v4155, %v856
    %v4230 = vadd.f32 %v4224, %v860
    %v4231 = vadd.f32 %v4226, %v864
    %v4232 = vmul.f32 %v4228, 0.5
    %v4233 = vmul.f32 %v4229, 0.5
    %v4234 = vtanh.pop %v4232
    %v4235 = vtanh.pop %v4233
    %v4236 = vmul.f32 %v4234, 0.5
    %v4237 = vmul.f32 %v4235, 0.5
    %v4238 = vadd.f32 %v4236, 0.5
    %v4239 = vadd.f32 %v4237, 0.5
    %v4240 = vmul.f32 %v4238, %v4231
    %v4241 = vadd.f32 %v4230, %v4240
    %v4242 = vtanh.pop %v4241
    %v4243 = vsub.f32 1.0, %v4239
    %v4244 = vmul.f32 %v4243, %v4242
    %v4245 = vmul.f32 %v4239, %v3769
    %v4246 = vadd.f32 %v4244, %v4245
    %v4247 = vmul.f32 %v3772, %v4246
    %v4248 = vmul.f32 %v3773, %v3769
    %v4249 = vadd.f32 %v4247, %v4248
    %v4250 = vmul.f32 %v3772, %v4249
    %4251 = vst [vmem:[#allocation3 + $0x38] sm:$0xff] %v4250
    %v4252 = vld [vmem:[#allocation4 + $0x58] sm:$0xff]
    %v4253 = vld [vmem:[#allocation4 + $0xb8] sm:$0xff]
    %v4254 = vld [vmem:[#allocation4 + $0x118] sm:$0xff]
    %v4255 = vld [vmem:[#allocation4 + $0x178] sm:$0xff]
    %v4256 = vld [vmem:[#allocation4 + $0x1d8] sm:$0xff]
    %v4257 = vld [vmem:[#allocation4 + $0x238] sm:$0xff]
    %v4258 = vld [vmem:[#allocation4 + $0x298] sm:$0xff]
    %v4259 = vld [vmem:[#allocation4 + $0x2f8] sm:$0xff]
    %v4260 = vld [vmem:[#allocation4 + $0x358] sm:$0xff]
    %v4261 = vld [vmem:[#allocation4 + $0x3b8] sm:$0xff]
    %v4262 = vld [vmem:[#allocation4 + $0x418] sm:$0xff]
    %v4263 = vld [vmem:[#allocation4 + $0x478] sm:$0xff]
    %v4264 = vld [vmem:[#allocation4 + $0x4d8] sm:$0xff]
    %v4265 = vld [vmem:[#allocation4 + $0x538] sm:$0xff]
    %v4266 = vld [vmem:[#allocation4 + $0x598] sm:$0xff]
    %v4267 = vld [vmem:[#allocation4 + $0x5f8] sm:$0xff]
    %v4268 = vld [vmem:[%s4 + $0xa] sm:$0x1]
    %v4269 = vld [vmem:[#allocation3] sm:$0xff]
    %v4270 = vld [vmem:[#allocation3 + $0x8] sm:$0xff]
    %v4271 = vld [vmem:[#allocation3 + $0x10] sm:$0xff]
    %v4272 = vld [vmem:[#allocation3 + $0x18] sm:$0xff]
    %v4273 = vld [vmem:[#allocation3 + $0x20] sm:$0xff]
    %v4274 = vld [vmem:[#allocation3 + $0x28] sm:$0xff]
    %v4275 = vld [vmem:[#allocation3 + $0x30] sm:$0xff]
    %v4276 = vld [vmem:[#allocation3 + $0x38] sm:$0xff]
    %v4278 = vlaneseq
    %v4279 = vshrl.u32 %v4278, 7
    %v4280 = vsub.s32 0, %v4279
    %v4281 = vrot.slane %v4268, %v4280
    %4283 = vmatprep.subr.mxu0 0.0
    %4284 = vmatpush1.msra.mxu0 %v4252
    %4285 = vmatprep.subr.mxu0 0.0
    %4286 = vmatpush1.msra.mxu0 %v4253
    %4287 = vmatprep.subr.mxu0 0.0
    %4288 = vmatpush1.msra.mxu0 %v4254
    %4289 = vmatprep.subr.mxu0 0.0
    %4290 = vmatpush1.msra.mxu0 %v4255
    %4291 = vmatprep.subr.mxu0 0.0
    %4292 = vmatpush1.msra.mxu0 %v4256
    %4293 = vmatprep.subr.mxu0 0.0
    %4294 = vmatpush1.msra.mxu0 %v4257
    %4295 = vmatprep.subr.mxu0 0.0
    %4296 = vmatpush1.msra.mxu0 %v4258
    %4297 = vmatprep.subr.mxu0 0.0
    %4298 = vmatpush1.msra.mxu0 %v4259
    %4299 = vmatprep.subr.mxu0 0.0
    %4300 = vmatpush1.msra.mxu0 %v4260
    %4301 = vmatprep.subr.mxu0 0.0
    %4302 = vmatpush1.msra.mxu0 %v4261
    %4303 = vmatprep.subr.mxu0 0.0
    %4304 = vmatpush1.msra.mxu0 %v4262
    %4305 = vmatprep.subr.mxu0 0.0
    %4306 = vmatpush1.msra.mxu0 %v4263
    %4307 = vmatprep.subr.mxu0 0.0
    %4308 = vmatpush1.msra.mxu0 %v4264
    %4309 = vmatprep.subr.mxu0 0.0
    %4310 = vmatpush1.msra.mxu0 %v4265
    %4311 = vmatprep.subr.mxu0 0.0
    %4312 = vmatpush1.msra.mxu0 %v4266
    %4313 = vmatprep.subr.mxu0 0.0
    %4314 = vmatpush1.msra.mxu0 %v4267
    %4315 = vmatprep.subr.mxu0 0.0
    %4316 = vmatpush1.msra.mxu0 0.0
    %4317 = vmatprep.subr.mxu0 0.0
    %4318 = vmatpush1.msra.mxu0 0.0
    %4319 = vmatprep.subr.mxu0 0.0
    %4320 = vmatpush1.msra.mxu0 0.0
    %4321 = vmatprep.subr.mxu0 0.0
    %4322 = vmatpush1.msra.mxu0 0.0
    %4323 = vmatprep.subr.mxu0 0.0
    %4324 = vmatpush1.msra.mxu0 0.0
    %4325 = vmatprep.subr.mxu0 0.0
    %4326 = vmatpush1.msra.mxu0 0.0
    %4327 = vmatprep.subr.mxu0 0.0
    %4328 = vmatpush1.msra.mxu0 0.0
    %4329 = vmatprep.subr.mxu0 0.0
    %4330 = vmatpush1.msra.mxu0 0.0
    %4331 = vmatprep.subr.mxu0 0.0
    %4332 = vmatpush1.msra.mxu0 0.0
    %4333 = vmatprep.subr.mxu0 0.0
    %4334 = vmatpush1.msra.mxu0 0.0
    %4335 = vmatprep.subr.mxu0 0.0
    %4336 = vmatpush1.msra.mxu0 0.0
    %4337 = vmatprep.subr.mxu0 0.0
    %4338 = vmatpush1.msra.mxu0 0.0
    %4339 = vmatprep.subr.mxu0 0.0
    %4340 = vmatpush1.msra.mxu0 0.0
    %4341 = vmatprep.subr.mxu0 0.0
    %4342 = vmatpush1.msra.mxu0 0.0
    %4343 = vmatprep.subr.mxu0 0.0
    %4344 = vmatpush1.msra.mxu0 0.0
    %4345 = vmatprep.subr.mxu0 0.0
    %4346 = vmatpush1.msra.mxu0 0.0
    %4347 = vmatprep.mubr.f32.mxu0 0.0
    %4348 = vmatmul.mubr.f32.gmra.mrb[0].mxu0 %v4269
    %v4349 = vpop.f32.mrb[0].mxu0
    %v4350 = vadd.f32 %v4281, %v4349
    %v4351 = vpop.f32.mrb[0].mxu0
    %4352 = vmatprep.mubr.f32.mxu0 0.0
    %4353 = vmatmul.mubr.f32.gmra.mrb[0].mxu0 %v4270
    %v4354 = vpop.f32.mrb[0].mxu0
    %v4355 = vadd.f32 %v4281, %v4354
    %v4356 = vpop.f32.mrb[0].mxu0
    %4357 = vmatprep.mubr.f32.mxu0 0.0
    %4358 = vmatmul.mubr.f32.gmra.mrb[0].mxu0 %v4271
    %v4359 = vpop.f32.mrb[0].mxu0
    %v4360 = vadd.f32 %v4281, %v4359
    %v4361 = vpop.f32.mrb[0].mxu0
    %4362 = vmatprep.mubr.f32.mxu0 0.0
    %4363 = vmatmul.mubr.f32.gmra.mrb[0].mxu0 %v4272
    %v4364 = vpop.f32.mrb[0].mxu0
    %v4365 = vadd.f32 %v4281, %v4364
    %v4366 = vpop.f32.mrb[0].mxu0
    %4367 = vmatprep.mubr.f32.mxu0 0.0
    %4368 = vmatmul.mubr.f32.gmra.mrb[0].mxu0 %v4273
    %v4369 = vpop.f32.mrb[0].mxu0
    %v4370 = vadd.f32 %v4281, %v4369
    %v4371 = vpop.f32.mrb[0].mxu0
    %4372 = vmatprep.mubr.f32.mxu0 0.0
    %4373 = vmatmul.mubr.f32.gmra.mrb[0].mxu0 %v4274
    %v4374 = vpop.f32.mrb[0].mxu0
    %v4375 = vadd.f32 %v4281, %v4374
    %v4376 = vpop.f32.mrb[0].mxu0
    %4377 = vmatprep.mubr.f32.mxu0 0.0
    %4378 = vmatmul.mubr.f32.gmra.mrb[0].mxu0 %v4275
    %v4379 = vpop.f32.mrb[0].mxu0
    %v4380 = vadd.f32 %v4281, %v4379
    %v4381 = vpop.f32.mrb[0].mxu0
    %4382 = vmatprep.mubr.f32.mxu0 0.0
    %4383 = vmatmul.mubr.f32.gmra.mrb[0].mxu0 %v4276
    %v4384 = vpop.f32.mrb[0].mxu0
    %v4385 = vadd.f32 %v4281, %v4384
    %v4386 = vpop.f32.mrb[0].mxu0
    %4387 = vdwg.mxu0
    %v4388 = vtanh.pop %v4350
    %v4389 = vtanh.pop %v4355
    %v4390 = vtanh.pop %v4360
    %v4391 = vtanh.pop %v4365
    %v4392 = vtanh.pop %v4370
    %v4393 = vtanh.pop %v4375
    %v4394 = vtanh.pop %v4380
    %v4395 = vtanh.pop %v4385
    %4396 = vst [vmem:[%s5] sm:$0xff] %v4388
    %4397 = vst [vmem:[%s5 + $0x8] sm:$0xff] %v4389
    %4398 = vst [vmem:[%s5 + $0x10] sm:$0xff] %v4390
    %4399 = vst [vmem:[%s5 + $0x18] sm:$0xff] %v4391
    %4400 = vst [vmem:[%s5 + $0x20] sm:$0xff] %v4392
    %4401 = vst [vmem:[%s5 + $0x28] sm:$0xff] %v4393
    %4402 = vst [vmem:[%s5 + $0x30] sm:$0xff] %v4394
    %4403 = vst [vmem:[%s5 + $0x38] sm:$0xff] %v4395
    // Predicated region
    $region26: #{_generator_forward_jit.1} parent=1 // pred_check
      _
    $region27: #{_generator_forward_jit.1} parent=1 // pred_check_branch
      %4405 = sbr.rel (0) target = $region29
    $region28: #{_generator_forward_jit.1} parent=1 // pred_region
      _
    $region29: #{_generator_forward_jit.1} parent=1 // pred_fallthru
      _
    // Predicated region
    $region30: #{_generator_forward_jit.1} parent=1 // pred_check
      _
    $region31: #{_generator_forward_jit.1} parent=1 // pred_check_branch
      %4407 = sbr.rel (0) target = $region33
    $region32: #{_generator_forward_jit.1} parent=1 // pred_region
      _
    $region33: #{_generator_forward_jit.1} parent=1 // pred_fallthru
      _
    %4408 = vsyncpa [#allocation5], 1

</llo_original>
